<compile_context>
chip_gen: v7x
topology: tpu7x:2x2x1
jax: 0.10.0
libtpu: 0.0.40
codegen_flags: <defaults>
</compile_context>

<pallas_src>
import functools

import jax
import jax.numpy as jnp
from jax.experimental import pallas as pl
from jax.experimental.pallas import tpu as pltpu

EXPANSION = 4
BN_EPS = 1e-5


def _bottleneck_kernel(x_top_ref, x_body_ref, x_bot_ref,
                       w1_ref, b1_ref, w2_ref, b2_ref, w3_ref, b3_ref,
                       o_ref, *, width):
    """One (batch, H-tile) grid step; everything is 2-D (rows, channels)."""
    W = width
    M = o_ref.shape[1]             # tile_h * W output rows for this step
    Pg = w2_ref.shape[1]           # planes, zero-padded to a multiple of 128
    f32 = jnp.float32
    cdt = w1_ref.dtype             # MXU input dtype (float32 or bfloat16)

    t = pl.program_id(1)
    n_t = pl.num_programs(1)

    # ---- conv1 (1x1) + BN1 + ReLU over body + one-image-row halos ----------
    x_body = x_body_ref[0]                                       # (M, Cin)
    xin = jnp.concatenate([x_top_ref[0], x_body, x_bot_ref[0]], axis=0)
    h = jnp.dot(xin.astype(cdt), w1_ref[...], preferred_element_type=f32)
    h = jnp.maximum(h + b1_ref[...], 0.0)                        # (M + 2W, Pg)

    # conv2's zero padding along H applies to the BN1/ReLU *output*, so halo
    # rows that fall outside the image are zeroed here (the clamped halo fetch
    # brought in real-but-irrelevant rows for t == 0 / t == n_t - 1).
    r = jax.lax.broadcasted_iota(jnp.int32, (M + 2 * W, 1), 0)
    in_img = ((r >= W) | (t > 0)) & ((r < M + W) | (t < n_t - 1))
    h = jnp.where(in_img, h, 0.0)
    hc = h.astype(cdt)

    # ---- conv2 (3x3, pad=1) + BN2 + ReLU ------------------------------------
    # Per-ky accumulation; output columns are grouped by kx (Pg lanes each, so
    # the tap slices below are 128-lane-aligned).
    big = jnp.dot(hc[0:M], w2_ref[0], preferred_element_type=f32)
    big += jnp.dot(hc[W:W + M], w2_ref[1], preferred_element_type=f32)
    big += jnp.dot(hc[2 * W:2 * W + M], w2_ref[2], preferred_element_type=f32)

    # kx side taps: shift by one flattened row (== one image column) and mask
    # the image's W-edge columns.  M is a multiple of W, so the rows that wrap
    # across the tile boundary land exactly on the masked edge columns.
    # TODO(synk): pltpu.roll (XLU slot) would co-issue with the MXU epilogue;
    # jnp.roll is kept for its guaranteed shift-sign convention.
    col = jax.lax.broadcasted_iota(jnp.int32, (M, 1), 0) % W
    c_l = jnp.where(col == 0, 0.0, jnp.roll(big[:, 0:Pg], 1, axis=0))
    c_r = jnp.where(col == W - 1, 0.0,
                    jnp.roll(big[:, 2 * Pg:3 * Pg], -1, axis=0))
    h2 = jnp.maximum(big[:, Pg:2 * Pg] + c_l + c_r + b2_ref[...], 0.0)

    # ---- conv3 (1x1) + BN3 + residual add + ReLU ----------------------------
    h3 = jnp.dot(h2.astype(cdt), w3_ref[...], preferred_element_type=f32)
    out = jnp.maximum(h3 + b3_ref[...] + x_body.astype(f32), 0.0)
    o_ref[0] = out.astype(o_ref.dtype)


def _round_up(x, m):
    return (x + m - 1) // m * m


def _pick_tile_h(H, W, tile_h, max_rows=1024):
    """Divisor of H; prefer tile_h*W a multiple of 256 (MXU fill), capped rows."""
    if tile_h is not None and 1 <= tile_h <= H and H % tile_h == 0:
        return tile_h
    divs = [d for d in range(1, H + 1) if H % d == 0 and d * W <= max_rows]
    if not divs:
        divs = [1]
    aligned = [d for d in divs if (d * W) % 256 == 0]
    return max(aligned) if aligned else max(divs)


def _default_vmem_limit():
    # ~half of physical VMEM (128 MiB on v5e/v6e -> 64 MiB, 64 MiB on v7x ->
    # 32 MiB); conservative 32 MiB fallback if the query is unavailable.
    try:
        cap = int(pltpu.get_tpu_info().vmem_capacity_bytes)
    except Exception:
        return 32 * 1024 * 1024
    return max(16 * 1024 * 1024, min(64 * 1024 * 1024, cap // 2))


def bottleneck_forward_nhwc(x_nhwc, params, *, tile_h=None,
                            compute_dtype=jnp.float32, vmem_limit_bytes=None):
    """NHWC-native Bottleneck forward.  x_nhwc: (N, H, W, Cin), Cin = planes*4."""
    (w1, g1, bt1, m1, v1,
     w2, g2, bt2, m2, v2,
     w3, g3, bt3, m3, v3) = params

    def fold(gamma, beta, mean, var):
        scale = gamma / jnp.sqrt(var + BN_EPS)
        return scale, beta - mean * scale

    s1, b1 = fold(g1, bt1, m1, v1)
    s2, b2 = fold(g2, bt2, m2, v2)
    s3, b3 = fold(g3, bt3, m3, v3)

    Cin_w, P = w1.shape
    Cout = w3.shape[1]
    Pg = _round_up(P, 128)                    # 128-lane-aligned interior width
    f32 = jnp.float32

    # Fold BN scales into the conv weights; zero-pad the interior planes dim to
    # Pg (padded channels stay exactly zero through conv2/conv3).
    w1p = jnp.zeros((Cin_w, Pg), f32).at[:, :P].set(w1 * s1[None, :])
    w1p = w1p.astype(compute_dtype)
    b1p = jnp.zeros((1, Pg), f32).at[:, :P].set(b1[None, :])

    w2s = w2.reshape(3, 3, P, P) * s2[None, None, None, :]      # (ky,kx,ci,co)
    w2p = jnp.zeros((3, 3, Pg, Pg), f32).at[:, :, :P, :P].set(w2s)
    # rows = ci, cols = kx*Pg + co, one (Pg, 3Pg) matrix per ky.
    w2m = jnp.transpose(w2p, (0, 2, 1, 3)).reshape(3, Pg, 3 * Pg)
    w2m = w2m.astype(compute_dtype)
    b2p = jnp.zeros((1, Pg), f32).at[:, :P].set(b2[None, :])

    w3p = jnp.zeros((Pg, Cout), f32).at[:P, :].set(w3 * s3[None, :])
    w3p = w3p.astype(compute_dtype)
    b3p = b3[None, :].astype(f32)

    N, H, W, Cin = x_nhwc.shape
    assert Cin == Cin_w
    assert Cin == Cout, "no-downsample Bottleneck requires inplanes == planes*4"
    # TODO(synk): stride != 1 and the optional `downsample` branch are not
    # implemented (module defaults stride=1, downsample=None are covered).

    tile_h = _pick_tile_h(H, W, tile_h)
    n_tiles = H // tile_h
    M = tile_h * W
    assert M % W == 0                 # kx-tap shift correctness relies on this
    # Halo blocks are one image row (W flattened rows) -> need sublane-aligned W.
    # TODO(synk): W % 8 != 0 (e.g. 7x7 stage) would need a rounded-up halo window.
    assert W % 8 == 0 or H == 1, "halo-row blocks require W % 8 == 0"

    io_dtype = compute_dtype          # bf16 here = bf16 activation HBM layout
    x_flat = x_nhwc.reshape(N, H * W, Cin).astype(io_dtype)

    def rep(arr):
        # Grid-invariant block (constant index map): fetched once, stays put.
        # TODO(synk): pipeline_mode=pl.Buffered(1) would drop the redundant
        # second buffer of these weight blocks (a few MiB at planes=512 on v7x).
        return pl.BlockSpec(arr.shape, lambda n, t: (0,) * arr.ndim)

    body_spec = pl.BlockSpec((1, M, Cin), lambda n, t: (n, t, 0))
    top_spec = pl.BlockSpec(
        (1, W, Cin), lambda n, t: (n, jnp.maximum(t * tile_h - 1, 0), 0))
    bot_spec = pl.BlockSpec(
        (1, W, Cin), lambda n, t: (n, jnp.minimum((t + 1) * tile_h, H - 1), 0))
    out_spec = pl.BlockSpec((1, M, Cout), lambda n, t: (n, t, 0))

    if vmem_limit_bytes is None:
        vmem_limit_bytes = _default_vmem_limit()

    out_flat = pl.pallas_call(
        functools.partial(_bottleneck_kernel, width=W),
        out_shape=jax.ShapeDtypeStruct((N, H * W, Cout), io_dtype),
        grid_spec=pltpu.PrefetchScalarGridSpec(
            num_scalar_prefetch=0,
            grid=(N, n_tiles),
            in_specs=[
                top_spec, body_spec, bot_spec,
                rep(w1p), rep(b1p), rep(w2m), rep(b2p), rep(w3p), rep(b3p),
            ],
            out_specs=out_spec,
        ),
        compiler_params=pltpu.CompilerParams(
            dimension_semantics=("parallel", "parallel"),
            vmem_limit_bytes=vmem_limit_bytes),
    )(x_flat, x_flat, x_flat, w1p, b1p, w2m, b2p, w3p, b3p)

    return out_flat.reshape(N, H, W, Cout)


def bottleneck_forward(x_nchw, params, *, tile_h=None,
                       compute_dtype=jnp.float32, vmem_limit_bytes=None):
    """NCHW parity wrapper for the PyTorch module.

    In a full NHWC network these two transposes (full-tensor HBM relayouts)
    should be elided by staying NHWC end-to-end; the kernel is NHWC-native.
    """
    x = jnp.transpose(x_nchw, (0, 2, 3, 1))
    out = bottleneck_forward_nhwc(x, params, tile_h=tile_h,
                                  compute_dtype=compute_dtype,
                                  vmem_limit_bytes=vmem_limit_bytes)
    return jnp.transpose(out, (0, 3, 1, 2))


def _reference(x_nchw, params):
    """Pure-JAX reference (lax.conv) of the same eval-mode Bottleneck."""
    (w1, g1, bt1, m1, v1,
     w2, g2, bt2, m2, v2,
     w3, g3, bt3, m3, v3) = params
    x = jnp.transpose(x_nchw, (0, 2, 3, 1))
    dn = ("NHWC", "HWIO", "NHWC")

    def bn(h, g, b, m, v):
        return (h - m) / jnp.sqrt(v + BN_EPS) * g + b

    P = w1.shape[1]
    h = jax.lax.conv_general_dilated(x, w1.reshape(1, 1, *w1.shape),
                                     (1, 1), "SAME", dimension_numbers=dn)
    h = jax.nn.relu(bn(h, g1, bt1, m1, v1))
    h = jax.lax.conv_general_dilated(h, w2.reshape(3, 3, P, P), (1, 1), "SAME",
                                     dimension_numbers=dn)
    h = jax.nn.relu(bn(h, g2, bt2, m2, v2))
    h = jax.lax.conv_general_dilated(h, w3.reshape(1, 1, *w3.shape),
                                     (1, 1), "SAME", dimension_numbers=dn)
    h = bn(h, g3, bt3, m3, v3)
    out = jax.nn.relu(h + x)
    return jnp.transpose(out, (0, 3, 1, 2))


def make_params(key, inplanes, planes):
    cout = planes * EXPANSION
    assert inplanes == cout, "no-downsample Bottleneck requires inplanes == planes*4"
    ks = jax.random.split(key, 9)
    w1 = jax.random.normal(ks[0], (inplanes, planes), jnp.float32) * 0.1
    w2 = jax.random.normal(ks[1], (9, planes, planes), jnp.float32) * 0.1
    w3 = jax.random.normal(ks[2], (planes, cout), jnp.float32) * 0.1

    def bn_params(kg, kb, c):
        gamma = 1.0 + 0.1 * jax.random.normal(kg, (c,), jnp.float32)
        beta = 0.1 * jax.random.normal(kb, (c,), jnp.float32)
        mean = 0.05 * jax.random.normal(jax.random.fold_in(kg, 7), (c,), jnp.float32)
        var = 1.0 + 0.1 * jax.random.uniform(jax.random.fold_in(kb, 7), (c,), jnp.float32)
        return gamma, beta, mean, var

    g1, bt1, m1, v1 = bn_params(ks[3], ks[4], planes)
    g2, bt2, m2, v2 = bn_params(ks[5], ks[6], planes)
    g3, bt3, m3, v3 = bn_params(ks[7], ks[8], cout)
    return (w1, g1, bt1, m1, v1,
            w2, g2, bt2, m2, v2,
            w3, g3, bt3, m3, v3)


if __name__ == "__main__":
    # Small shapes: batch=2, planes=8 -> inplanes = out channels = 32, 16x16
    # spatial.  (Real deployments should keep channel dims >= 128 so the
    # output store is a full-lane vst; kept small here per demo constraints.)
    N, planes, H, W = 2, 8, 16, 16
    inplanes = planes * EXPANSION

    key = jax.random.PRNGKey(0)
    kx, kp = jax.random.split(key)
    x = jax.random.normal(kx, (N, inplanes, H, W), jnp.float32)
    params = make_params(kp, inplanes, planes)

    # f32 path with two H-tiles per image (exercises the halo windows): grid (2, 2).
    out = jax.block_until_ready(bottleneck_forward(x, params, tile_h=8))
    ref = jax.block_until_ready(_reference(x, params))
    assert out.shape == (N, inplanes, H, W)
    assert jnp.allclose(out, ref, rtol=1e-4, atol=5e-4), "mismatch vs JAX reference"

    # bf16 activation-I/O path (recommended on v6e/v7x): bf16 HBM layout for x
    # and the output, bf16 MXU inputs, f32 accumulation + epilogue.  The
    # residual is added from the bf16 x (quantized skip path, accepted).
    # Auto tile_h here -> single H-tile, covering the n_tiles == 1 path.
    out_bf16 = jax.block_until_ready(
        bottleneck_forward(x, params, compute_dtype=jnp.bfloat16))
    assert out_bf16.shape == (N, inplanes, H, W)
    assert out_bf16.dtype == jnp.bfloat16
    out_bf16_f32 = out_bf16.astype(jnp.float32)
    assert bool(jnp.isfinite(out_bf16_f32).all())
    assert float(jnp.max(jnp.abs(out_bf16_f32 - ref))) < 0.3  # loose bf16 sanity check

    print("KERNEL_OK")
</pallas_src>

<mosaic_0001>
module attributes {stable_mosaic.version = 11 : i64} {
  func.func @_bottleneck_kernel(%arg0: i32, %arg1: i32, %arg2: memref<1x16x32xf32, #tpu.memory_space<vmem>>, %arg3: memref<1x128x32xf32, #tpu.memory_space<vmem>>, %arg4: memref<1x16x32xf32, #tpu.memory_space<vmem>>, %arg5: memref<32x128xf32, #tpu.memory_space<vmem>>, %arg6: memref<1x128xf32, #tpu.memory_space<vmem>>, %arg7: memref<3x128x384xf32, #tpu.memory_space<vmem>>, %arg8: memref<1x128xf32, #tpu.memory_space<vmem>>, %arg9: memref<128x32xf32, #tpu.memory_space<vmem>>, %arg10: memref<1x32xf32, #tpu.memory_space<vmem>>, %arg11: memref<1x128x32xf32, #tpu.memory_space<vmem>>) attributes {dimension_semantics = [#tpu.dimension_semantics<parallel>, #tpu.dimension_semantics<parallel>], iteration_bounds = array<i64: 2, 2>, scalar_prefetch = 0 : i64, scratch_operands = 0 : i64, tpu.core_type = #tpu.core_type<tc>, window_params = [{transform_indices = @transform_0, window_bounds = array<i64: 1, 16, 32>}, {transform_indices = @transform_1, window_bounds = array<i64: 1, 128, 32>}, {transform_indices = @transform_2, window_bounds = array<i64: 1, 16, 32>}, {pipeline_mode = #tpu.pipeline_mode<synchronous>, transform_indices = @transform_3, window_bounds = array<i64: 32, 128>}, {pipeline_mode = #tpu.pipeline_mode<synchronous>, transform_indices = @transform_4, window_bounds = array<i64: 1, 128>}, {pipeline_mode = #tpu.pipeline_mode<synchronous>, transform_indices = @transform_5, window_bounds = array<i64: 3, 128, 384>}, {pipeline_mode = #tpu.pipeline_mode<synchronous>, transform_indices = @transform_6, window_bounds = array<i64: 1, 128>}, {pipeline_mode = #tpu.pipeline_mode<synchronous>, transform_indices = @transform_7, window_bounds = array<i64: 128, 32>}, {pipeline_mode = #tpu.pipeline_mode<synchronous>, transform_indices = @transform_8, window_bounds = array<i64: 1, 32>}, {transform_indices = @transform_9, window_bounds = array<i64: 1, 128, 32>}]} {
    %c0 = arith.constant 0 : index
    %c0_0 = arith.constant 0 : index
    %c0_1 = arith.constant 0 : index
    %0 = vector.load %arg3[%c0, %c0_0, %c0_1] : memref<1x128x32xf32, #tpu.memory_space<vmem>>, vector<1x128x32xf32>
    %1 = vector.shape_cast %0 : vector<1x128x32xf32> to vector<128x32xf32>
    %c0_2 = arith.constant 0 : index
    %c0_3 = arith.constant 0 : index
    %c0_4 = arith.constant 0 : index
    %2 = vector.load %arg2[%c0_2, %c0_3, %c0_4] : memref<1x16x32xf32, #tpu.memory_space<vmem>>, vector<1x16x32xf32>
    %3 = vector.shape_cast %2 : vector<1x16x32xf32> to vector<16x32xf32>
    %c0_5 = arith.constant 0 : index
    %c0_6 = arith.constant 0 : index
    %c0_7 = arith.constant 0 : index
    %4 = vector.load %arg4[%c0_5, %c0_6, %c0_7] : memref<1x16x32xf32, #tpu.memory_space<vmem>>, vector<1x16x32xf32>
    %5 = vector.shape_cast %4 : vector<1x16x32xf32> to vector<16x32xf32>
    %6 = tpu.concatenate %3, %1, %5 in 0 : vector<16x32xf32>, vector<128x32xf32>, vector<16x32xf32> -> vector<160x32xf32>
    %c0_8 = arith.constant 0 : index
    %c0_9 = arith.constant 0 : index
    %7 = vector.load %arg5[%c0_8, %c0_9] : memref<32x128xf32, #tpu.memory_space<vmem>>, vector<32x128xf32>
    %cst = arith.constant dense<0.000000e+00> : vector<160x128xf32>
    %8 = tpu.matmul %6, %7, %cst {dimension_numbers = #tpu.dot_dimension_numbers<[1], [0], [0], [1], [0, 0, 1, 1], [], []>} : vector<160x32xf32>, vector<32x128xf32>, vector<160x128xf32> -> vector<160x128xf32>
    %c0_10 = arith.constant 0 : index
    %c0_11 = arith.constant 0 : index
    %9 = vector.load %arg6[%c0_10, %c0_11] : memref<1x128xf32, #tpu.memory_space<vmem>>, vector<1x128xf32>
    %10 = vector.broadcast %9 : vector<1x128xf32> to vector<160x128xf32>
    %11 = arith.addf %8, %10 : vector<160x128xf32>
    %cst_12 = arith.constant 0.000000e+00 : f32
    %12 = vector.broadcast %cst_12 : f32 to vector<160x128xf32>
    %13 = arith.maximumf %11, %12 : vector<160x128xf32>
    %14 = tpu.iota {dimensions = array<i32: 0>} : vector<160x1xi32>
    %c16_i32 = arith.constant 16 : i32
    %15 = vector.broadcast %c16_i32 : i32 to vector<160x1xi32>
    %16 = arith.cmpi sge, %14, %15 : vector<160x1xi32>
    %c0_i32 = arith.constant 0 : i32
    %17 = arith.cmpi sgt, %arg1, %c0_i32 : i32
    %18 = vector.broadcast %17 : i1 to vector<160x1xi1>
    %19 = arith.ori %16, %18 : vector<160x1xi1>
    %c144_i32 = arith.constant 144 : i32
    %20 = vector.broadcast %c144_i32 : i32 to vector<160x1xi32>
    %21 = arith.cmpi slt, %14, %20 : vector<160x1xi32>
    %c1_i32 = arith.constant 1 : i32
    %22 = arith.cmpi slt, %arg1, %c1_i32 : i32
    %23 = vector.broadcast %22 : i1 to vector<160x1xi1>
    %24 = arith.ori %21, %23 : vector<160x1xi1>
    %25 = arith.andi %19, %24 : vector<160x1xi1>
    %cst_13 = arith.constant 0.000000e+00 : f32
    %26 = vector.shape_cast %25 : vector<160x1xi1> to vector<160x1xi1>
    %27 = vector.broadcast %26 : vector<160x1xi1> to vector<160x128xi1>
    %28 = vector.broadcast %cst_13 : f32 to vector<160x128xf32>
    %29 = arith.select %27, %13, %28 : vector<160x128xi1>, vector<160x128xf32>
    %30 = vector.extract_strided_slice %29 {offsets = [0, 0], sizes = [128, 128], strides = [1, 1]} : vector<160x128xf32> to vector<128x128xf32>
    %c0_14 = arith.constant 0 : index
    %c0_15 = arith.constant 0 : index
    %c0_16 = arith.constant 0 : index
    %31 = vector.load %arg7[%c0_14, %c0_15, %c0_16] : memref<3x128x384xf32, #tpu.memory_space<vmem>>, vector<1x128x384xf32>
    %32 = vector.shape_cast %31 : vector<1x128x384xf32> to vector<128x384xf32>
    %cst_17 = arith.constant dense<0.000000e+00> : vector<128x384xf32>
    %33 = tpu.matmul %30, %32, %cst_17 {dimension_numbers = #tpu.dot_dimension_numbers<[1], [0], [0], [1], [0, 0, 1, 1], [], []>} : vector<128x128xf32>, vector<128x384xf32>, vector<128x384xf32> -> vector<128x384xf32>
    %34 = vector.extract_strided_slice %29 {offsets = [16, 0], sizes = [128, 128], strides = [1, 1]} : vector<160x128xf32> to vector<128x128xf32>
    %c1 = arith.constant 1 : index
    %c0_18 = arith.constant 0 : index
    %c0_19 = arith.constant 0 : index
    %35 = vector.load %arg7[%c1, %c0_18, %c0_19] : memref<3x128x384xf32, #tpu.memory_space<vmem>>, vector<1x128x384xf32>
    %36 = vector.shape_cast %35 : vector<1x128x384xf32> to vector<128x384xf32>
    %cst_20 = arith.constant dense<0.000000e+00> : vector<128x384xf32>
    %37 = tpu.matmul %34, %36, %cst_20 {dimension_numbers = #tpu.dot_dimension_numbers<[1], [0], [0], [1], [0, 0, 1, 1], [], []>} : vector<128x128xf32>, vector<128x384xf32>, vector<128x384xf32> -> vector<128x384xf32>
    %38 = arith.addf %33, %37 : vector<128x384xf32>
    %39 = vector.extract_strided_slice %29 {offsets = [32, 0], sizes = [128, 128], strides = [1, 1]} : vector<160x128xf32> to vector<128x128xf32>
    %c2 = arith.constant 2 : index
    %c0_21 = arith.constant 0 : index
    %c0_22 = arith.constant 0 : index
    %40 = vector.load %arg7[%c2, %c0_21, %c0_22] : memref<3x128x384xf32, #tpu.memory_space<vmem>>, vector<1x128x384xf32>
    %41 = vector.shape_cast %40 : vector<1x128x384xf32> to vector<128x384xf32>
    %cst_23 = arith.constant dense<0.000000e+00> : vector<128x384xf32>
    %42 = tpu.matmul %39, %41, %cst_23 {dimension_numbers = #tpu.dot_dimension_numbers<[1], [0], [0], [1], [0, 0, 1, 1], [], []>} : vector<128x128xf32>, vector<128x384xf32>, vector<128x384xf32> -> vector<128x384xf32>
    %43 = arith.addf %38, %42 : vector<128x384xf32>
    %44 = tpu.iota {dimensions = array<i32: 0>} : vector<128x1xi32>
    %c16_i32_24 = arith.constant 16 : i32
    %c0_i32_25 = arith.constant 0 : i32
    %45 = arith.cmpi eq, %c16_i32_24, %c0_i32_25 : i32
    %c1_i32_26 = arith.constant 1 : i32
    %46 = arith.select %45, %c1_i32_26, %c16_i32_24 : i32
    %47 = vector.broadcast %46 : i32 to vector<128x1xi32>
    %48 = arith.remsi %44, %47 : vector<128x1xi32>
    %c0_i32_27 = arith.constant 0 : i32
    %49 = vector.broadcast %c0_i32_27 : i32 to vector<128x1xi32>
    %50 = arith.cmpi ne, %48, %49 : vector<128x1xi32>
    %c0_i32_28 = arith.constant 0 : i32
    %51 = vector.broadcast %c0_i32_28 : i32 to vector<128x1xi32>
    %52 = arith.cmpi slt, %48, %51 : vector<128x1xi32>
    %c0_i32_29 = arith.constant 0 : i32
    %53 = arith.cmpi slt, %46, %c0_i32_29 : i32
    %54 = vector.broadcast %53 : i1 to vector<128x1xi1>
    %55 = vector.broadcast %54 : vector<128x1xi1> to vector<128x1xi1>
    %56 = arith.xori %52, %55 : vector<128x1xi1>
    %57 = arith.andi %56, %50 : vector<128x1xi1>
    %58 = vector.broadcast %46 : i32 to vector<128x1xi32>
    %59 = arith.addi %48, %58 : vector<128x1xi32>
    %60 = arith.select %57, %59, %48 : vector<128x1xi1>, vector<128x1xi32>
    %c0_i32_30 = arith.constant 0 : i32
    %61 = vector.broadcast %c0_i32_30 : i32 to vector<128x1xi32>
    %62 = arith.cmpi eq, %60, %61 : vector<128x1xi32>
    %63 = vector.extract_strided_slice %43 {offsets = [0, 0], sizes = [128, 128], strides = [1, 1]} : vector<128x384xf32> to vector<128x128xf32>
    %64 = vector.extract_strided_slice %63 {offsets = [127, 0], sizes = [1, 128], strides = [1, 1]} : vector<128x128xf32> to vector<1x128xf32>
    %65 = vector.extract_strided_slice %63 {offsets = [0, 0], sizes = [127, 128], strides = [1, 1]} : vector<128x128xf32> to vector<127x128xf32>
    %66 = tpu.concatenate %64, %65 in 0 : vector<1x128xf32>, vector<127x128xf32> -> vector<128x128xf32>
    %cst_31 = arith.constant 0.000000e+00 : f32
    %67 = vector.shape_cast %62 : vector<128x1xi1> to vector<128x1xi1>
    %68 = vector.broadcast %67 : vector<128x1xi1> to vector<128x128xi1>
    %69 = vector.broadcast %cst_31 : f32 to vector<128x128xf32>
    %70 = arith.select %68, %69, %66 : vector<128x128xi1>, vector<128x128xf32>
    %c15_i32 = arith.constant 15 : i32
    %71 = vector.broadcast %c15_i32 : i32 to vector<128x1xi32>
    %72 = arith.cmpi eq, %60, %71 : vector<128x1xi32>
    %73 = vector.extract_strided_slice %43 {offsets = [0, 256], sizes = [128, 128], strides = [1, 1]} : vector<128x384xf32> to vector<128x128xf32>
    %74 = vector.extract_strided_slice %73 {offsets = [1, 0], sizes = [127, 128], strides = [1, 1]} : vector<128x128xf32> to vector<127x128xf32>
    %75 = vector.extract_strided_slice %73 {offsets = [0, 0], sizes = [1, 128], strides = [1, 1]} : vector<128x128xf32> to vector<1x128xf32>
    %76 = tpu.concatenate %74, %75 in 0 : vector<127x128xf32>, vector<1x128xf32> -> vector<128x128xf32>
    %cst_32 = arith.constant 0.000000e+00 : f32
    %77 = vector.shape_cast %72 : vector<128x1xi1> to vector<128x1xi1>
    %78 = vector.broadcast %77 : vector<128x1xi1> to vector<128x128xi1>
    %79 = vector.broadcast %cst_32 : f32 to vector<128x128xf32>
    %80 = arith.select %78, %79, %76 : vector<128x128xi1>, vector<128x128xf32>
    %81 = vector.extract_strided_slice %43 {offsets = [0, 128], sizes = [128, 128], strides = [1, 1]} : vector<128x384xf32> to vector<128x128xf32>
    %82 = arith.addf %81, %70 : vector<128x128xf32>
    %83 = arith.addf %82, %80 : vector<128x128xf32>
    %c0_33 = arith.constant 0 : index
    %c0_34 = arith.constant 0 : index
    %84 = vector.load %arg8[%c0_33, %c0_34] : memref<1x128xf32, #tpu.memory_space<vmem>>, vector<1x128xf32>
    %85 = vector.broadcast %84 : vector<1x128xf32> to vector<128x128xf32>
    %86 = arith.addf %83, %85 : vector<128x128xf32>
    %cst_35 = arith.constant 0.000000e+00 : f32
    %87 = vector.broadcast %cst_35 : f32 to vector<128x128xf32>
    %88 = arith.maximumf %86, %87 : vector<128x128xf32>
    %c0_36 = arith.constant 0 : index
    %c0_37 = arith.constant 0 : index
    %89 = vector.load %arg9[%c0_36, %c0_37] : memref<128x32xf32, #tpu.memory_space<vmem>>, vector<128x32xf32>
    %cst_38 = arith.constant dense<0.000000e+00> : vector<128x32xf32>
    %90 = tpu.matmul %88, %89, %cst_38 {dimension_numbers = #tpu.dot_dimension_numbers<[1], [0], [0], [1], [0, 0, 1, 1], [], []>} : vector<128x128xf32>, vector<128x32xf32>, vector<128x32xf32> -> vector<128x32xf32>
    %c0_39 = arith.constant 0 : index
    %c0_40 = arith.constant 0 : index
    %91 = vector.load %arg10[%c0_39, %c0_40] : memref<1x32xf32, #tpu.memory_space<vmem>>, vector<1x32xf32>
    %92 = vector.broadcast %91 : vector<1x32xf32> to vector<128x32xf32>
    %93 = arith.addf %90, %92 : vector<128x32xf32>
    %94 = arith.addf %93, %1 : vector<128x32xf32>
    %cst_41 = arith.constant 0.000000e+00 : f32
    %95 = vector.broadcast %cst_41 : f32 to vector<128x32xf32>
    %96 = arith.maximumf %94, %95 : vector<128x32xf32>
    %c0_42 = arith.constant 0 : index
    %c0_43 = arith.constant 0 : index
    %c0_44 = arith.constant 0 : index
    %97 = vector.load %arg11[%c0_42, %c0_43, %c0_44] : memref<1x128x32xf32, #tpu.memory_space<vmem>>, vector<1x128x32xf32>
    %98 = vector.shape_cast %97 : vector<1x128x32xf32> to vector<128x32xf32>
    %99 = vector.shape_cast %96 : vector<128x32xf32> to vector<1x128x32xf32>
    tpu.vector_store %arg11[%c0_42, %c0_43, %c0_44], %99 {strides = array<i32>} : memref<1x128x32xf32, #tpu.memory_space<vmem>>, vector<1x128x32xf32>,
    return
  }
  func.func @transform_0(%arg0: i32, %arg1: i32) -> (i32, i32, i32) {
    %c8_i32 = arith.constant 8 : i32
    %0 = arith.muli %arg1, %c8_i32 : i32
    %c1_i32 = arith.constant 1 : i32
    %1 = arith.subi %0, %c1_i32 : i32
    %c0_i32 = arith.constant 0 : i32
    %2 = arith.maxsi %1, %c0_i32 : i32
    %c0_i32_0 = arith.constant 0 : i32
    %c0_i32_1 = arith.constant 0 : i32
    return %arg0, %2, %c0_i32_0 : i32, i32, i32
  }
  func.func @transform_1(%arg0: i32, %arg1: i32) -> (i32, i32, i32) {
    %c0_i32 = arith.constant 0 : i32
    %c0_i32_0 = arith.constant 0 : i32
    return %arg0, %arg1, %c0_i32 : i32, i32, i32
  }
  func.func @transform_2(%arg0: i32, %arg1: i32) -> (i32, i32, i32) {
    %c1_i32 = arith.constant 1 : i32
    %0 = arith.addi %arg1, %c1_i32 : i32
    %c8_i32 = arith.constant 8 : i32
    %1 = arith.muli %0, %c8_i32 : i32
    %c15_i32 = arith.constant 15 : i32
    %2 = arith.minsi %1, %c15_i32 : i32
    %c0_i32 = arith.constant 0 : i32
    %c0_i32_0 = arith.constant 0 : i32
    return %arg0, %2, %c0_i32 : i32, i32, i32
  }
  func.func @transform_3(%arg0: i32, %arg1: i32) -> (i32, i32) {
    %c0_i32 = arith.constant 0 : i32
    %c0_i32_0 = arith.constant 0 : i32
    %c0_i32_1 = arith.constant 0 : i32
    return %c0_i32, %c0_i32_0 : i32, i32
  }
  func.func @transform_4(%arg0: i32, %arg1: i32) -> (i32, i32) {
    %c0_i32 = arith.constant 0 : i32
    %c0_i32_0 = arith.constant 0 : i32
    %c0_i32_1 = arith.constant 0 : i32
    return %c0_i32, %c0_i32_0 : i32, i32
  }
  func.func @transform_5(%arg0: i32, %arg1: i32) -> (i32, i32, i32) {
    %c0_i32 = arith.constant 0 : i32
    %c0_i32_0 = arith.constant 0 : i32
    %c0_i32_1 = arith.constant 0 : i32
    %c0_i32_2 = arith.constant 0 : i32
    return %c0_i32, %c0_i32_0, %c0_i32_1 : i32, i32, i32
  }
  func.func @transform_6(%arg0: i32, %arg1: i32) -> (i32, i32) {
    %c0_i32 = arith.constant 0 : i32
    %c0_i32_0 = arith.constant 0 : i32
    %c0_i32_1 = arith.constant 0 : i32
    return %c0_i32, %c0_i32_0 : i32, i32
  }
  func.func @transform_7(%arg0: i32, %arg1: i32) -> (i32, i32) {
    %c0_i32 = arith.constant 0 : i32
    %c0_i32_0 = arith.constant 0 : i32
    %c0_i32_1 = arith.constant 0 : i32
    return %c0_i32, %c0_i32_0 : i32, i32
  }
  func.func @transform_8(%arg0: i32, %arg1: i32) -> (i32, i32) {
    %c0_i32 = arith.constant 0 : i32
    %c0_i32_0 = arith.constant 0 : i32
    %c0_i32_1 = arith.constant 0 : i32
    return %c0_i32, %c0_i32_0 : i32, i32
  }
  func.func @transform_9(%arg0: i32, %arg1: i32) -> (i32, i32, i32) {
    %c0_i32 = arith.constant 0 : i32
    %c0_i32_0 = arith.constant 0 : i32
    return %arg0, %arg1, %c0_i32 : i32, i32, i32
  }
}

</mosaic_0001>

<llo_original>
// kernel: tpu_custom_call.1
$region0: #{tpu_custom_call.1}
  #allocation0 [shape = 'u32[]', space=smem, size = 0x4, offset = 0x4, fixed_abs, tag = 'smem constant byte address 0x4 - core index']
  #allocation1 [shape = 'u32[144,128]{1,0:T(1,128)}', space=vmem, size = 0x12000, scoped, tag = 'internal scratch']
  %s0 = inlined_call_operand.vmem [shape: f32[2,256,32], index: 0, kind: input, shape index: {}]
  %s1 = inlined_call_operand.vmem [shape: f32[2,256,32], index: 1, kind: input, shape index: {}]
  %s2 = inlined_call_operand.vmem [shape: f32[2,256,32], index: 2, kind: input, shape index: {}]
  %s3 = inlined_call_operand.vmem [shape: f32[32,128], index: 3, kind: input, shape index: {}]
  %s4 = inlined_call_operand.vmem [shape: f32[1,128], index: 4, kind: input, shape index: {}]
  %s5 = inlined_call_operand.vmem [shape: f32[3,128,384], index: 5, kind: input, shape index: {}]
  %s6 = inlined_call_operand.vmem [shape: f32[1,128], index: 6, kind: input, shape index: {}]
  %s7 = inlined_call_operand.vmem [shape: f32[128,32], index: 7, kind: input, shape index: {}]
  %s8 = inlined_call_operand.vmem [shape: f32[1,32], index: 8, kind: input, shape index: {}]
  %s9 = inlined_call_operand.vmem [shape: f32[2,256,32], index: 9, kind: output, shape index: {}]
  %s10 = sld [smem:[#allocation0]]
  $region69: #{tpu_custom_call.1} parent=0
    _
  %s12 = ssub.s32 1, %s10
  %s13 = scalar_select 0, %s12, %s10
  loop: start=0, step=1, limit=6
  $region2: #{tpu_custom_call.1} parent=0 // loop_pre_header
    _
  $region3: #{tpu_custom_call.1} parent=0 // loop_header
    %s15 = sphi 0, %s19
    %p16 = scmp.ge.s32.totalorder %s15, 6
    %s22 = sphi 0, %s34
    %s23 = sphi 0, %s30
    %s24 = sphi 0, %s22
    %s25 = sphi 0, %s23
    %s26 = sphi 0, %s24
    %s27 = sphi 0, %s25
    %s47 = sphi 0, %s49
    %s50 = sphi 0, %s47
    %s51 = sphi 0, %s50
    %s67 = sphi 0, %s51
    %s75 = sphi 0, %s77
    %s78 = sphi 0, %s75
    %s79 = sphi 0, %s78
    %s95 = sphi 0, %s79
    %s111 = sphi 0, %s113
    %s114 = sphi 0, %s111
    %s115 = sphi 0, %s114
    %s131 = sphi 0, %s115
    %s135 = sphi 0, %s135
    %s137 = sphi 0, %s135
    %s138 = sphi 0, %s137
    %s152 = sphi 0, %s138
    %s156 = sphi 0, %s156
    %s158 = sphi 0, %s156
    %s159 = sphi 0, %s158
    %s173 = sphi 0, %s159
    %s177 = sphi 0, %s177
    %s179 = sphi 0, %s177
    %s180 = sphi 0, %s179
    %s194 = sphi 0, %s180
    %s198 = sphi 0, %s198
    %s200 = sphi 0, %s198
    %s201 = sphi 0, %s200
    %s215 = sphi 0, %s201
    %s219 = sphi 0, %s219
    %s221 = sphi 0, %s219
    %s222 = sphi 0, %s221
    %s236 = sphi 0, %s222
    %s240 = sphi 0, %s240
    %s242 = sphi 0, %s240
    %s243 = sphi 0, %s242
    %s257 = sphi 0, %s243
    %s265 = sphi 0, %s267
    %s268 = sphi 0, %s265
    %s269 = sphi 0, %s268
    %s285 = sphi 0, %s269
  $region4: #{tpu_custom_call.1} parent=0 // loop_header_branch
    %18 = sbr.rel (%p16) target = $region8
  $region5: #{tpu_custom_call.1} parent=0 // loop_body
    %s20 = ssub.s32 %s15, 1
    %s21 = ssub.s32 %s15, 2
    %s28 = sadd.s32 1, %s23
    %p29 = scmp.ge.s32.totalorder %s28, 2
    %s30 = scalar_select %p29, 0, %s28
    %s31 = sadd.s32 1, %s22
    %s32 = scalar_select %p29, %s31, %s22
    %p33 = scmp.ge.s32.totalorder %s32, 2
    %s34 = scalar_select %p33, 0, %s32
    %s35 = smul.u32 %s23, 8
    %s36 = ssub.s32 %s35, 1
    %p37 = scmp.gt.s32.totalorder %s36, 0
    %s38 = scalar_select %p37, %s36, 0
    %s39 = smul.u32 %s30, 8
    %s40 = ssub.s32 %s39, 1
    %p41 = scmp.gt.s32.totalorder %s40, 0
    %s42 = scalar_select %p41, %s40, 0
    %s43 = ssub.s32 %s22, %s34
    %s44 = ssub.s32 %s38, %s42
    %s45 = sor.u32 %s43, %s44
    %p46 = scmp.eq.s32.totalorder %s45, 0
    %s48 = sadd.s32 %s47, 1
    %s49 = scalar_select %p46, %s47, %s48
    %p52 = pneg %p46
    %p53 = scmp.eq.s32.totalorder %s15, 3
    %p54 = por %p52, %p53
    %p55 = scmp.ne.s32.totalorder %s47, %s50
    %p56 = scmp.eq.s32.totalorder %s15, 0
    %p57 = por %p55, %p56
    %p58 = scmp.ne.s32.totalorder %s47, %s50
    %p59 = scmp.eq.s32.totalorder %s20, 3
    %p60 = por %p58, %p59
    %p61 = scmp.ne.s32.totalorder %s50, %s51
    %p62 = scmp.eq.s32.totalorder %s20, 0
    %p63 = por %p61, %p62
    %p64 = scmp.ne.s32.totalorder %s50, %s51
    %p65 = scmp.eq.s32.totalorder %s21, 3
    %p66 = por %p64, %p65
    %p68 = scmp.ne.s32.totalorder %s51, %s67
    %p69 = scmp.eq.s32.totalorder %s21, 0
    %p70 = por %p68, %p69
    %s71 = ssub.s32 %s22, %s34
    %s72 = ssub.s32 %s23, %s30
    %s73 = sor.u32 %s71, %s72
    %p74 = scmp.eq.s32.totalorder %s73, 0
    %s76 = sadd.s32 %s75, 1
    %s77 = scalar_select %p74, %s75, %s76
    %p80 = pneg %p74
    %p81 = scmp.eq.s32.totalorder %s15, 3
    %p82 = por %p80, %p81
    %p83 = scmp.ne.s32.totalorder %s75, %s78
    %p84 = scmp.eq.s32.totalorder %s15, 0
    %p85 = por %p83, %p84
    %p86 = scmp.ne.s32.totalorder %s75, %s78
    %p87 = scmp.eq.s32.totalorder %s20, 3
    %p88 = por %p86, %p87
    %p89 = scmp.ne.s32.totalorder %s78, %s79
    %p90 = scmp.eq.s32.totalorder %s20, 0
    %p91 = por %p89, %p90
    %p92 = scmp.ne.s32.totalorder %s78, %s79
    %p93 = scmp.eq.s32.totalorder %s21, 3
    %p94 = por %p92, %p93
    %p96 = scmp.ne.s32.totalorder %s79, %s95
    %p97 = scmp.eq.s32.totalorder %s21, 0
    %p98 = por %p96, %p97
    %s99 = sadd.s32 %s23, 1
    %s100 = smul.u32 %s99, 8
    %p101 = scmp.lt.s32.totalorder %s100, 15
    %s102 = scalar_select %p101, %s100, 15
    %s103 = sadd.s32 %s30, 1
    %s104 = smul.u32 %s103, 8
    %p105 = scmp.lt.s32.totalorder %s104, 15
    %s106 = scalar_select %p105, %s104, 15
    %s107 = ssub.s32 %s22, %s34
    %s108 = ssub.s32 %s102, %s106
    %s109 = sor.u32 %s107, %s108
    %p110 = scmp.eq.s32.totalorder %s109, 0
    %s112 = sadd.s32 %s111, 1
    %s113 = scalar_select %p110, %s111, %s112
    %p116 = pneg %p110
    %p117 = scmp.eq.s32.totalorder %s15, 3
    %p118 = por %p116, %p117
    %p119 = scmp.ne.s32.totalorder %s111, %s114
    %p120 = scmp.eq.s32.totalorder %s15, 0
    %p121 = por %p119, %p120
    %p122 = scmp.ne.s32.totalorder %s111, %s114
    %p123 = scmp.eq.s32.totalorder %s20, 3
    %p124 = por %p122, %p123
    %p125 = scmp.ne.s32.totalorder %s114, %s115
    %p126 = scmp.eq.s32.totalorder %s20, 0
    %p127 = por %p125, %p126
    %p128 = scmp.ne.s32.totalorder %s114, %s115
    %p129 = scmp.eq.s32.totalorder %s21, 3
    %p130 = por %p128, %p129
    %p132 = scmp.ne.s32.totalorder %s115, %s131
    %p133 = scmp.eq.s32.totalorder %s21, 0
    %p134 = por %p132, %p133
    %s136 = sadd.s32 %s135, 1
    %p139 = scmp.eq.s32.totalorder %s15, 3
    %p140 = scmp.ne.s32.totalorder %s135, %s137
    %p141 = scmp.eq.s32.totalorder %s15, 0
    %p142 = por %p140, %p141
    %p143 = scmp.ne.s32.totalorder %s135, %s137
    %p144 = scmp.eq.s32.totalorder %s20, 3
    %p145 = por %p143, %p144
    %p146 = scmp.ne.s32.totalorder %s137, %s138
    %p147 = scmp.eq.s32.totalorder %s20, 0
    %p148 = por %p146, %p147
    %p149 = scmp.ne.s32.totalorder %s137, %s138
    %p150 = scmp.eq.s32.totalorder %s21, 3
    %p151 = por %p149, %p150
    %p153 = scmp.ne.s32.totalorder %s138, %s152
    %p154 = scmp.eq.s32.totalorder %s21, 0
    %p155 = por %p153, %p154
    %s157 = sadd.s32 %s156, 1
    %p160 = scmp.eq.s32.totalorder %s15, 3
    %p161 = scmp.ne.s32.totalorder %s156, %s158
    %p162 = scmp.eq.s32.totalorder %s15, 0
    %p163 = por %p161, %p162
    %p164 = scmp.ne.s32.totalorder %s156, %s158
    %p165 = scmp.eq.s32.totalorder %s20, 3
    %p166 = por %p164, %p165
    %p167 = scmp.ne.s32.totalorder %s158, %s159
    %p168 = scmp.eq.s32.totalorder %s20, 0
    %p169 = por %p167, %p168
    %p170 = scmp.ne.s32.totalorder %s158, %s159
    %p171 = scmp.eq.s32.totalorder %s21, 3
    %p172 = por %p170, %p171
    %p174 = scmp.ne.s32.totalorder %s159, %s173
    %p175 = scmp.eq.s32.totalorder %s21, 0
    %p176 = por %p174, %p175
    %s178 = sadd.s32 %s177, 1
    %p181 = scmp.eq.s32.totalorder %s15, 3
    %p182 = scmp.ne.s32.totalorder %s177, %s179
    %p183 = scmp.eq.s32.totalorder %s15, 0
    %p184 = por %p182, %p183
    %p185 = scmp.ne.s32.totalorder %s177, %s179
    %p186 = scmp.eq.s32.totalorder %s20, 3
    %p187 = por %p185, %p186
    %p188 = scmp.ne.s32.totalorder %s179, %s180
    %p189 = scmp.eq.s32.totalorder %s20, 0
    %p190 = por %p188, %p189
    %p191 = scmp.ne.s32.totalorder %s179, %s180
    %p192 = scmp.eq.s32.totalorder %s21, 3
    %p193 = por %p191, %p192
    %p195 = scmp.ne.s32.totalorder %s180, %s194
    %p196 = scmp.eq.s32.totalorder %s21, 0
    %p197 = por %p195, %p196
    %s199 = sadd.s32 %s198, 1
    %p202 = scmp.eq.s32.totalorder %s15, 3
    %p203 = scmp.ne.s32.totalorder %s198, %s200
    %p204 = scmp.eq.s32.totalorder %s15, 0
    %p205 = por %p203, %p204
    %p206 = scmp.ne.s32.totalorder %s198, %s200
    %p207 = scmp.eq.s32.totalorder %s20, 3
    %p208 = por %p206, %p207
    %p209 = scmp.ne.s32.totalorder %s200, %s201
    %p210 = scmp.eq.s32.totalorder %s20, 0
    %p211 = por %p209, %p210
    %p212 = scmp.ne.s32.totalorder %s200, %s201
    %p213 = scmp.eq.s32.totalorder %s21, 3
    %p214 = por %p212, %p213
    %p216 = scmp.ne.s32.totalorder %s201, %s215
    %p217 = scmp.eq.s32.totalorder %s21, 0
    %p218 = por %p216, %p217
    %s220 = sadd.s32 %s219, 1
    %p223 = scmp.eq.s32.totalorder %s15, 3
    %p224 = scmp.ne.s32.totalorder %s219, %s221
    %p225 = scmp.eq.s32.totalorder %s15, 0
    %p226 = por %p224, %p225
    %p227 = scmp.ne.s32.totalorder %s219, %s221
    %p228 = scmp.eq.s32.totalorder %s20, 3
    %p229 = por %p227, %p228
    %p230 = scmp.ne.s32.totalorder %s221, %s222
    %p231 = scmp.eq.s32.totalorder %s20, 0
    %p232 = por %p230, %p231
    %p233 = scmp.ne.s32.totalorder %s221, %s222
    %p234 = scmp.eq.s32.totalorder %s21, 3
    %p235 = por %p233, %p234
    %p237 = scmp.ne.s32.totalorder %s222, %s236
    %p238 = scmp.eq.s32.totalorder %s21, 0
    %p239 = por %p237, %p238
    %s241 = sadd.s32 %s240, 1
    %p244 = scmp.eq.s32.totalorder %s15, 3
    %p245 = scmp.ne.s32.totalorder %s240, %s242
    %p246 = scmp.eq.s32.totalorder %s15, 0
    %p247 = por %p245, %p246
    %p248 = scmp.ne.s32.totalorder %s240, %s242
    %p249 = scmp.eq.s32.totalorder %s20, 3
    %p250 = por %p248, %p249
    %p251 = scmp.ne.s32.totalorder %s242, %s243
    %p252 = scmp.eq.s32.totalorder %s20, 0
    %p253 = por %p251, %p252
    %p254 = scmp.ne.s32.totalorder %s242, %s243
    %p255 = scmp.eq.s32.totalorder %s21, 3
    %p256 = por %p254, %p255
    %p258 = scmp.ne.s32.totalorder %s243, %s257
    %p259 = scmp.eq.s32.totalorder %s21, 0
    %p260 = por %p258, %p259
    %s261 = ssub.s32 %s22, %s34
    %s262 = ssub.s32 %s23, %s30
    %s263 = sor.u32 %s261, %s262
    %p264 = scmp.eq.s32.totalorder %s263, 0
    %s266 = sadd.s32 %s265, 1
    %s267 = scalar_select %p264, %s265, %s266
    %p270 = pneg %p264
    %p271 = scmp.eq.s32.totalorder %s15, 3
    %p272 = por %p270, %p271
    %p273 = scmp.ne.s32.totalorder %s265, %s268
    %p274 = scmp.eq.s32.totalorder %s15, 0
    %p275 = por %p273, %p274
    %p276 = scmp.ne.s32.totalorder %s265, %s268
    %p277 = scmp.eq.s32.totalorder %s20, 3
    %p278 = por %p276, %p277
    %p279 = scmp.ne.s32.totalorder %s268, %s269
    %p280 = scmp.eq.s32.totalorder %s20, 0
    %p281 = por %p279, %p280
    %p282 = scmp.ne.s32.totalorder %s268, %s269
    %p283 = scmp.eq.s32.totalorder %s21, 3
    %p284 = por %p282, %p283
    %p286 = scmp.ne.s32.totalorder %s269, %s285
    %p287 = scmp.eq.s32.totalorder %s21, 0
    %p288 = por %p286, %p287
    %p289 = scmp.le.s32.totalorder 1, %s15
    %p290 = scmp.lt.s32.totalorder %s15, 5
    %p291 = pnand %p289, %p290
    %p292 = pneg %p291
    // Predicated region
    $region9: #{tpu_custom_call.1} parent=5 // pred_check
      _
    $region10: #{tpu_custom_call.1} parent=5 // pred_check_branch
      %294 = sbr.rel (%p291) target = $region12
    $region11: #{tpu_custom_call.1} parent=5 // pred_region
      %s295 = ssub.s32 %s15, 1
      // Predicated region
      $region13: #{tpu_custom_call.1} parent=11 // pred_check
        %p296 = pneg %p148
      $region14: #{tpu_custom_call.1} parent=11 // pred_check_branch
        %298 = sbr.rel (%p296) target = $region16
      $region15: #{tpu_custom_call.1} parent=11 // pred_region
        _
      $region16: #{tpu_custom_call.1} parent=11 // pred_fallthru
        _
      // Predicated region
      $region17: #{tpu_custom_call.1} parent=11 // pred_check
        %p299 = pneg %p169
      $region18: #{tpu_custom_call.1} parent=11 // pred_check_branch
        %301 = sbr.rel (%p299) target = $region20
      $region19: #{tpu_custom_call.1} parent=11 // pred_region
        _
      $region20: #{tpu_custom_call.1} parent=11 // pred_fallthru
        _
      // Predicated region
      $region21: #{tpu_custom_call.1} parent=11 // pred_check
        %p302 = pneg %p190
      $region22: #{tpu_custom_call.1} parent=11 // pred_check_branch
        %304 = sbr.rel (%p302) target = $region24
      $region23: #{tpu_custom_call.1} parent=11 // pred_region
        _
      $region24: #{tpu_custom_call.1} parent=11 // pred_fallthru
        _
      // Predicated region
      $region25: #{tpu_custom_call.1} parent=11 // pred_check
        %p305 = pneg %p211
      $region26: #{tpu_custom_call.1} parent=11 // pred_check_branch
        %307 = sbr.rel (%p305) target = $region28
      $region27: #{tpu_custom_call.1} parent=11 // pred_region
        _
      $region28: #{tpu_custom_call.1} parent=11 // pred_fallthru
        _
      // Predicated region
      $region29: #{tpu_custom_call.1} parent=11 // pred_check
        %p308 = pneg %p232
      $region30: #{tpu_custom_call.1} parent=11 // pred_check_branch
        %310 = sbr.rel (%p308) target = $region32
      $region31: #{tpu_custom_call.1} parent=11 // pred_region
        _
      $region32: #{tpu_custom_call.1} parent=11 // pred_fallthru
        _
      // Predicated region
      $region33: #{tpu_custom_call.1} parent=11 // pred_check
        %p311 = pneg %p253
      $region34: #{tpu_custom_call.1} parent=11 // pred_check_branch
        %313 = sbr.rel (%p311) target = $region36
      $region35: #{tpu_custom_call.1} parent=11 // pred_region
        _
      $region36: #{tpu_custom_call.1} parent=11 // pred_fallthru
        _
    $region12: #{tpu_custom_call.1} parent=5 // pred_fallthru
      _
    %p314 = scmp.lt.s32.totalorder %s15, 4
    // Predicated region
    $region37: #{tpu_custom_call.1} parent=5 // pred_check
      %p315 = pneg %p314
    $region38: #{tpu_custom_call.1} parent=5 // pred_check_branch
      %317 = sbr.rel (%p315) target = $region40
    $region39: #{tpu_custom_call.1} parent=5 // pred_region
      // Predicated region
      $region41: #{tpu_custom_call.1} parent=39 // pred_check
        %p318 = pneg %p57
      $region42: #{tpu_custom_call.1} parent=39 // pred_check_branch
        %320 = sbr.rel (%p318) target = $region44
      $region43: #{tpu_custom_call.1} parent=39 // pred_region
        %s321 = smul.u32 %s23, 8
        %s322 = ssub.s32 %s321, 1
        %p323 = scmp.gt.s32.totalorder %s322, 0
        %s324 = scalar_select %p323, %s322, 0
        %s325 = smul.u32 2, %s324
        %p326 = scmp.lt.s32.totalorder %s22, 1
        %s327 = scalar_select %p326, %s22, 1
        %p328 = scmp.lt.s32.totalorder %s325, 31
        %s329 = scalar_select %p328, %s325, 31
        %s330 = smul.addr %s327, 32
        %s331 = sadd.s32 %s329, %s330
        %s332 = smul.addr %s331, 8
        %s333 = scalar_lea.vmem %s0, %s332
        %s334 = smul.u32 %s23, 8
        %s335 = ssub.s32 %s334, 1
        %p336 = scmp.gt.s32.totalorder %s335, 0
        %s337 = scalar_select %p336, %s335, 0
        %s338 = smul.u32 2, %s337
      $region44: #{tpu_custom_call.1} parent=39 // pred_fallthru
        _
      // Predicated region
      $region45: #{tpu_custom_call.1} parent=39 // pred_check
        %p339 = pneg %p85
      $region46: #{tpu_custom_call.1} parent=39 // pred_check_branch
        %341 = sbr.rel (%p339) target = $region48
      $region47: #{tpu_custom_call.1} parent=39 // pred_region
        %s342 = smul.u32 16, %s23
        %p343 = scmp.lt.s32.totalorder %s22, 1
        %s344 = scalar_select %p343, %s22, 1
        %p345 = scmp.lt.s32.totalorder %s342, 31
        %s346 = scalar_select %p345, %s342, 31
        %s347 = smul.addr %s344, 32
        %s348 = sadd.s32 %s346, %s347
        %s349 = smul.addr %s348, 8
        %s350 = scalar_lea.vmem %s1, %s349
        %s351 = smul.u32 16, %s23
      $region48: #{tpu_custom_call.1} parent=39 // pred_fallthru
        _
      // Predicated region
      $region49: #{tpu_custom_call.1} parent=39 // pred_check
        %p352 = pneg %p121
      $region50: #{tpu_custom_call.1} parent=39 // pred_check_branch
        %354 = sbr.rel (%p352) target = $region52
      $region51: #{tpu_custom_call.1} parent=39 // pred_region
        %s355 = sadd.s32 %s23, 1
        %s356 = smul.u32 %s355, 8
        %p357 = scmp.lt.s32.totalorder %s356, 15
        %s358 = scalar_select %p357, %s356, 15
        %s359 = smul.u32 2, %s358
        %p360 = scmp.lt.s32.totalorder %s22, 1
        %s361 = scalar_select %p360, %s22, 1
        %p362 = scmp.lt.s32.totalorder %s359, 31
        %s363 = scalar_select %p362, %s359, 31
        %s364 = smul.addr %s361, 32
        %s365 = sadd.s32 %s363, %s364
        %s366 = smul.addr %s365, 8
        %s367 = scalar_lea.vmem %s2, %s366
        %s368 = sadd.s32 %s23, 1
        %s369 = smul.u32 %s368, 8
        %p370 = scmp.lt.s32.totalorder %s369, 15
        %s371 = scalar_select %p370, %s369, 15
        %s372 = smul.u32 2, %s371
      $region52: #{tpu_custom_call.1} parent=39 // pred_fallthru
        _
    $region40: #{tpu_custom_call.1} parent=5 // pred_fallthru
      _
    %p373 = scmp.le.s32.totalorder 1, %s15
    %p374 = scmp.lt.s32.totalorder %s15, 5
    %p375 = pnand %p373, %p374
    %p376 = pneg %p375
    // Predicated region
    $region53: #{tpu_custom_call.1} parent=5 // pred_check
      _
    $region54: #{tpu_custom_call.1} parent=5 // pred_check_branch
      %378 = sbr.rel (%p375) target = $region56
    $region55: #{tpu_custom_call.1} parent=5 // pred_region
      %s379 = ssub.s32 %s15, 1
      %s380 = smul.u32 %s25, 8
      %s381 = ssub.s32 %s380, 1
      %p382 = scmp.gt.s32.totalorder %s381, 0
      %s383 = scalar_select %p382, %s381, 0
      %s384 = smul.u32 2, %s383
      %p385 = scmp.lt.s32.totalorder %s24, 1
      %s386 = scalar_select %p385, %s24, 1
      %p387 = scmp.lt.s32.totalorder %s384, 31
      %s388 = scalar_select %p387, %s384, 31
      %s389 = smul.addr %s386, 32
      %s390 = sadd.s32 %s388, %s389
      %s391 = smul.addr %s390, 8
      %s392 = scalar_lea.vmem %s0, %s391
      %p393 = pneg %p63
      %p394 = pneg %p60
      %s395 = smul.u32 16, %s25
      %p396 = scmp.lt.s32.totalorder %s24, 1
      %s397 = scalar_select %p396, %s24, 1
      %p398 = scmp.lt.s32.totalorder %s395, 31
      %s399 = scalar_select %p398, %s395, 31
      %s400 = smul.addr %s397, 32
      %s401 = sadd.s32 %s399, %s400
      %s402 = smul.addr %s401, 8
      %s403 = scalar_lea.vmem %s1, %s402
      %p404 = pneg %p91
      %p405 = pneg %p88
      %s406 = sadd.s32 %s25, 1
      %s407 = smul.u32 %s406, 8
      %p408 = scmp.lt.s32.totalorder %s407, 15
      %s409 = scalar_select %p408, %s407, 15
      %s410 = smul.u32 2, %s409
      %p411 = scmp.lt.s32.totalorder %s24, 1
      %s412 = scalar_select %p411, %s24, 1
      %p413 = scmp.lt.s32.totalorder %s410, 31
      %s414 = scalar_select %p413, %s410, 31
      %s415 = smul.addr %s412, 32
      %s416 = sadd.s32 %s414, %s415
      %s417 = smul.addr %s416, 8
      %s418 = scalar_lea.vmem %s2, %s417
      %p419 = pneg %p127
      %p420 = pneg %p124
      %p421 = pneg %p148
      %p422 = pneg %p145
      %p423 = pneg %p169
      %p424 = pneg %p166
      %p425 = pneg %p190
      %p426 = pneg %p187
      %p427 = pneg %p211
      %p428 = pneg %p208
      %p429 = pneg %p232
      %p430 = pneg %p229
      %p431 = pneg %p253
      %p432 = pneg %p250
      %p433 = pneg %p281
      %p434 = pneg %p278
      %s435 = smul.u32 16, %s25
      %p436 = scmp.lt.s32.totalorder %s24, 1
      %s437 = scalar_select %p436, %s24, 1
      %p438 = scmp.lt.s32.totalorder %s435, 31
      %s439 = scalar_select %p438, %s435, 31
      %s440 = smul.addr %s437, 32
      %s441 = sadd.s32 %s439, %s440
      %s442 = smul.addr %s441, 8
      %s443 = scalar_lea.vmem %s9, %s442
      %s444 = smul.u32 %s25, 8
      %s445 = ssub.s32 %s444, 1
      %p446 = scmp.gt.s32.totalorder %s445, 0
      %s447 = scalar_select %p446, %s445, 0
      %s448 = smul.u32 2, %s447
      %p449 = scmp.lt.s32.totalorder %s24, 1
      %s450 = scalar_select %p449, %s24, 1
      %p451 = scmp.lt.s32.totalorder %s448, 31
      %s452 = scalar_select %p451, %s448, 31
      %s453 = smul.addr %s450, 32
      %s454 = sadd.s32 %s452, %s453
      %s455 = smul.addr %s454, 8
      %s456 = scalar_lea.vmem %s0, %s455
      %s457 = smul.u32 %s25, 8
      %s458 = ssub.s32 %s457, 1
      %p459 = scmp.gt.s32.totalorder %s458, 0
      %s460 = scalar_select %p459, %s458, 0
      %s461 = smul.u32 2, %s460
      %s462 = smul.u32 16, %s25
      %p463 = scmp.lt.s32.totalorder %s24, 1
      %s464 = scalar_select %p463, %s24, 1
      %p465 = scmp.lt.s32.totalorder %s462, 31
      %s466 = scalar_select %p465, %s462, 31
      %s467 = smul.addr %s464, 32
      %s468 = sadd.s32 %s466, %s467
      %s469 = smul.addr %s468, 8
      %s470 = scalar_lea.vmem %s1, %s469
      %s471 = smul.u32 16, %s25
      %s472 = sadd.s32 %s25, 1
      %s473 = smul.u32 %s472, 8
      %p474 = scmp.lt.s32.totalorder %s473, 15
      %s475 = scalar_select %p474, %s473, 15
      %s476 = smul.u32 2, %s475
      %p477 = scmp.lt.s32.totalorder %s24, 1
      %s478 = scalar_select %p477, %s24, 1
      %p479 = scmp.lt.s32.totalorder %s476, 31
      %s480 = scalar_select %p479, %s476, 31
      %s481 = smul.addr %s478, 32
      %s482 = sadd.s32 %s480, %s481
      %s483 = smul.addr %s482, 8
      %s484 = scalar_lea.vmem %s2, %s483
      %s485 = sadd.s32 %s25, 1
      %s486 = smul.u32 %s485, 8
      %p487 = scmp.lt.s32.totalorder %s486, 15
      %s488 = scalar_select %p487, %s486, 15
      %s489 = smul.u32 2, %s488
      %s490 = smul.u32 16, %s25
      %p491 = scmp.lt.s32.totalorder %s24, 1
      %s492 = scalar_select %p491, %s24, 1
      %p493 = scmp.lt.s32.totalorder %s490, 31
      %s494 = scalar_select %p493, %s490, 31
      %s495 = smul.addr %s492, 32
      %s496 = sadd.s32 %s494, %s495
      %s497 = smul.addr %s496, 8
      %s498 = scalar_lea.vmem %s9, %s497
      %s499 = smul.u32 16, %s25
      %v500 = vld [vmem:[%s470] sm:$0xff]
      %v501 = vld [vmem:[%s470 + $0x8] sm:$0xff]
      %v502 = vld [vmem:[%s470 + $0x10] sm:$0xff]
      %v503 = vld [vmem:[%s470 + $0x18] sm:$0xff]
      %v504 = vld [vmem:[%s470 + $0x20] sm:$0xff]
      %v505 = vld [vmem:[%s470 + $0x28] sm:$0xff]
      %v506 = vld [vmem:[%s470 + $0x30] sm:$0xff]
      %v507 = vld [vmem:[%s470 + $0x38] sm:$0xff]
      %v508 = vld [vmem:[%s470 + $0x40] sm:$0xff]
      %v509 = vld [vmem:[%s470 + $0x48] sm:$0xff]
      %v510 = vld [vmem:[%s470 + $0x50] sm:$0xff]
      %v511 = vld [vmem:[%s470 + $0x58] sm:$0xff]
      %v512 = vld [vmem:[%s470 + $0x60] sm:$0xff]
      %v513 = vld [vmem:[%s470 + $0x68] sm:$0xff]
      %v514 = vld [vmem:[%s470 + $0x70] sm:$0xff]
      %v515 = vld [vmem:[%s470 + $0x78] sm:$0xff]
      %v516 = vld [vmem:[%s456] sm:$0xff]
      %v517 = vld [vmem:[%s456 + $0x8] sm:$0xff]
      %v518 = vld [vmem:[%s484] sm:$0xff]
      %v519 = vld [vmem:[%s484 + $0x8] sm:$0xff]
      %v520 = vld [vmem:[%s3] sm:$0xff]
      %v521 = vld [vmem:[%s3 + $0x8] sm:$0xff]
      %v522 = vld [vmem:[%s3 + $0x10] sm:$0xff]
      %v523 = vld [vmem:[%s3 + $0x18] sm:$0xff]
      %v524 = vld [vmem:[%s4] sm:$0x1]
      %v526 = vlaneseq
      %v527 = vshrl.u32 %v526, 7
      %v528 = vsub.s32 0, %v527
      %v529 = vrot.slane %v524, %v528
      %vm531 = vcmask 261120
      %v533 = vsel %vm531, %v516, 0
      %v536 = vsel %vm531, %v517, 0
      %v539 = vsel %vm531, %v500, 0
      %v542 = vsel %vm531, %v501, 0
      %v545 = vsel %vm531, %v502, 0
      %v548 = vsel %vm531, %v503, 0
      %v551 = vsel %vm531, %v504, 0
      %v554 = vsel %vm531, %v505, 0
      %v557 = vsel %vm531, %v506, 0
      %v560 = vsel %vm531, %v507, 0
      %v563 = vsel %vm531, %v508, 0
      %v566 = vsel %vm531, %v509, 0
      %v569 = vsel %vm531, %v510, 0
      %v572 = vsel %vm531, %v511, 0
      %v575 = vsel %vm531, %v512, 0
      %v578 = vsel %vm531, %v513, 0
      %v581 = vsel %vm531, %v514, 0
      %v584 = vsel %vm531, %v515, 0
      %v587 = vsel %vm531, %v518, 0
      %v590 = vsel %vm531, %v519, 0
      %592 = vmatprep.subr.mxu0 0.0
      %593 = vmatpush1.msra.mxu0 %v520
      %594 = vmatprep.subr.mxu0 0.0
      %595 = vmatpush1.msra.mxu0 %v521
      %596 = vmatprep.subr.mxu0 0.0
      %597 = vmatpush1.msra.mxu0 %v522
      %598 = vmatprep.subr.mxu0 0.0
      %599 = vmatpush1.msra.mxu0 %v523
      %600 = vmatprep.subr.mxu0 0.0
      %601 = vmatpush1.msra.mxu0 0.0
      %602 = vmatprep.subr.mxu0 0.0
      %603 = vmatpush1.msra.mxu0 0.0
      %604 = vmatprep.subr.mxu0 0.0
      %605 = vmatpush1.msra.mxu0 0.0
      %606 = vmatprep.subr.mxu0 0.0
      %607 = vmatpush1.msra.mxu0 0.0
      %608 = vmatprep.subr.mxu0 0.0
      %609 = vmatpush1.msra.mxu0 0.0
      %610 = vmatprep.subr.mxu0 0.0
      %611 = vmatpush1.msra.mxu0 0.0
      %612 = vmatprep.subr.mxu0 0.0
      %613 = vmatpush1.msra.mxu0 0.0
      %614 = vmatprep.subr.mxu0 0.0
      %615 = vmatpush1.msra.mxu0 0.0
      %616 = vmatprep.subr.mxu0 0.0
      %617 = vmatpush1.msra.mxu0 0.0
      %618 = vmatprep.subr.mxu0 0.0
      %619 = vmatpush1.msra.mxu0 0.0
      %620 = vmatprep.subr.mxu0 0.0
      %621 = vmatpush1.msra.mxu0 0.0
      %622 = vmatprep.subr.mxu0 0.0
      %623 = vmatpush1.msra.mxu0 0.0
      %624 = vmatprep.subr.mxu0 0.0
      %625 = vmatpush1.msra.mxu0 0.0
      %626 = vmatprep.subr.mxu0 0.0
      %627 = vmatpush1.msra.mxu0 0.0
      %628 = vmatprep.subr.mxu0 0.0
      %629 = vmatpush1.msra.mxu0 0.0
      %630 = vmatprep.subr.mxu0 0.0
      %631 = vmatpush1.msra.mxu0 0.0
      %632 = vmatprep.subr.mxu0 0.0
      %633 = vmatpush1.msra.mxu0 0.0
      %634 = vmatprep.subr.mxu0 0.0
      %635 = vmatpush1.msra.mxu0 0.0
      %636 = vmatprep.subr.mxu0 0.0
      %637 = vmatpush1.msra.mxu0 0.0
      %638 = vmatprep.subr.mxu0 0.0
      %639 = vmatpush1.msra.mxu0 0.0
      %640 = vmatprep.subr.mxu0 0.0
      %641 = vmatpush1.msra.mxu0 0.0
      %642 = vmatprep.subr.mxu0 0.0
      %643 = vmatpush1.msra.mxu0 0.0
      %644 = vmatprep.subr.mxu0 0.0
      %645 = vmatpush1.msra.mxu0 0.0
      %646 = vmatprep.subr.mxu0 0.0
      %647 = vmatpush1.msra.mxu0 0.0
      %648 = vmatprep.subr.mxu0 0.0
      %649 = vmatpush1.msra.mxu0 0.0
      %650 = vmatprep.subr.mxu0 0.0
      %651 = vmatpush1.msra.mxu0 0.0
      %652 = vmatprep.subr.mxu0 0.0
      %653 = vmatpush1.msra.mxu0 0.0
      %654 = vmatprep.subr.mxu0 0.0
      %655 = vmatpush1.msra.mxu0 0.0
      %656 = vmatprep.mubr.f32.mxu0 0.0
      %657 = vmatmul.mubr.f32.gmra.mrb[0].mxu0 %v533
      %v658 = vpop.f32.mrb[0].mxu0
      %v659 = vadd.f32 %v529, %v658
      %v660 = vpop.f32.mrb[0].mxu0
      %661 = vmatprep.mubr.f32.mxu0 0.0
      %662 = vmatmul.mubr.f32.gmra.mrb[0].mxu0 %v536
      %v663 = vpop.f32.mrb[0].mxu0
      %v664 = vadd.f32 %v529, %v663
      %v665 = vpop.f32.mrb[0].mxu0
      %666 = vmatprep.mubr.f32.mxu0 0.0
      %667 = vmatmul.mubr.f32.gmra.mrb[0].mxu0 %v539
      %v668 = vpop.f32.mrb[0].mxu0
      %v669 = vadd.f32 %v529, %v668
      %v670 = vpop.f32.mrb[0].mxu0
      %671 = vmatprep.mubr.f32.mxu0 0.0
      %672 = vmatmul.mubr.f32.gmra.mrb[0].mxu0 %v542
      %v673 = vpop.f32.mrb[0].mxu0
      %v674 = vadd.f32 %v529, %v673
      %v675 = vpop.f32.mrb[0].mxu0
      %676 = vmatprep.mubr.f32.mxu0 0.0
      %677 = vmatmul.mubr.f32.gmra.mrb[0].mxu0 %v545
      %v678 = vpop.f32.mrb[0].mxu0
      %v679 = vadd.f32 %v529, %v678
      %v680 = vpop.f32.mrb[0].mxu0
      %681 = vmatprep.mubr.f32.mxu0 0.0
      %682 = vmatmul.mubr.f32.gmra.mrb[0].mxu0 %v548
      %v683 = vpop.f32.mrb[0].mxu0
      %v684 = vadd.f32 %v529, %v683
      %v685 = vpop.f32.mrb[0].mxu0
      %686 = vmatprep.mubr.f32.mxu0 0.0
      %687 = vmatmul.mubr.f32.gmra.mrb[0].mxu0 %v551
      %v688 = vpop.f32.mrb[0].mxu0
      %v689 = vadd.f32 %v529, %v688
      %v690 = vpop.f32.mrb[0].mxu0
      %691 = vmatprep.mubr.f32.mxu0 0.0
      %692 = vmatmul.mubr.f32.gmra.mrb[0].mxu0 %v554
      %v693 = vpop.f32.mrb[0].mxu0
      %v694 = vadd.f32 %v529, %v693
      %v695 = vpop.f32.mrb[0].mxu0
      %696 = vmatprep.mubr.f32.mxu0 0.0
      %697 = vmatmul.mubr.f32.gmra.mrb[0].mxu0 %v557
      %v698 = vpop.f32.mrb[0].mxu0
      %v699 = vadd.f32 %v529, %v698
      %v700 = vpop.f32.mrb[0].mxu0
      %701 = vmatprep.mubr.f32.mxu0 0.0
      %702 = vmatmul.mubr.f32.gmra.mrb[0].mxu0 %v560
      %v703 = vpop.f32.mrb[0].mxu0
      %v704 = vadd.f32 %v529, %v703
      %v705 = vpop.f32.mrb[0].mxu0
      %706 = vmatprep.mubr.f32.mxu0 0.0
      %707 = vmatmul.mubr.f32.gmra.mrb[0].mxu0 %v563
      %v708 = vpop.f32.mrb[0].mxu0
      %v709 = vadd.f32 %v529, %v708
      %v710 = vpop.f32.mrb[0].mxu0
      %711 = vmatprep.mubr.f32.mxu0 0.0
      %712 = vmatmul.mubr.f32.gmra.mrb[0].mxu0 %v566
      %v713 = vpop.f32.mrb[0].mxu0
      %v714 = vadd.f32 %v529, %v713
      %v715 = vpop.f32.mrb[0].mxu0
      %716 = vmatprep.mubr.f32.mxu0 0.0
      %717 = vmatmul.mubr.f32.gmra.mrb[0].mxu0 %v569
      %v718 = vpop.f32.mrb[0].mxu0
      %v719 = vadd.f32 %v529, %v718
      %v720 = vpop.f32.mrb[0].mxu0
      %721 = vmatprep.mubr.f32.mxu0 0.0
      %722 = vmatmul.mubr.f32.gmra.mrb[0].mxu0 %v572
      %v723 = vpop.f32.mrb[0].mxu0
      %v724 = vadd.f32 %v529, %v723
      %v725 = vpop.f32.mrb[0].mxu0
      %726 = vmatprep.mubr.f32.mxu0 0.0
      %727 = vmatmul.mubr.f32.gmra.mrb[0].mxu0 %v575
      %v728 = vpop.f32.mrb[0].mxu0
      %v729 = vadd.f32 %v529, %v728
      %v730 = vpop.f32.mrb[0].mxu0
      %731 = vmatprep.mubr.f32.mxu0 0.0
      %732 = vmatmul.mubr.f32.gmra.mrb[0].mxu0 %v578
      %v733 = vpop.f32.mrb[0].mxu0
      %v734 = vadd.f32 %v529, %v733
      %v735 = vpop.f32.mrb[0].mxu0
      %736 = vmatprep.mubr.f32.mxu0 0.0
      %737 = vmatmul.mubr.f32.gmra.mrb[0].mxu0 %v581
      %v738 = vpop.f32.mrb[0].mxu0
      %v739 = vadd.f32 %v529, %v738
      %v740 = vpop.f32.mrb[0].mxu0
      %741 = vmatprep.mubr.f32.mxu0 0.0
      %742 = vmatmul.mubr.f32.gmra.mrb[0].mxu0 %v584
      %v743 = vpop.f32.mrb[0].mxu0
      %v744 = vadd.f32 %v529, %v743
      %v745 = vpop.f32.mrb[0].mxu0
      %746 = vmatprep.mubr.f32.mxu0 0.0
      %747 = vmatmul.mubr.f32.gmra.mrb[0].mxu0 %v587
      %v748 = vpop.f32.mrb[0].mxu0
      %v749 = vadd.f32 %v529, %v748
      %v750 = vpop.f32.mrb[0].mxu0
      %751 = vmatprep.mubr.f32.mxu0 0.0
      %752 = vmatmul.mubr.f32.gmra.mrb[0].mxu0 %v590
      %v753 = vpop.f32.mrb[0].mxu0
      %v754 = vadd.f32 %v529, %v753
      %v755 = vpop.f32.mrb[0].mxu0
      %756 = vdwg.mxu0
      %v757 = vmax.f32 %v659, 0.0
      %v758 = vmax.f32 %v664, 0.0
      %v759 = vmax.f32 %v669, 0.0
      %v760 = vmax.f32 %v674, 0.0
      %v761 = vmax.f32 %v679, 0.0
      %v762 = vmax.f32 %v684, 0.0
      %v763 = vmax.f32 %v689, 0.0
      %v764 = vmax.f32 %v694, 0.0
      %v765 = vmax.f32 %v699, 0.0
      %v766 = vmax.f32 %v704, 0.0
      %v767 = vmax.f32 %v709, 0.0
      %v768 = vmax.f32 %v714, 0.0
      %v769 = vmax.f32 %v719, 0.0
      %v770 = vmax.f32 %v724, 0.0
      %v771 = vmax.f32 %v729, 0.0
      %v772 = vmax.f32 %v734, 0.0
      %v773 = vmax.f32 %v739, 0.0
      %v774 = vmax.f32 %v744, 0.0
      %v775 = vmax.f32 %v749, 0.0
      %v776 = vmax.f32 %v754, 0.0
      %v777 = vlaneseq
      %v778 = vshrl.u32 %v777, 7
      %v779 = vadd.s32 %v778, 8
      %v780 = vadd.s32 %v778, 16
      %v781 = vadd.s32 %v778, 24
      %v782 = vadd.s32 %v778, 32
      %v783 = vadd.s32 %v778, 40
      %v784 = vadd.s32 %v778, 48
      %v785 = vadd.s32 %v778, 56
      %v786 = vadd.s32 %v778, 64
      %v787 = vadd.s32 %v778, 72
      %v788 = vadd.s32 %v778, 80
      %v789 = vadd.s32 %v778, 88
      %v790 = vadd.s32 %v778, 96
      %v791 = vadd.s32 %v778, 104
      %v792 = vadd.s32 %v778, 112
      %v793 = vadd.s32 %v778, 120
      %v794 = vadd.s32 %v778, 128
      %v795 = vadd.s32 %v778, 136
      %v796 = vadd.s32 %v778, 144
      %v797 = vadd.s32 %v778, 152
      %vm798 = vcmp.ge.s32.totalorder %v778, 16
      %vm799 = vcmp.ge.s32.totalorder %v779, 16
      %vm800 = vcmp.ge.s32.totalorder %v780, 16
      %vm801 = vcmp.ge.s32.totalorder %v781, 16
      %vm802 = vcmp.ge.s32.totalorder %v782, 16
      %vm803 = vcmp.ge.s32.totalorder %v783, 16
      %vm804 = vcmp.ge.s32.totalorder %v784, 16
      %vm805 = vcmp.ge.s32.totalorder %v785, 16
      %vm806 = vcmp.ge.s32.totalorder %v786, 16
      %vm807 = vcmp.ge.s32.totalorder %v787, 16
      %vm808 = vcmp.ge.s32.totalorder %v788, 16
      %vm809 = vcmp.ge.s32.totalorder %v789, 16
      %vm810 = vcmp.ge.s32.totalorder %v790, 16
      %vm811 = vcmp.ge.s32.totalorder %v791, 16
      %vm812 = vcmp.ge.s32.totalorder %v792, 16
      %vm813 = vcmp.ge.s32.totalorder %v793, 16
      %vm814 = vcmp.ge.s32.totalorder %v794, 16
      %vm815 = vcmp.ge.s32.totalorder %v795, 16
      %vm816 = vcmp.ge.s32.totalorder %v796, 16
      %vm817 = vcmp.ge.s32.totalorder %v797, 16
      %p818 = scmp.gt.s32.totalorder %s25, 0
      %s819 = scalar_select %p818, 1, 0
      %v820 = vstv %s819
      %vm821 = vcmp.eq.s32.totalorder %v820, 1
      %vm822 = vmor %vm798, %vm821
      %vm823 = vmor %vm799, %vm821
      %vm824 = vmor %vm800, %vm821
      %vm825 = vmor %vm801, %vm821
      %vm826 = vmor %vm802, %vm821
      %vm827 = vmor %vm803, %vm821
      %vm828 = vmor %vm804, %vm821
      %vm829 = vmor %vm805, %vm821
      %vm830 = vmor %vm806, %vm821
      %vm831 = vmor %vm807, %vm821
      %vm832 = vmor %vm808, %vm821
      %vm833 = vmor %vm809, %vm821
      %vm834 = vmor %vm810, %vm821
      %vm835 = vmor %vm811, %vm821
      %vm836 = vmor %vm812, %vm821
      %vm837 = vmor %vm813, %vm821
      %vm838 = vmor %vm814, %vm821
      %vm839 = vmor %vm815, %vm821
      %vm840 = vmor %vm816, %vm821
      %vm841 = vmor %vm817, %vm821
      %vm842 = vcmp.lt.s32.totalorder %v778, 144
      %vm843 = vcmp.lt.s32.totalorder %v779, 144
      %vm844 = vcmp.lt.s32.totalorder %v780, 144
      %vm845 = vcmp.lt.s32.totalorder %v781, 144
      %vm846 = vcmp.lt.s32.totalorder %v782, 144
      %vm847 = vcmp.lt.s32.totalorder %v783, 144
      %vm848 = vcmp.lt.s32.totalorder %v784, 144
      %vm849 = vcmp.lt.s32.totalorder %v785, 144
      %vm850 = vcmp.lt.s32.totalorder %v786, 144
      %vm851 = vcmp.lt.s32.totalorder %v787, 144
      %vm852 = vcmp.lt.s32.totalorder %v788, 144
      %vm853 = vcmp.lt.s32.totalorder %v789, 144
      %vm854 = vcmp.lt.s32.totalorder %v790, 144
      %vm855 = vcmp.lt.s32.totalorder %v791, 144
      %vm856 = vcmp.lt.s32.totalorder %v792, 144
      %vm857 = vcmp.lt.s32.totalorder %v793, 144
      %vm858 = vcmp.lt.s32.totalorder %v794, 144
      %vm859 = vcmp.lt.s32.totalorder %v795, 144
      %vm860 = vcmp.lt.s32.totalorder %v796, 144
      %vm861 = vcmp.lt.s32.totalorder %v797, 144
      %p862 = scmp.lt.s32.totalorder %s25, 1
      %s863 = scalar_select %p862, 1, 0
      %v864 = vstv %s863
      %vm865 = vcmp.eq.s32.totalorder %v864, 1
      %vm866 = vmor %vm842, %vm865
      %vm867 = vmor %vm843, %vm865
      %vm868 = vmor %vm844, %vm865
      %vm869 = vmor %vm845, %vm865
      %vm870 = vmor %vm846, %vm865
      %vm871 = vmor %vm847, %vm865
      %vm872 = vmor %vm848, %vm865
      %vm873 = vmor %vm849, %vm865
      %vm874 = vmor %vm850, %vm865
      %vm875 = vmor %vm851, %vm865
      %vm876 = vmor %vm852, %vm865
      %vm877 = vmor %vm853, %vm865
      %vm878 = vmor %vm854, %vm865
      %vm879 = vmor %vm855, %vm865
      %vm880 = vmor %vm856, %vm865
      %vm881 = vmor %vm857, %vm865
      %vm882 = vmor %vm858, %vm865
      %vm883 = vmor %vm859, %vm865
      %vm884 = vmor %vm860, %vm865
      %vm885 = vmor %vm861, %vm865
      %vm886 = vmand %vm822, %vm866
      %vm887 = vmand %vm823, %vm867
      %vm888 = vmand %vm824, %vm868
      %vm889 = vmand %vm825, %vm869
      %vm890 = vmand %vm826, %vm870
      %vm891 = vmand %vm827, %vm871
      %vm892 = vmand %vm828, %vm872
      %vm893 = vmand %vm829, %vm873
      %vm894 = vmand %vm830, %vm874
      %vm895 = vmand %vm831, %vm875
      %vm896 = vmand %vm832, %vm876
      %vm897 = vmand %vm833, %vm877
      %vm898 = vmand %vm834, %vm878
      %vm899 = vmand %vm835, %vm879
      %vm900 = vmand %vm836, %vm880
      %vm901 = vmand %vm837, %vm881
      %vm902 = vmand %vm838, %vm882
      %vm903 = vmand %vm839, %vm883
      %vm904 = vmand %vm840, %vm884
      %vm905 = vmand %vm841, %vm885
      %v906 = vsel %vm886, 1, 0
      %v907 = vsel %vm887, 1, 0
      %v908 = vsel %vm888, 1, 0
      %v909 = vsel %vm889, 1, 0
      %v910 = vsel %vm890, 1, 0
      %v911 = vsel %vm891, 1, 0
      %v912 = vsel %vm892, 1, 0
      %v913 = vsel %vm893, 1, 0
      %v914 = vsel %vm894, 1, 0
      %v915 = vsel %vm895, 1, 0
      %v916 = vsel %vm896, 1, 0
      %v917 = vsel %vm897, 1, 0
      %v918 = vsel %vm898, 1, 0
      %v919 = vsel %vm899, 1, 0
      %v920 = vsel %vm900, 1, 0
      %v921 = vsel %vm901, 1, 0
      %v922 = vsel %vm902, 1, 0
      %v923 = vsel %vm903, 1, 0
      %v924 = vsel %vm904, 1, 0
      %v925 = vsel %vm905, 1, 0
      %vm926 = vcmp.eq.s32.totalorder %v906, 1
      %vm927 = vcmp.eq.s32.totalorder %v907, 1
      %vm928 = vcmp.eq.s32.totalorder %v908, 1
      %vm929 = vcmp.eq.s32.totalorder %v909, 1
      %vm930 = vcmp.eq.s32.totalorder %v910, 1
      %vm931 = vcmp.eq.s32.totalorder %v911, 1
      %vm932 = vcmp.eq.s32.totalorder %v912, 1
      %vm933 = vcmp.eq.s32.totalorder %v913, 1
      %vm934 = vcmp.eq.s32.totalorder %v914, 1
      %vm935 = vcmp.eq.s32.totalorder %v915, 1
      %vm936 = vcmp.eq.s32.totalorder %v916, 1
      %vm937 = vcmp.eq.s32.totalorder %v917, 1
      %vm938 = vcmp.eq.s32.totalorder %v918, 1
      %vm939 = vcmp.eq.s32.totalorder %v919, 1
      %vm940 = vcmp.eq.s32.totalorder %v920, 1
      %vm941 = vcmp.eq.s32.totalorder %v921, 1
      %vm942 = vcmp.eq.s32.totalorder %v922, 1
      %vm943 = vcmp.eq.s32.totalorder %v923, 1
      %vm944 = vcmp.eq.s32.totalorder %v924, 1
      %vm945 = vcmp.eq.s32.totalorder %v925, 1
      %v946 = vsel %vm926, %v757, 0.0
      %v947 = vsel %vm927, %v758, 0.0
      %v948 = vsel %vm928, %v759, 0.0
      %v949 = vsel %vm929, %v760, 0.0
      %v950 = vsel %vm930, %v761, 0.0
      %v951 = vsel %vm931, %v762, 0.0
      %v952 = vsel %vm932, %v763, 0.0
      %v953 = vsel %vm933, %v764, 0.0
      %v954 = vsel %vm934, %v765, 0.0
      %v955 = vsel %vm935, %v766, 0.0
      %v956 = vsel %vm936, %v767, 0.0
      %v957 = vsel %vm937, %v768, 0.0
      %v958 = vsel %vm938, %v769, 0.0
      %v959 = vsel %vm939, %v770, 0.0
      %v960 = vsel %vm940, %v771, 0.0
      %v961 = vsel %vm941, %v772, 0.0
      %v962 = vsel %vm942, %v773, 0.0
      %v963 = vsel %vm943, %v774, 0.0
      %v964 = vsel %vm944, %v775, 0.0
      %v965 = vsel %vm945, %v776, 0.0
      %v966 = vld [vmem:[%s5] sm:$0xff]
      %v967 = vld [vmem:[%s5 + $0x8] sm:$0xff]
      %v968 = vld [vmem:[%s5 + $0x10] sm:$0xff]
      %v969 = vld [vmem:[%s5 + $0x18] sm:$0xff]
      %v970 = vld [vmem:[%s5 + $0x20] sm:$0xff]
      %v971 = vld [vmem:[%s5 + $0x28] sm:$0xff]
      %v972 = vld [vmem:[%s5 + $0x30] sm:$0xff]
      %v973 = vld [vmem:[%s5 + $0x38] sm:$0xff]
      %v974 = vld [vmem:[%s5 + $0x40] sm:$0xff]
      %v975 = vld [vmem:[%s5 + $0x48] sm:$0xff]
      %v976 = vld [vmem:[%s5 + $0x50] sm:$0xff]
      %v977 = vld [vmem:[%s5 + $0x58] sm:$0xff]
      %v978 = vld [vmem:[%s5 + $0x60] sm:$0xff]
      %v979 = vld [vmem:[%s5 + $0x68] sm:$0xff]
      %v980 = vld [vmem:[%s5 + $0x70] sm:$0xff]
      %v981 = vld [vmem:[%s5 + $0x78] sm:$0xff]
      %v982 = vld [vmem:[%s5 + $0x80] sm:$0xff]
      %v983 = vld [vmem:[%s5 + $0x88] sm:$0xff]
      %v984 = vld [vmem:[%s5 + $0x90] sm:$0xff]
      %v985 = vld [vmem:[%s5 + $0x98] sm:$0xff]
      %v986 = vld [vmem:[%s5 + $0xa0] sm:$0xff]
      %v987 = vld [vmem:[%s5 + $0xa8] sm:$0xff]
      %v988 = vld [vmem:[%s5 + $0xb0] sm:$0xff]
      %v989 = vld [vmem:[%s5 + $0xb8] sm:$0xff]
      %v990 = vld [vmem:[%s5 + $0xc0] sm:$0xff]
      %v991 = vld [vmem:[%s5 + $0xc8] sm:$0xff]
      %v992 = vld [vmem:[%s5 + $0xd0] sm:$0xff]
      %v993 = vld [vmem:[%s5 + $0xd8] sm:$0xff]
      %v994 = vld [vmem:[%s5 + $0xe0] sm:$0xff]
      %v995 = vld [vmem:[%s5 + $0xe8] sm:$0xff]
      %v996 = vld [vmem:[%s5 + $0xf0] sm:$0xff]
      %v997 = vld [vmem:[%s5 + $0xf8] sm:$0xff]
      %v998 = vld [vmem:[%s5 + $0x100] sm:$0xff]
      %v999 = vld [vmem:[%s5 + $0x108] sm:$0xff]
      %v1000 = vld [vmem:[%s5 + $0x110] sm:$0xff]
      %v1001 = vld [vmem:[%s5 + $0x118] sm:$0xff]
      %v1002 = vld [vmem:[%s5 + $0x120] sm:$0xff]
      %v1003 = vld [vmem:[%s5 + $0x128] sm:$0xff]
      %v1004 = vld [vmem:[%s5 + $0x130] sm:$0xff]
      %v1005 = vld [vmem:[%s5 + $0x138] sm:$0xff]
      %v1006 = vld [vmem:[%s5 + $0x140] sm:$0xff]
      %v1007 = vld [vmem:[%s5 + $0x148] sm:$0xff]
      %v1008 = vld [vmem:[%s5 + $0x150] sm:$0xff]
      %v1009 = vld [vmem:[%s5 + $0x158] sm:$0xff]
      %v1010 = vld [vmem:[%s5 + $0x160] sm:$0xff]
      %v1011 = vld [vmem:[%s5 + $0x168] sm:$0xff]
      %v1012 = vld [vmem:[%s5 + $0x170] sm:$0xff]
      %v1013 = vld [vmem:[%s5 + $0x178] sm:$0xff]
      %s1014 = scalar_lea.vmem %s5, 384
      %v1015 = vld [vmem:[%s1014] sm:$0xff]
      %v1016 = vld [vmem:[%s1014 + $0x8] sm:$0xff]
      %v1017 = vld [vmem:[%s1014 + $0x10] sm:$0xff]
      %v1018 = vld [vmem:[%s1014 + $0x18] sm:$0xff]
      %v1019 = vld [vmem:[%s1014 + $0x20] sm:$0xff]
      %v1020 = vld [vmem:[%s1014 + $0x28] sm:$0xff]
      %v1021 = vld [vmem:[%s1014 + $0x30] sm:$0xff]
      %v1022 = vld [vmem:[%s1014 + $0x38] sm:$0xff]
      %v1023 = vld [vmem:[%s1014 + $0x40] sm:$0xff]
      %v1024 = vld [vmem:[%s1014 + $0x48] sm:$0xff]
      %v1025 = vld [vmem:[%s1014 + $0x50] sm:$0xff]
      %v1026 = vld [vmem:[%s1014 + $0x58] sm:$0xff]
      %v1027 = vld [vmem:[%s1014 + $0x60] sm:$0xff]
      %v1028 = vld [vmem:[%s1014 + $0x68] sm:$0xff]
      %v1029 = vld [vmem:[%s1014 + $0x70] sm:$0xff]
      %v1030 = vld [vmem:[%s1014 + $0x78] sm:$0xff]
      %v1031 = vld [vmem:[%s1014 + $0x80] sm:$0xff]
      %v1032 = vld [vmem:[%s1014 + $0x88] sm:$0xff]
      %v1033 = vld [vmem:[%s1014 + $0x90] sm:$0xff]
      %v1034 = vld [vmem:[%s1014 + $0x98] sm:$0xff]
      %v1035 = vld [vmem:[%s1014 + $0xa0] sm:$0xff]
      %v1036 = vld [vmem:[%s1014 + $0xa8] sm:$0xff]
      %v1037 = vld [vmem:[%s1014 + $0xb0] sm:$0xff]
      %v1038 = vld [vmem:[%s1014 + $0xb8] sm:$0xff]
      %v1039 = vld [vmem:[%s1014 + $0xc0] sm:$0xff]
      %v1040 = vld [vmem:[%s1014 + $0xc8] sm:$0xff]
      %v1041 = vld [vmem:[%s1014 + $0xd0] sm:$0xff]
      %v1042 = vld [vmem:[%s1014 + $0xd8] sm:$0xff]
      %v1043 = vld [vmem:[%s1014 + $0xe0] sm:$0xff]
      %v1044 = vld [vmem:[%s1014 + $0xe8] sm:$0xff]
      %v1045 = vld [vmem:[%s1014 + $0xf0] sm:$0xff]
      %v1046 = vld [vmem:[%s1014 + $0xf8] sm:$0xff]
      %v1047 = vld [vmem:[%s1014 + $0x100] sm:$0xff]
      %v1048 = vld [vmem:[%s1014 + $0x108] sm:$0xff]
      %v1049 = vld [vmem:[%s1014 + $0x110] sm:$0xff]
      %v1050 = vld [vmem:[%s1014 + $0x118] sm:$0xff]
      %v1051 = vld [vmem:[%s1014 + $0x120] sm:$0xff]
      %v1052 = vld [vmem:[%s1014 + $0x128] sm:$0xff]
      %v1053 = vld [vmem:[%s1014 + $0x130] sm:$0xff]
      %v1054 = vld [vmem:[%s1014 + $0x138] sm:$0xff]
      %v1055 = vld [vmem:[%s1014 + $0x140] sm:$0xff]
      %v1056 = vld [vmem:[%s1014 + $0x148] sm:$0xff]
      %v1057 = vld [vmem:[%s1014 + $0x150] sm:$0xff]
      %v1058 = vld [vmem:[%s1014 + $0x158] sm:$0xff]
      %v1059 = vld [vmem:[%s1014 + $0x160] sm:$0xff]
      %v1060 = vld [vmem:[%s1014 + $0x168] sm:$0xff]
      %v1061 = vld [vmem:[%s1014 + $0x170] sm:$0xff]
      %v1062 = vld [vmem:[%s1014 + $0x178] sm:$0xff]
      %1063 = vmatprep.subr.mxu0 %v1016
      %1064 = vmatpush1.msra.mxu0 %v1015
      %1065 = vmatprep.subr.mxu0 %v1019
      %1066 = vmatpush1.msra.mxu0 %v1018
      %1067 = vmatprep.subr.mxu0 %v1022
      %1068 = vmatpush1.msra.mxu0 %v1021
      %1069 = vmatprep.subr.mxu0 %v1025
      %1070 = vmatpush1.msra.mxu0 %v1024
      %1071 = vmatprep.subr.mxu0 %v1028
      %1072 = vmatpush1.msra.mxu0 %v1027
      %1073 = vmatprep.subr.mxu0 %v1031
      %1074 = vmatpush1.msra.mxu0 %v1030
      %1075 = vmatprep.subr.mxu0 %v1034
      %1076 = vmatpush1.msra.mxu0 %v1033
      %1077 = vmatprep.subr.mxu0 %v1037
      %1078 = vmatpush1.msra.mxu0 %v1036
      %1079 = vmatprep.subr.mxu0 %v1040
      %1080 = vmatpush1.msra.mxu0 %v1039
      %1081 = vmatprep.subr.mxu0 %v1043
      %1082 = vmatpush1.msra.mxu0 %v1042
      %1083 = vmatprep.subr.mxu0 %v1046
      %1084 = vmatpush1.msra.mxu0 %v1045
      %1085 = vmatprep.subr.mxu0 %v1049
      %1086 = vmatpush1.msra.mxu0 %v1048
      %1087 = vmatprep.subr.mxu0 %v1052
      %1088 = vmatpush1.msra.mxu0 %v1051
      %1089 = vmatprep.subr.mxu0 %v1055
      %1090 = vmatpush1.msra.mxu0 %v1054
      %1091 = vmatprep.subr.mxu0 %v1058
      %1092 = vmatpush1.msra.mxu0 %v1057
      %1093 = vmatprep.subr.mxu0 %v1061
      %1094 = vmatpush1.msra.mxu0 %v1060
      %1095 = vmatprep.subr.mxu0 0.0
      %1096 = vmatpush1.msra.mxu0 0.0
      %1097 = vmatprep.subr.mxu0 0.0
      %1098 = vmatpush1.msra.mxu0 0.0
      %1099 = vmatprep.subr.mxu0 0.0
      %1100 = vmatpush1.msra.mxu0 0.0
      %1101 = vmatprep.subr.mxu0 0.0
      %1102 = vmatpush1.msra.mxu0 0.0
      %1103 = vmatprep.subr.mxu0 0.0
      %1104 = vmatpush1.msra.mxu0 0.0
      %1105 = vmatprep.subr.mxu0 0.0
      %1106 = vmatpush1.msra.mxu0 0.0
      %1107 = vmatprep.subr.mxu0 0.0
      %1108 = vmatpush1.msra.mxu0 0.0
      %1109 = vmatprep.subr.mxu0 0.0
      %1110 = vmatpush1.msra.mxu0 0.0
      %1111 = vmatprep.subr.mxu0 0.0
      %1112 = vmatpush1.msra.mxu0 0.0
      %1113 = vmatprep.subr.mxu0 0.0
      %1114 = vmatpush1.msra.mxu0 0.0
      %1115 = vmatprep.subr.mxu0 0.0
      %1116 = vmatpush1.msra.mxu0 0.0
      %1117 = vmatprep.subr.mxu0 0.0
      %1118 = vmatpush1.msra.mxu0 0.0
      %1119 = vmatprep.subr.mxu0 0.0
      %1120 = vmatpush1.msra.mxu0 0.0
      %1121 = vmatprep.subr.mxu0 0.0
      %1122 = vmatpush1.msra.mxu0 0.0
      %1123 = vmatprep.subr.mxu0 0.0
      %1124 = vmatpush1.msra.mxu0 0.0
      %1125 = vmatprep.subr.mxu0 0.0
      %1126 = vmatpush1.msra.mxu0 0.0
      %1127 = vmatprep.mubr.f32.mxu0 0.0
      %1128 = vmatmul.mubr.f32.gmra.mrb[0].mxu0 %v948
      %v1129 = vpop.f32.mrb[0].mxu0
      %v1130 = vadd.f32 0.0, %v1129
      %v1131 = vpop.f32.mrb[0].mxu0
      %v1132 = vadd.f32 0.0, %v1131
      %1133 = vmatprep.mubr.f32.mxu0 0.0
      %1134 = vmatmul.mubr.f32.gmra.mrb[0].mxu0 %v949
      %v1135 = vpop.f32.mrb[0].mxu0
      %v1136 = vadd.f32 0.0, %v1135
      %v1137 = vpop.f32.mrb[0].mxu0
      %v1138 = vadd.f32 0.0, %v1137
      %1139 = vmatprep.mubr.f32.mxu0 0.0
      %1140 = vmatmul.mubr.f32.gmra.mrb[0].mxu0 %v950
      %v1141 = vpop.f32.mrb[0].mxu0
      %v1142 = vadd.f32 0.0, %v1141
      %v1143 = vpop.f32.mrb[0].mxu0
      %v1144 = vadd.f32 0.0, %v1143
      %1145 = vmatprep.mubr.f32.mxu0 0.0
      %1146 = vmatmul.mubr.f32.gmra.mrb[0].mxu0 %v951
      %v1147 = vpop.f32.mrb[0].mxu0
      %v1148 = vadd.f32 0.0, %v1147
      %v1149 = vpop.f32.mrb[0].mxu0
      %v1150 = vadd.f32 0.0, %v1149
      %1151 = vmatprep.mubr.f32.mxu0 0.0
      %1152 = vmatmul.mubr.f32.gmra.mrb[0].mxu0 %v952
      %v1153 = vpop.f32.mrb[0].mxu0
      %v1154 = vadd.f32 0.0, %v1153
      %v1155 = vpop.f32.mrb[0].mxu0
      %v1156 = vadd.f32 0.0, %v1155
      %1157 = vmatprep.mubr.f32.mxu0 0.0
      %1158 = vmatmul.mubr.f32.gmra.mrb[0].mxu0 %v953
      %v1159 = vpop.f32.mrb[0].mxu0
      %v1160 = vadd.f32 0.0, %v1159
      %v1161 = vpop.f32.mrb[0].mxu0
      %v1162 = vadd.f32 0.0, %v1161
      %1163 = vmatprep.mubr.f32.mxu0 0.0
      %1164 = vmatmul.mubr.f32.gmra.mrb[0].mxu0 %v954
      %v1165 = vpop.f32.mrb[0].mxu0
      %v1166 = vadd.f32 0.0, %v1165
      %v1167 = vpop.f32.mrb[0].mxu0
      %v1168 = vadd.f32 0.0, %v1167
      %1169 = vmatprep.mubr.f32.mxu0 0.0
      %1170 = vmatmul.mubr.f32.gmra.mrb[0].mxu0 %v955
      %v1171 = vpop.f32.mrb[0].mxu0
      %v1172 = vadd.f32 0.0, %v1171
      %v1173 = vpop.f32.mrb[0].mxu0
      %v1174 = vadd.f32 0.0, %v1173
      %1175 = vmatprep.mubr.f32.mxu0 0.0
      %1176 = vmatmul.mubr.f32.gmra.mrb[0].mxu0 %v956
      %v1177 = vpop.f32.mrb[0].mxu0
      %v1178 = vadd.f32 0.0, %v1177
      %v1179 = vpop.f32.mrb[0].mxu0
      %v1180 = vadd.f32 0.0, %v1179
      %1181 = vmatprep.mubr.f32.mxu0 0.0
      %1182 = vmatmul.mubr.f32.gmra.mrb[0].mxu0 %v957
      %v1183 = vpop.f32.mrb[0].mxu0
      %v1184 = vadd.f32 0.0, %v1183
      %v1185 = vpop.f32.mrb[0].mxu0
      %v1186 = vadd.f32 0.0, %v1185
      %1187 = vmatprep.mubr.f32.mxu0 0.0
      %1188 = vmatmul.mubr.f32.gmra.mrb[0].mxu0 %v958
      %v1189 = vpop.f32.mrb[0].mxu0
      %v1190 = vadd.f32 0.0, %v1189
      %v1191 = vpop.f32.mrb[0].mxu0
      %v1192 = vadd.f32 0.0, %v1191
      %1193 = vmatprep.mubr.f32.mxu0 0.0
      %1194 = vmatmul.mubr.f32.gmra.mrb[0].mxu0 %v959
      %v1195 = vpop.f32.mrb[0].mxu0
      %v1196 = vadd.f32 0.0, %v1195
      %v1197 = vpop.f32.mrb[0].mxu0
      %v1198 = vadd.f32 0.0, %v1197
      %1199 = vmatprep.mubr.f32.mxu0 0.0
      %1200 = vmatmul.mubr.f32.gmra.mrb[0].mxu0 %v960
      %v1201 = vpop.f32.mrb[0].mxu0
      %v1202 = vadd.f32 0.0, %v1201
      %v1203 = vpop.f32.mrb[0].mxu0
      %v1204 = vadd.f32 0.0, %v1203
      %1205 = vmatprep.mubr.f32.mxu0 0.0
      %1206 = vmatmul.mubr.f32.gmra.mrb[0].mxu0 %v961
      %v1207 = vpop.f32.mrb[0].mxu0
      %v1208 = vadd.f32 0.0, %v1207
      %v1209 = vpop.f32.mrb[0].mxu0
      %v1210 = vadd.f32 0.0, %v1209
      %1211 = vmatprep.mubr.f32.mxu0 0.0
      %1212 = vmatmul.mubr.f32.gmra.mrb[0].mxu0 %v962
      %v1213 = vpop.f32.mrb[0].mxu0
      %v1214 = vadd.f32 0.0, %v1213
      %v1215 = vpop.f32.mrb[0].mxu0
      %v1216 = vadd.f32 0.0, %v1215
      %1217 = vmatprep.mubr.f32.mxu0 0.0
      %1218 = vmatmul.mubr.f32.gmra.mrb[0].mxu0 %v963
      %v1219 = vpop.f32.mrb[0].mxu0
      %v1220 = vadd.f32 0.0, %v1219
      %v1221 = vpop.f32.mrb[0].mxu0
      %v1222 = vadd.f32 0.0, %v1221
      %1223 = vdwg.mxu0
      %1224 = vmatprep.subr.mxu0 0.0
      %1225 = vmatpush1.msra.mxu0 %v1017
      %1226 = vmatprep.subr.mxu0 0.0
      %1227 = vmatpush1.msra.mxu0 %v1020
      %1228 = vmatprep.subr.mxu0 0.0
      %1229 = vmatpush1.msra.mxu0 %v1023
      %1230 = vmatprep.subr.mxu0 0.0
      %1231 = vmatpush1.msra.mxu0 %v1026
      %1232 = vmatprep.subr.mxu0 0.0
      %1233 = vmatpush1.msra.mxu0 %v1029
      %1234 = vmatprep.subr.mxu0 0.0
      %1235 = vmatpush1.msra.mxu0 %v1032
      %1236 = vmatprep.subr.mxu0 0.0
      %1237 = vmatpush1.msra.mxu0 %v1035
      %1238 = vmatprep.subr.mxu0 0.0
      %1239 = vmatpush1.msra.mxu0 %v1038
      %1240 = vmatprep.subr.mxu0 0.0
      %1241 = vmatpush1.msra.mxu0 %v1041
      %1242 = vmatprep.subr.mxu0 0.0
      %1243 = vmatpush1.msra.mxu0 %v1044
      %1244 = vmatprep.subr.mxu0 0.0
      %1245 = vmatpush1.msra.mxu0 %v1047
      %1246 = vmatprep.subr.mxu0 0.0
      %1247 = vmatpush1.msra.mxu0 %v1050
      %1248 = vmatprep.subr.mxu0 0.0
      %1249 = vmatpush1.msra.mxu0 %v1053
      %1250 = vmatprep.subr.mxu0 0.0
      %1251 = vmatpush1.msra.mxu0 %v1056
      %1252 = vmatprep.subr.mxu0 0.0
      %1253 = vmatpush1.msra.mxu0 %v1059
      %1254 = vmatprep.subr.mxu0 0.0
      %1255 = vmatpush1.msra.mxu0 %v1062
      %1256 = vmatprep.subr.mxu0 0.0
      %1257 = vmatpush1.msra.mxu0 0.0
      %1258 = vmatprep.subr.mxu0 0.0
      %1259 = vmatpush1.msra.mxu0 0.0
      %1260 = vmatprep.subr.mxu0 0.0
      %1261 = vmatpush1.msra.mxu0 0.0
      %1262 = vmatprep.subr.mxu0 0.0
      %1263 = vmatpush1.msra.mxu0 0.0
      %1264 = vmatprep.subr.mxu0 0.0
      %1265 = vmatpush1.msra.mxu0 0.0
      %1266 = vmatprep.subr.mxu0 0.0
      %1267 = vmatpush1.msra.mxu0 0.0
      %1268 = vmatprep.subr.mxu0 0.0
      %1269 = vmatpush1.msra.mxu0 0.0
      %1270 = vmatprep.subr.mxu0 0.0
      %1271 = vmatpush1.msra.mxu0 0.0
      %1272 = vmatprep.subr.mxu0 0.0
      %1273 = vmatpush1.msra.mxu0 0.0
      %1274 = vmatprep.subr.mxu0 0.0
      %1275 = vmatpush1.msra.mxu0 0.0
      %1276 = vmatprep.subr.mxu0 0.0
      %1277 = vmatpush1.msra.mxu0 0.0
      %1278 = vmatprep.subr.mxu0 0.0
      %1279 = vmatpush1.msra.mxu0 0.0
      %1280 = vmatprep.subr.mxu0 0.0
      %1281 = vmatpush1.msra.mxu0 0.0
      %1282 = vmatprep.subr.mxu0 0.0
      %1283 = vmatpush1.msra.mxu0 0.0
      %1284 = vmatprep.subr.mxu0 0.0
      %1285 = vmatpush1.msra.mxu0 0.0
      %1286 = vmatprep.subr.mxu0 0.0
      %1287 = vmatpush1.msra.mxu0 0.0
      %1288 = vmatprep.mubr.f32.mxu0 0.0
      %1289 = vmatmul.mubr.f32.gmra.mrb[0].mxu0 %v948
      %v1290 = vpop.f32.mrb[0].mxu0
      %v1291 = vadd.f32 0.0, %v1290
      %v1292 = vpop.f32.mrb[0].mxu0
      %1293 = vmatprep.mubr.f32.mxu0 0.0
      %1294 = vmatmul.mubr.f32.gmra.mrb[0].mxu0 %v949
      %v1295 = vpop.f32.mrb[0].mxu0
      %v1296 = vadd.f32 0.0, %v1295
      %v1297 = vpop.f32.mrb[0].mxu0
      %1298 = vmatprep.mubr.f32.mxu0 0.0
      %1299 = vmatmul.mubr.f32.gmra.mrb[0].mxu0 %v950
      %v1300 = vpop.f32.mrb[0].mxu0
      %v1301 = vadd.f32 0.0, %v1300
      %v1302 = vpop.f32.mrb[0].mxu0
      %1303 = vmatprep.mubr.f32.mxu0 0.0
      %1304 = vmatmul.mubr.f32.gmra.mrb[0].mxu0 %v951
      %v1305 = vpop.f32.mrb[0].mxu0
      %v1306 = vadd.f32 0.0, %v1305
      %v1307 = vpop.f32.mrb[0].mxu0
      %1308 = vmatprep.mubr.f32.mxu0 0.0
      %1309 = vmatmul.mubr.f32.gmra.mrb[0].mxu0 %v952
      %v1310 = vpop.f32.mrb[0].mxu0
      %v1311 = vadd.f32 0.0, %v1310
      %v1312 = vpop.f32.mrb[0].mxu0
      %1313 = vmatprep.mubr.f32.mxu0 0.0
      %1314 = vmatmul.mubr.f32.gmra.mrb[0].mxu0 %v953
      %v1315 = vpop.f32.mrb[0].mxu0
      %v1316 = vadd.f32 0.0, %v1315
      %v1317 = vpop.f32.mrb[0].mxu0
      %1318 = vmatprep.mubr.f32.mxu0 0.0
      %1319 = vmatmul.mubr.f32.gmra.mrb[0].mxu0 %v954
      %v1320 = vpop.f32.mrb[0].mxu0
      %v1321 = vadd.f32 0.0, %v1320
      %v1322 = vpop.f32.mrb[0].mxu0
      %1323 = vmatprep.mubr.f32.mxu0 0.0
      %1324 = vmatmul.mubr.f32.gmra.mrb[0].mxu0 %v955
      %v1325 = vpop.f32.mrb[0].mxu0
      %v1326 = vadd.f32 0.0, %v1325
      %v1327 = vpop.f32.mrb[0].mxu0
      %1328 = vmatprep.mubr.f32.mxu0 0.0
      %1329 = vmatmul.mubr.f32.gmra.mrb[0].mxu0 %v956
      %v1330 = vpop.f32.mrb[0].mxu0
      %v1331 = vadd.f32 0.0, %v1330
      %v1332 = vpop.f32.mrb[0].mxu0
      %1333 = vmatprep.mubr.f32.mxu0 0.0
      %1334 = vmatmul.mubr.f32.gmra.mrb[0].mxu0 %v957
      %v1335 = vpop.f32.mrb[0].mxu0
      %v1336 = vadd.f32 0.0, %v1335
      %v1337 = vpop.f32.mrb[0].mxu0
      %1338 = vmatprep.mubr.f32.mxu0 0.0
      %1339 = vmatmul.mubr.f32.gmra.mrb[0].mxu0 %v958
      %v1340 = vpop.f32.mrb[0].mxu0
      %v1341 = vadd.f32 0.0, %v1340
      %v1342 = vpop.f32.mrb[0].mxu0
      %1343 = vmatprep.mubr.f32.mxu0 0.0
      %1344 = vmatmul.mubr.f32.gmra.mrb[0].mxu0 %v959
      %v1345 = vpop.f32.mrb[0].mxu0
      %v1346 = vadd.f32 0.0, %v1345
      %v1347 = vpop.f32.mrb[0].mxu0
      %1348 = vmatprep.mubr.f32.mxu0 0.0
      %1349 = vmatmul.mubr.f32.gmra.mrb[0].mxu0 %v960
      %v1350 = vpop.f32.mrb[0].mxu0
      %v1351 = vadd.f32 0.0, %v1350
      %v1352 = vpop.f32.mrb[0].mxu0
      %1353 = vmatprep.mubr.f32.mxu0 0.0
      %1354 = vmatmul.mubr.f32.gmra.mrb[0].mxu0 %v961
      %v1355 = vpop.f32.mrb[0].mxu0
      %v1356 = vadd.f32 0.0, %v1355
      %v1357 = vpop.f32.mrb[0].mxu0
      %1358 = vmatprep.mubr.f32.mxu0 0.0
      %1359 = vmatmul.mubr.f32.gmra.mrb[0].mxu0 %v962
      %v1360 = vpop.f32.mrb[0].mxu0
      %v1361 = vadd.f32 0.0, %v1360
      %v1362 = vpop.f32.mrb[0].mxu0
      %1363 = vmatprep.mubr.f32.mxu0 0.0
      %1364 = vmatmul.mubr.f32.gmra.mrb[0].mxu0 %v963
      %v1365 = vpop.f32.mrb[0].mxu0
      %v1366 = vadd.f32 0.0, %v1365
      %v1367 = vpop.f32.mrb[0].mxu0
      %1368 = vdwg.mxu0
      %1369 = vmatprep.subr.mxu0 %v967
      %1370 = vmatpush1.msra.mxu0 %v966
      %1371 = vmatprep.subr.mxu0 %v970
      %1372 = vmatpush1.msra.mxu0 %v969
      %1373 = vmatprep.subr.mxu0 %v973
      %1374 = vmatpush1.msra.mxu0 %v972
      %1375 = vmatprep.subr.mxu0 %v976
      %1376 = vmatpush1.msra.mxu0 %v975
      %1377 = vmatprep.subr.mxu0 %v979
      %1378 = vmatpush1.msra.mxu0 %v978
      %1379 = vmatprep.subr.mxu0 %v982
      %1380 = vmatpush1.msra.mxu0 %v981
      %1381 = vmatprep.subr.mxu0 %v985
      %1382 = vmatpush1.msra.mxu0 %v984
      %1383 = vmatprep.subr.mxu0 %v988
      %1384 = vmatpush1.msra.mxu0 %v987
      %1385 = vmatprep.subr.mxu0 %v991
      %1386 = vmatpush1.msra.mxu0 %v990
      %1387 = vmatprep.subr.mxu0 %v994
      %1388 = vmatpush1.msra.mxu0 %v993
      %1389 = vmatprep.subr.mxu0 %v997
      %1390 = vmatpush1.msra.mxu0 %v996
      %1391 = vmatprep.subr.mxu0 %v1000
      %1392 = vmatpush1.msra.mxu0 %v999
      %1393 = vmatprep.subr.mxu0 %v1003
      %1394 = vmatpush1.msra.mxu0 %v1002
      %1395 = vmatprep.subr.mxu0 %v1006
      %1396 = vmatpush1.msra.mxu0 %v1005
      %1397 = vmatprep.subr.mxu0 %v1009
      %1398 = vmatpush1.msra.mxu0 %v1008
      %1399 = vmatprep.subr.mxu0 %v1012
      %1400 = vmatpush1.msra.mxu0 %v1011
      %1401 = vmatprep.subr.mxu0 0.0
      %1402 = vmatpush1.msra.mxu0 0.0
      %1403 = vmatprep.subr.mxu0 0.0
      %1404 = vmatpush1.msra.mxu0 0.0
      %1405 = vmatprep.subr.mxu0 0.0
      %1406 = vmatpush1.msra.mxu0 0.0
      %1407 = vmatprep.subr.mxu0 0.0
      %1408 = vmatpush1.msra.mxu0 0.0
      %1409 = vmatprep.subr.mxu0 0.0
      %1410 = vmatpush1.msra.mxu0 0.0
      %1411 = vmatprep.subr.mxu0 0.0
      %1412 = vmatpush1.msra.mxu0 0.0
      %1413 = vmatprep.subr.mxu0 0.0
      %1414 = vmatpush1.msra.mxu0 0.0
      %1415 = vmatprep.subr.mxu0 0.0
      %1416 = vmatpush1.msra.mxu0 0.0
      %1417 = vmatprep.subr.mxu0 0.0
      %1418 = vmatpush1.msra.mxu0 0.0
      %1419 = vmatprep.subr.mxu0 0.0
      %1420 = vmatpush1.msra.mxu0 0.0
      %1421 = vmatprep.subr.mxu0 0.0
      %1422 = vmatpush1.msra.mxu0 0.0
      %1423 = vmatprep.subr.mxu0 0.0
      %1424 = vmatpush1.msra.mxu0 0.0
      %1425 = vmatprep.subr.mxu0 0.0
      %1426 = vmatpush1.msra.mxu0 0.0
      %1427 = vmatprep.subr.mxu0 0.0
      %1428 = vmatpush1.msra.mxu0 0.0
      %1429 = vmatprep.subr.mxu0 0.0
      %1430 = vmatpush1.msra.mxu0 0.0
      %1431 = vmatprep.subr.mxu0 0.0
      %1432 = vmatpush1.msra.mxu0 0.0
      %1433 = vmatprep.mubr.f32.mxu0 0.0
      %1434 = vmatmul.mubr.f32.gmra.mrb[0].mxu0 %v946
      %v1435 = vpop.f32.mrb[0].mxu0
      %v1436 = vadd.f32 %v1130, %v1435
      %v1437 = vpop.f32.mrb[0].mxu0
      %v1438 = vadd.f32 %v1132, %v1437
      %1439 = vmatprep.mubr.f32.mxu0 0.0
      %1440 = vmatmul.mubr.f32.gmra.mrb[0].mxu0 %v947
      %v1441 = vpop.f32.mrb[0].mxu0
      %v1442 = vadd.f32 %v1136, %v1441
      %v1443 = vpop.f32.mrb[0].mxu0
      %v1444 = vadd.f32 %v1138, %v1443
      %1445 = vmatprep.mubr.f32.mxu0 0.0
      %1446 = vmatmul.mubr.f32.gmra.mrb[0].mxu0 %v948
      %v1447 = vpop.f32.mrb[0].mxu0
      %v1448 = vadd.f32 %v1142, %v1447
      %v1449 = vpop.f32.mrb[0].mxu0
      %v1450 = vadd.f32 %v1144, %v1449
      %1451 = vmatprep.mubr.f32.mxu0 0.0
      %1452 = vmatmul.mubr.f32.gmra.mrb[0].mxu0 %v949
      %v1453 = vpop.f32.mrb[0].mxu0
      %v1454 = vadd.f32 %v1148, %v1453
      %v1455 = vpop.f32.mrb[0].mxu0
      %v1456 = vadd.f32 %v1150, %v1455
      %1457 = vmatprep.mubr.f32.mxu0 0.0
      %1458 = vmatmul.mubr.f32.gmra.mrb[0].mxu0 %v950
      %v1459 = vpop.f32.mrb[0].mxu0
      %v1460 = vadd.f32 %v1154, %v1459
      %v1461 = vpop.f32.mrb[0].mxu0
      %v1462 = vadd.f32 %v1156, %v1461
      %1463 = vmatprep.mubr.f32.mxu0 0.0
      %1464 = vmatmul.mubr.f32.gmra.mrb[0].mxu0 %v951
      %v1465 = vpop.f32.mrb[0].mxu0
      %v1466 = vadd.f32 %v1160, %v1465
      %v1467 = vpop.f32.mrb[0].mxu0
      %v1468 = vadd.f32 %v1162, %v1467
      %1469 = vmatprep.mubr.f32.mxu0 0.0
      %1470 = vmatmul.mubr.f32.gmra.mrb[0].mxu0 %v952
      %v1471 = vpop.f32.mrb[0].mxu0
      %v1472 = vadd.f32 %v1166, %v1471
      %v1473 = vpop.f32.mrb[0].mxu0
      %v1474 = vadd.f32 %v1168, %v1473
      %1475 = vmatprep.mubr.f32.mxu0 0.0
      %1476 = vmatmul.mubr.f32.gmra.mrb[0].mxu0 %v953
      %v1477 = vpop.f32.mrb[0].mxu0
      %v1478 = vadd.f32 %v1172, %v1477
      %v1479 = vpop.f32.mrb[0].mxu0
      %v1480 = vadd.f32 %v1174, %v1479
      %1481 = vmatprep.mubr.f32.mxu0 0.0
      %1482 = vmatmul.mubr.f32.gmra.mrb[0].mxu0 %v954
      %v1483 = vpop.f32.mrb[0].mxu0
      %v1484 = vadd.f32 %v1178, %v1483
      %v1485 = vpop.f32.mrb[0].mxu0
      %v1486 = vadd.f32 %v1180, %v1485
      %1487 = vmatprep.mubr.f32.mxu0 0.0
      %1488 = vmatmul.mubr.f32.gmra.mrb[0].mxu0 %v955
      %v1489 = vpop.f32.mrb[0].mxu0
      %v1490 = vadd.f32 %v1184, %v1489
      %v1491 = vpop.f32.mrb[0].mxu0
      %v1492 = vadd.f32 %v1186, %v1491
      %1493 = vmatprep.mubr.f32.mxu0 0.0
      %1494 = vmatmul.mubr.f32.gmra.mrb[0].mxu0 %v956
      %v1495 = vpop.f32.mrb[0].mxu0
      %v1496 = vadd.f32 %v1190, %v1495
      %v1497 = vpop.f32.mrb[0].mxu0
      %v1498 = vadd.f32 %v1192, %v1497
      %1499 = vmatprep.mubr.f32.mxu0 0.0
      %1500 = vmatmul.mubr.f32.gmra.mrb[0].mxu0 %v957
      %v1501 = vpop.f32.mrb[0].mxu0
      %v1502 = vadd.f32 %v1196, %v1501
      %v1503 = vpop.f32.mrb[0].mxu0
      %v1504 = vadd.f32 %v1198, %v1503
      %1505 = vmatprep.mubr.f32.mxu0 0.0
      %1506 = vmatmul.mubr.f32.gmra.mrb[0].mxu0 %v958
      %v1507 = vpop.f32.mrb[0].mxu0
      %v1508 = vadd.f32 %v1202, %v1507
      %v1509 = vpop.f32.mrb[0].mxu0
      %v1510 = vadd.f32 %v1204, %v1509
      %1511 = vmatprep.mubr.f32.mxu0 0.0
      %1512 = vmatmul.mubr.f32.gmra.mrb[0].mxu0 %v959
      %v1513 = vpop.f32.mrb[0].mxu0
      %v1514 = vadd.f32 %v1208, %v1513
      %v1515 = vpop.f32.mrb[0].mxu0
      %v1516 = vadd.f32 %v1210, %v1515
      %1517 = vmatprep.mubr.f32.mxu0 0.0
      %1518 = vmatmul.mubr.f32.gmra.mrb[0].mxu0 %v960
      %v1519 = vpop.f32.mrb[0].mxu0
      %v1520 = vadd.f32 %v1214, %v1519
      %v1521 = vpop.f32.mrb[0].mxu0
      %v1522 = vadd.f32 %v1216, %v1521
      %1523 = vmatprep.mubr.f32.mxu0 0.0
      %1524 = vmatmul.mubr.f32.gmra.mrb[0].mxu0 %v961
      %v1525 = vpop.f32.mrb[0].mxu0
      %v1526 = vadd.f32 %v1220, %v1525
      %v1527 = vpop.f32.mrb[0].mxu0
      %v1528 = vadd.f32 %v1222, %v1527
      %1529 = vdwg.mxu0
      %1530 = vmatprep.subr.mxu0 0.0
      %1531 = vmatpush1.msra.mxu0 %v968
      %1532 = vmatprep.subr.mxu0 0.0
      %1533 = vmatpush1.msra.mxu0 %v971
      %1534 = vmatprep.subr.mxu0 0.0
      %1535 = vmatpush1.msra.mxu0 %v974
      %1536 = vmatprep.subr.mxu0 0.0
      %1537 = vmatpush1.msra.mxu0 %v977
      %1538 = vmatprep.subr.mxu0 0.0
      %1539 = vmatpush1.msra.mxu0 %v980
      %1540 = vmatprep.subr.mxu0 0.0
      %1541 = vmatpush1.msra.mxu0 %v983
      %1542 = vmatprep.subr.mxu0 0.0
      %1543 = vmatpush1.msra.mxu0 %v986
      %1544 = vmatprep.subr.mxu0 0.0
      %1545 = vmatpush1.msra.mxu0 %v989
      %1546 = vmatprep.subr.mxu0 0.0
      %1547 = vmatpush1.msra.mxu0 %v992
      %1548 = vmatprep.subr.mxu0 0.0
      %1549 = vmatpush1.msra.mxu0 %v995
      %1550 = vmatprep.subr.mxu0 0.0
      %1551 = vmatpush1.msra.mxu0 %v998
      %1552 = vmatprep.subr.mxu0 0.0
      %1553 = vmatpush1.msra.mxu0 %v1001
      %1554 = vmatprep.subr.mxu0 0.0
      %1555 = vmatpush1.msra.mxu0 %v1004
      %1556 = vmatprep.subr.mxu0 0.0
      %1557 = vmatpush1.msra.mxu0 %v1007
      %1558 = vmatprep.subr.mxu0 0.0
      %1559 = vmatpush1.msra.mxu0 %v1010
      %1560 = vmatprep.subr.mxu0 0.0
      %1561 = vmatpush1.msra.mxu0 %v1013
      %1562 = vmatprep.subr.mxu0 0.0
      %1563 = vmatpush1.msra.mxu0 0.0
      %1564 = vmatprep.subr.mxu0 0.0
      %1565 = vmatpush1.msra.mxu0 0.0
      %1566 = vmatprep.subr.mxu0 0.0
      %1567 = vmatpush1.msra.mxu0 0.0
      %1568 = vmatprep.subr.mxu0 0.0
      %1569 = vmatpush1.msra.mxu0 0.0
      %1570 = vmatprep.subr.mxu0 0.0
      %1571 = vmatpush1.msra.mxu0 0.0
      %1572 = vmatprep.subr.mxu0 0.0
      %1573 = vmatpush1.msra.mxu0 0.0
      %1574 = vmatprep.subr.mxu0 0.0
      %1575 = vmatpush1.msra.mxu0 0.0
      %1576 = vmatprep.subr.mxu0 0.0
      %1577 = vmatpush1.msra.mxu0 0.0
      %1578 = vmatprep.subr.mxu0 0.0
      %1579 = vmatpush1.msra.mxu0 0.0
      %1580 = vmatprep.subr.mxu0 0.0
      %1581 = vmatpush1.msra.mxu0 0.0
      %1582 = vmatprep.subr.mxu0 0.0
      %1583 = vmatpush1.msra.mxu0 0.0
      %1584 = vmatprep.subr.mxu0 0.0
      %1585 = vmatpush1.msra.mxu0 0.0
      %1586 = vmatprep.subr.mxu0 0.0
      %1587 = vmatpush1.msra.mxu0 0.0
      %1588 = vmatprep.subr.mxu0 0.0
      %1589 = vmatpush1.msra.mxu0 0.0
      %1590 = vmatprep.subr.mxu0 0.0
      %1591 = vmatpush1.msra.mxu0 0.0
      %1592 = vmatprep.subr.mxu0 0.0
      %1593 = vmatpush1.msra.mxu0 0.0
      %1594 = vmatprep.mubr.f32.mxu0 0.0
      %1595 = vmatmul.mubr.f32.gmra.mrb[0].mxu0 %v946
      %v1596 = vpop.f32.mrb[0].mxu0
      %v1597 = vadd.f32 %v1291, %v1596
      %v1598 = vpop.f32.mrb[0].mxu0
      %1599 = vmatprep.mubr.f32.mxu0 0.0
      %1600 = vmatmul.mubr.f32.gmra.mrb[0].mxu0 %v947
      %v1601 = vpop.f32.mrb[0].mxu0
      %v1602 = vadd.f32 %v1296, %v1601
      %v1603 = vpop.f32.mrb[0].mxu0
      %1604 = vmatprep.mubr.f32.mxu0 0.0
      %1605 = vmatmul.mubr.f32.gmra.mrb[0].mxu0 %v948
      %v1606 = vpop.f32.mrb[0].mxu0
      %v1607 = vadd.f32 %v1301, %v1606
      %v1608 = vpop.f32.mrb[0].mxu0
      %1609 = vmatprep.mubr.f32.mxu0 0.0
      %1610 = vmatmul.mubr.f32.gmra.mrb[0].mxu0 %v949
      %v1611 = vpop.f32.mrb[0].mxu0
      %v1612 = vadd.f32 %v1306, %v1611
      %v1613 = vpop.f32.mrb[0].mxu0
      %1614 = vmatprep.mubr.f32.mxu0 0.0
      %1615 = vmatmul.mubr.f32.gmra.mrb[0].mxu0 %v950
      %v1616 = vpop.f32.mrb[0].mxu0
      %v1617 = vadd.f32 %v1311, %v1616
      %v1618 = vpop.f32.mrb[0].mxu0
      %1619 = vmatprep.mubr.f32.mxu0 0.0
      %1620 = vmatmul.mubr.f32.gmra.mrb[0].mxu0 %v951
      %v1621 = vpop.f32.mrb[0].mxu0
      %v1622 = vadd.f32 %v1316, %v1621
      %v1623 = vpop.f32.mrb[0].mxu0
      %1624 = vmatprep.mubr.f32.mxu0 0.0
      %1625 = vmatmul.mubr.f32.gmra.mrb[0].mxu0 %v952
      %v1626 = vpop.f32.mrb[0].mxu0
      %v1627 = vadd.f32 %v1321, %v1626
      %v1628 = vpop.f32.mrb[0].mxu0
      %1629 = vmatprep.mubr.f32.mxu0 0.0
      %1630 = vmatmul.mubr.f32.gmra.mrb[0].mxu0 %v953
      %v1631 = vpop.f32.mrb[0].mxu0
      %v1632 = vadd.f32 %v1326, %v1631
      %v1633 = vpop.f32.mrb[0].mxu0
      %1634 = vmatprep.mubr.f32.mxu0 0.0
      %1635 = vmatmul.mubr.f32.gmra.mrb[0].mxu0 %v954
      %v1636 = vpop.f32.mrb[0].mxu0
      %v1637 = vadd.f32 %v1331, %v1636
      %v1638 = vpop.f32.mrb[0].mxu0
      %1639 = vmatprep.mubr.f32.mxu0 0.0
      %1640 = vmatmul.mubr.f32.gmra.mrb[0].mxu0 %v955
      %v1641 = vpop.f32.mrb[0].mxu0
      %v1642 = vadd.f32 %v1336, %v1641
      %v1643 = vpop.f32.mrb[0].mxu0
      %1644 = vmatprep.mubr.f32.mxu0 0.0
      %1645 = vmatmul.mubr.f32.gmra.mrb[0].mxu0 %v956
      %v1646 = vpop.f32.mrb[0].mxu0
      %v1647 = vadd.f32 %v1341, %v1646
      %v1648 = vpop.f32.mrb[0].mxu0
      %1649 = vmatprep.mubr.f32.mxu0 0.0
      %1650 = vmatmul.mubr.f32.gmra.mrb[0].mxu0 %v957
      %v1651 = vpop.f32.mrb[0].mxu0
      %v1652 = vadd.f32 %v1346, %v1651
      %v1653 = vpop.f32.mrb[0].mxu0
      %1654 = vmatprep.mubr.f32.mxu0 0.0
      %1655 = vmatmul.mubr.f32.gmra.mrb[0].mxu0 %v958
      %v1656 = vpop.f32.mrb[0].mxu0
      %v1657 = vadd.f32 %v1351, %v1656
      %v1658 = vpop.f32.mrb[0].mxu0
      %1659 = vmatprep.mubr.f32.mxu0 0.0
      %1660 = vmatmul.mubr.f32.gmra.mrb[0].mxu0 %v959
      %v1661 = vpop.f32.mrb[0].mxu0
      %v1662 = vadd.f32 %v1356, %v1661
      %v1663 = vpop.f32.mrb[0].mxu0
      %1664 = vmatprep.mubr.f32.mxu0 0.0
      %1665 = vmatmul.mubr.f32.gmra.mrb[0].mxu0 %v960
      %v1666 = vpop.f32.mrb[0].mxu0
      %v1667 = vadd.f32 %v1361, %v1666
      %v1668 = vpop.f32.mrb[0].mxu0
      %1669 = vmatprep.mubr.f32.mxu0 0.0
      %1670 = vmatmul.mubr.f32.gmra.mrb[0].mxu0 %v961
      %v1671 = vpop.f32.mrb[0].mxu0
      %v1672 = vadd.f32 %v1366, %v1671
      %v1673 = vpop.f32.mrb[0].mxu0
      %1674 = vdwg.mxu0
      %s1675 = scalar_lea.vmem %s5, 768
      %v1676 = vld [vmem:[%s1675] sm:$0xff]
      %v1677 = vld [vmem:[%s1675 + $0x8] sm:$0xff]
      %v1678 = vld [vmem:[%s1675 + $0x10] sm:$0xff]
      %v1679 = vld [vmem:[%s1675 + $0x18] sm:$0xff]
      %v1680 = vld [vmem:[%s1675 + $0x20] sm:$0xff]
      %v1681 = vld [vmem:[%s1675 + $0x28] sm:$0xff]
      %v1682 = vld [vmem:[%s1675 + $0x30] sm:$0xff]
      %v1683 = vld [vmem:[%s1675 + $0x38] sm:$0xff]
      %v1684 = vld [vmem:[%s1675 + $0x40] sm:$0xff]
      %v1685 = vld [vmem:[%s1675 + $0x48] sm:$0xff]
      %v1686 = vld [vmem:[%s1675 + $0x50] sm:$0xff]
      %v1687 = vld [vmem:[%s1675 + $0x58] sm:$0xff]
      %v1688 = vld [vmem:[%s1675 + $0x60] sm:$0xff]
      %v1689 = vld [vmem:[%s1675 + $0x68] sm:$0xff]
      %v1690 = vld [vmem:[%s1675 + $0x70] sm:$0xff]
      %v1691 = vld [vmem:[%s1675 + $0x78] sm:$0xff]
      %v1692 = vld [vmem:[%s1675 + $0x80] sm:$0xff]
      %v1693 = vld [vmem:[%s1675 + $0x88] sm:$0xff]
      %v1694 = vld [vmem:[%s1675 + $0x90] sm:$0xff]
      %v1695 = vld [vmem:[%s1675 + $0x98] sm:$0xff]
      %v1696 = vld [vmem:[%s1675 + $0xa0] sm:$0xff]
      %v1697 = vld [vmem:[%s1675 + $0xa8] sm:$0xff]
      %v1698 = vld [vmem:[%s1675 + $0xb0] sm:$0xff]
      %v1699 = vld [vmem:[%s1675 + $0xb8] sm:$0xff]
      %v1700 = vld [vmem:[%s1675 + $0xc0] sm:$0xff]
      %v1701 = vld [vmem:[%s1675 + $0xc8] sm:$0xff]
      %v1702 = vld [vmem:[%s1675 + $0xd0] sm:$0xff]
      %v1703 = vld [vmem:[%s1675 + $0xd8] sm:$0xff]
      %v1704 = vld [vmem:[%s1675 + $0xe0] sm:$0xff]
      %v1705 = vld [vmem:[%s1675 + $0xe8] sm:$0xff]
      %v1706 = vld [vmem:[%s1675 + $0xf0] sm:$0xff]
      %v1707 = vld [vmem:[%s1675 + $0xf8] sm:$0xff]
      %v1708 = vld [vmem:[%s1675 + $0x100] sm:$0xff]
      %v1709 = vld [vmem:[%s1675 + $0x108] sm:$0xff]
      %v1710 = vld [vmem:[%s1675 + $0x110] sm:$0xff]
      %v1711 = vld [vmem:[%s1675 + $0x118] sm:$0xff]
      %v1712 = vld [vmem:[%s1675 + $0x120] sm:$0xff]
      %v1713 = vld [vmem:[%s1675 + $0x128] sm:$0xff]
      %v1714 = vld [vmem:[%s1675 + $0x130] sm:$0xff]
      %v1715 = vld [vmem:[%s1675 + $0x138] sm:$0xff]
      %v1716 = vld [vmem:[%s1675 + $0x140] sm:$0xff]
      %v1717 = vld [vmem:[%s1675 + $0x148] sm:$0xff]
      %v1718 = vld [vmem:[%s1675 + $0x150] sm:$0xff]
      %v1719 = vld [vmem:[%s1675 + $0x158] sm:$0xff]
      %v1720 = vld [vmem:[%s1675 + $0x160] sm:$0xff]
      %v1721 = vld [vmem:[%s1675 + $0x168] sm:$0xff]
      %v1722 = vld [vmem:[%s1675 + $0x170] sm:$0xff]
      %v1723 = vld [vmem:[%s1675 + $0x178] sm:$0xff]
      %1724 = vmatprep.subr.mxu0 %v1677
      %1725 = vmatpush1.msra.mxu0 %v1676
      %1726 = vmatprep.subr.mxu0 %v1680
      %1727 = vmatpush1.msra.mxu0 %v1679
      %1728 = vmatprep.subr.mxu0 %v1683
      %1729 = vmatpush1.msra.mxu0 %v1682
      %1730 = vmatprep.subr.mxu0 %v1686
      %1731 = vmatpush1.msra.mxu0 %v1685
      %1732 = vmatprep.subr.mxu0 %v1689
      %1733 = vmatpush1.msra.mxu0 %v1688
      %1734 = vmatprep.subr.mxu0 %v1692
      %1735 = vmatpush1.msra.mxu0 %v1691
      %1736 = vmatprep.subr.mxu0 %v1695
      %1737 = vmatpush1.msra.mxu0 %v1694
      %1738 = vmatprep.subr.mxu0 %v1698
      %1739 = vmatpush1.msra.mxu0 %v1697
      %1740 = vmatprep.subr.mxu0 %v1701
      %1741 = vmatpush1.msra.mxu0 %v1700
      %1742 = vmatprep.subr.mxu0 %v1704
      %1743 = vmatpush1.msra.mxu0 %v1703
      %1744 = vmatprep.subr.mxu0 %v1707
      %1745 = vmatpush1.msra.mxu0 %v1706
      %1746 = vmatprep.subr.mxu0 %v1710
      %1747 = vmatpush1.msra.mxu0 %v1709
      %1748 = vmatprep.subr.mxu0 %v1713
      %1749 = vmatpush1.msra.mxu0 %v1712
      %1750 = vmatprep.subr.mxu0 %v1716
      %1751 = vmatpush1.msra.mxu0 %v1715
      %1752 = vmatprep.subr.mxu0 %v1719
      %1753 = vmatpush1.msra.mxu0 %v1718
      %1754 = vmatprep.subr.mxu0 %v1722
      %1755 = vmatpush1.msra.mxu0 %v1721
      %1756 = vmatprep.subr.mxu0 0.0
      %1757 = vmatpush1.msra.mxu0 0.0
      %1758 = vmatprep.subr.mxu0 0.0
      %1759 = vmatpush1.msra.mxu0 0.0
      %1760 = vmatprep.subr.mxu0 0.0
      %1761 = vmatpush1.msra.mxu0 0.0
      %1762 = vmatprep.subr.mxu0 0.0
      %1763 = vmatpush1.msra.mxu0 0.0
      %1764 = vmatprep.subr.mxu0 0.0
      %1765 = vmatpush1.msra.mxu0 0.0
      %1766 = vmatprep.subr.mxu0 0.0
      %1767 = vmatpush1.msra.mxu0 0.0
      %1768 = vmatprep.subr.mxu0 0.0
      %1769 = vmatpush1.msra.mxu0 0.0
      %1770 = vmatprep.subr.mxu0 0.0
      %1771 = vmatpush1.msra.mxu0 0.0
      %1772 = vmatprep.subr.mxu0 0.0
      %1773 = vmatpush1.msra.mxu0 0.0
      %1774 = vmatprep.subr.mxu0 0.0
      %1775 = vmatpush1.msra.mxu0 0.0
      %1776 = vmatprep.subr.mxu0 0.0
      %1777 = vmatpush1.msra.mxu0 0.0
      %1778 = vmatprep.subr.mxu0 0.0
      %1779 = vmatpush1.msra.mxu0 0.0
      %1780 = vmatprep.subr.mxu0 0.0
      %1781 = vmatpush1.msra.mxu0 0.0
      %1782 = vmatprep.subr.mxu0 0.0
      %1783 = vmatpush1.msra.mxu0 0.0
      %1784 = vmatprep.subr.mxu0 0.0
      %1785 = vmatpush1.msra.mxu0 0.0
      %1786 = vmatprep.subr.mxu0 0.0
      %1787 = vmatpush1.msra.mxu0 0.0
      %1788 = vmatprep.mubr.f32.mxu0 0.0
      %1789 = vmatmul.mubr.f32.gmra.mrb[0].mxu0 %v950
      %v1790 = vpop.f32.mrb[0].mxu0
      %v1791 = vadd.f32 0.0, %v1790
      %v1792 = vpop.f32.mrb[0].mxu0
      %v1793 = vadd.f32 0.0, %v1792
      %1794 = vmatprep.mubr.f32.mxu0 0.0
      %1795 = vmatmul.mubr.f32.gmra.mrb[0].mxu0 %v951
      %v1796 = vpop.f32.mrb[0].mxu0
      %v1797 = vadd.f32 0.0, %v1796
      %v1798 = vpop.f32.mrb[0].mxu0
      %v1799 = vadd.f32 0.0, %v1798
      %1800 = vmatprep.mubr.f32.mxu0 0.0
      %1801 = vmatmul.mubr.f32.gmra.mrb[0].mxu0 %v952
      %v1802 = vpop.f32.mrb[0].mxu0
      %v1803 = vadd.f32 0.0, %v1802
      %v1804 = vpop.f32.mrb[0].mxu0
      %v1805 = vadd.f32 0.0, %v1804
      %1806 = vmatprep.mubr.f32.mxu0 0.0
      %1807 = vmatmul.mubr.f32.gmra.mrb[0].mxu0 %v953
      %v1808 = vpop.f32.mrb[0].mxu0
      %v1809 = vadd.f32 0.0, %v1808
      %v1810 = vpop.f32.mrb[0].mxu0
      %v1811 = vadd.f32 0.0, %v1810
      %1812 = vmatprep.mubr.f32.mxu0 0.0
      %1813 = vmatmul.mubr.f32.gmra.mrb[0].mxu0 %v954
      %v1814 = vpop.f32.mrb[0].mxu0
      %v1815 = vadd.f32 0.0, %v1814
      %v1816 = vpop.f32.mrb[0].mxu0
      %v1817 = vadd.f32 0.0, %v1816
      %1818 = vmatprep.mubr.f32.mxu0 0.0
      %1819 = vmatmul.mubr.f32.gmra.mrb[0].mxu0 %v955
      %v1820 = vpop.f32.mrb[0].mxu0
      %v1821 = vadd.f32 0.0, %v1820
      %v1822 = vpop.f32.mrb[0].mxu0
      %v1823 = vadd.f32 0.0, %v1822
      %1824 = vmatprep.mubr.f32.mxu0 0.0
      %1825 = vmatmul.mubr.f32.gmra.mrb[0].mxu0 %v956
      %v1826 = vpop.f32.mrb[0].mxu0
      %v1827 = vadd.f32 0.0, %v1826
      %v1828 = vpop.f32.mrb[0].mxu0
      %v1829 = vadd.f32 0.0, %v1828
      %1830 = vmatprep.mubr.f32.mxu0 0.0
      %1831 = vmatmul.mubr.f32.gmra.mrb[0].mxu0 %v957
      %v1832 = vpop.f32.mrb[0].mxu0
      %v1833 = vadd.f32 0.0, %v1832
      %v1834 = vpop.f32.mrb[0].mxu0
      %v1835 = vadd.f32 0.0, %v1834
      %1836 = vmatprep.mubr.f32.mxu0 0.0
      %1837 = vmatmul.mubr.f32.gmra.mrb[0].mxu0 %v958
      %v1838 = vpop.f32.mrb[0].mxu0
      %v1839 = vadd.f32 0.0, %v1838
      %v1840 = vpop.f32.mrb[0].mxu0
      %v1841 = vadd.f32 0.0, %v1840
      %1842 = vmatprep.mubr.f32.mxu0 0.0
      %1843 = vmatmul.mubr.f32.gmra.mrb[0].mxu0 %v959
      %v1844 = vpop.f32.mrb[0].mxu0
      %v1845 = vadd.f32 0.0, %v1844
      %v1846 = vpop.f32.mrb[0].mxu0
      %v1847 = vadd.f32 0.0, %v1846
      %1848 = vmatprep.mubr.f32.mxu0 0.0
      %1849 = vmatmul.mubr.f32.gmra.mrb[0].mxu0 %v960
      %v1850 = vpop.f32.mrb[0].mxu0
      %v1851 = vadd.f32 0.0, %v1850
      %v1852 = vpop.f32.mrb[0].mxu0
      %v1853 = vadd.f32 0.0, %v1852
      %1854 = vmatprep.mubr.f32.mxu0 0.0
      %1855 = vmatmul.mubr.f32.gmra.mrb[0].mxu0 %v961
      %v1856 = vpop.f32.mrb[0].mxu0
      %v1857 = vadd.f32 0.0, %v1856
      %v1858 = vpop.f32.mrb[0].mxu0
      %v1859 = vadd.f32 0.0, %v1858
      %1860 = vmatprep.mubr.f32.mxu0 0.0
      %1861 = vmatmul.mubr.f32.gmra.mrb[0].mxu0 %v962
      %v1862 = vpop.f32.mrb[0].mxu0
      %v1863 = vadd.f32 0.0, %v1862
      %v1864 = vpop.f32.mrb[0].mxu0
      %v1865 = vadd.f32 0.0, %v1864
      %1866 = vmatprep.mubr.f32.mxu0 0.0
      %1867 = vmatmul.mubr.f32.gmra.mrb[0].mxu0 %v963
      %v1868 = vpop.f32.mrb[0].mxu0
      %v1869 = vadd.f32 0.0, %v1868
      %v1870 = vpop.f32.mrb[0].mxu0
      %v1871 = vadd.f32 0.0, %v1870
      %1872 = vmatprep.mubr.f32.mxu0 0.0
      %1873 = vmatmul.mubr.f32.gmra.mrb[0].mxu0 %v964
      %v1874 = vpop.f32.mrb[0].mxu0
      %v1875 = vadd.f32 0.0, %v1874
      %v1876 = vpop.f32.mrb[0].mxu0
      %v1877 = vadd.f32 0.0, %v1876
      %1878 = vmatprep.mubr.f32.mxu0 0.0
      %1879 = vmatmul.mubr.f32.gmra.mrb[0].mxu0 %v965
      %v1880 = vpop.f32.mrb[0].mxu0
      %v1881 = vadd.f32 0.0, %v1880
      %v1882 = vpop.f32.mrb[0].mxu0
      %v1883 = vadd.f32 0.0, %v1882
      %1884 = vdwg.mxu0
      %1885 = vmatprep.subr.mxu0 0.0
      %1886 = vmatpush1.msra.mxu0 %v1678
      %1887 = vmatprep.subr.mxu0 0.0
      %1888 = vmatpush1.msra.mxu0 %v1681
      %1889 = vmatprep.subr.mxu0 0.0
      %1890 = vmatpush1.msra.mxu0 %v1684
      %1891 = vmatprep.subr.mxu0 0.0
      %1892 = vmatpush1.msra.mxu0 %v1687
      %1893 = vmatprep.subr.mxu0 0.0
      %1894 = vmatpush1.msra.mxu0 %v1690
      %1895 = vmatprep.subr.mxu0 0.0
      %1896 = vmatpush1.msra.mxu0 %v1693
      %1897 = vmatprep.subr.mxu0 0.0
      %1898 = vmatpush1.msra.mxu0 %v1696
      %1899 = vmatprep.subr.mxu0 0.0
      %1900 = vmatpush1.msra.mxu0 %v1699
      %1901 = vmatprep.subr.mxu0 0.0
      %1902 = vmatpush1.msra.mxu0 %v1702
      %1903 = vmatprep.subr.mxu0 0.0
      %1904 = vmatpush1.msra.mxu0 %v1705
      %1905 = vmatprep.subr.mxu0 0.0
      %1906 = vmatpush1.msra.mxu0 %v1708
      %1907 = vmatprep.subr.mxu0 0.0
      %1908 = vmatpush1.msra.mxu0 %v1711
      %1909 = vmatprep.subr.mxu0 0.0
      %1910 = vmatpush1.msra.mxu0 %v1714
      %1911 = vmatprep.subr.mxu0 0.0
      %1912 = vmatpush1.msra.mxu0 %v1717
      %1913 = vmatprep.subr.mxu0 0.0
      %1914 = vmatpush1.msra.mxu0 %v1720
      %1915 = vmatprep.subr.mxu0 0.0
      %1916 = vmatpush1.msra.mxu0 %v1723
      %1917 = vmatprep.subr.mxu0 0.0
      %1918 = vmatpush1.msra.mxu0 0.0
      %1919 = vmatprep.subr.mxu0 0.0
      %1920 = vmatpush1.msra.mxu0 0.0
      %1921 = vmatprep.subr.mxu0 0.0
      %1922 = vmatpush1.msra.mxu0 0.0
      %1923 = vmatprep.subr.mxu0 0.0
      %1924 = vmatpush1.msra.mxu0 0.0
      %1925 = vmatprep.subr.mxu0 0.0
      %1926 = vmatpush1.msra.mxu0 0.0
      %1927 = vmatprep.subr.mxu0 0.0
      %1928 = vmatpush1.msra.mxu0 0.0
      %1929 = vmatprep.subr.mxu0 0.0
      %1930 = vmatpush1.msra.mxu0 0.0
      %1931 = vmatprep.subr.mxu0 0.0
      %1932 = vmatpush1.msra.mxu0 0.0
      %1933 = vmatprep.subr.mxu0 0.0
      %1934 = vmatpush1.msra.mxu0 0.0
      %1935 = vmatprep.subr.mxu0 0.0
      %1936 = vmatpush1.msra.mxu0 0.0
      %1937 = vmatprep.subr.mxu0 0.0
      %1938 = vmatpush1.msra.mxu0 0.0
      %1939 = vmatprep.subr.mxu0 0.0
      %1940 = vmatpush1.msra.mxu0 0.0
      %1941 = vmatprep.subr.mxu0 0.0
      %1942 = vmatpush1.msra.mxu0 0.0
      %1943 = vmatprep.subr.mxu0 0.0
      %1944 = vmatpush1.msra.mxu0 0.0
      %1945 = vmatprep.subr.mxu0 0.0
      %1946 = vmatpush1.msra.mxu0 0.0
      %1947 = vmatprep.subr.mxu0 0.0
      %1948 = vmatpush1.msra.mxu0 0.0
      %1949 = vmatprep.mubr.f32.mxu0 0.0
      %1950 = vmatmul.mubr.f32.gmra.mrb[0].mxu0 %v950
      %v1951 = vpop.f32.mrb[0].mxu0
      %v1952 = vadd.f32 0.0, %v1951
      %v1953 = vpop.f32.mrb[0].mxu0
      %1954 = vmatprep.mubr.f32.mxu0 0.0
      %1955 = vmatmul.mubr.f32.gmra.mrb[0].mxu0 %v951
      %v1956 = vpop.f32.mrb[0].mxu0
      %v1957 = vadd.f32 0.0, %v1956
      %v1958 = vpop.f32.mrb[0].mxu0
      %1959 = vmatprep.mubr.f32.mxu0 0.0
      %1960 = vmatmul.mubr.f32.gmra.mrb[0].mxu0 %v952
      %v1961 = vpop.f32.mrb[0].mxu0
      %v1962 = vadd.f32 0.0, %v1961
      %v1963 = vpop.f32.mrb[0].mxu0
      %1964 = vmatprep.mubr.f32.mxu0 0.0
      %1965 = vmatmul.mubr.f32.gmra.mrb[0].mxu0 %v953
      %v1966 = vpop.f32.mrb[0].mxu0
      %v1967 = vadd.f32 0.0, %v1966
      %v1968 = vpop.f32.mrb[0].mxu0
      %1969 = vmatprep.mubr.f32.mxu0 0.0
      %1970 = vmatmul.mubr.f32.gmra.mrb[0].mxu0 %v954
      %v1971 = vpop.f32.mrb[0].mxu0
      %v1972 = vadd.f32 0.0, %v1971
      %v1973 = vpop.f32.mrb[0].mxu0
      %1974 = vmatprep.mubr.f32.mxu0 0.0
      %1975 = vmatmul.mubr.f32.gmra.mrb[0].mxu0 %v955
      %v1976 = vpop.f32.mrb[0].mxu0
      %v1977 = vadd.f32 0.0, %v1976
      %v1978 = vpop.f32.mrb[0].mxu0
      %1979 = vmatprep.mubr.f32.mxu0 0.0
      %1980 = vmatmul.mubr.f32.gmra.mrb[0].mxu0 %v956
      %v1981 = vpop.f32.mrb[0].mxu0
      %v1982 = vadd.f32 0.0, %v1981
      %v1983 = vpop.f32.mrb[0].mxu0
      %1984 = vmatprep.mubr.f32.mxu0 0.0
      %1985 = vmatmul.mubr.f32.gmra.mrb[0].mxu0 %v957
      %v1986 = vpop.f32.mrb[0].mxu0
      %v1987 = vadd.f32 0.0, %v1986
      %v1988 = vpop.f32.mrb[0].mxu0
      %1989 = vmatprep.mubr.f32.mxu0 0.0
      %1990 = vmatmul.mubr.f32.gmra.mrb[0].mxu0 %v958
      %v1991 = vpop.f32.mrb[0].mxu0
      %v1992 = vadd.f32 0.0, %v1991
      %v1993 = vpop.f32.mrb[0].mxu0
      %1994 = vmatprep.mubr.f32.mxu0 0.0
      %1995 = vmatmul.mubr.f32.gmra.mrb[0].mxu0 %v959
      %v1996 = vpop.f32.mrb[0].mxu0
      %v1997 = vadd.f32 0.0, %v1996
      %v1998 = vpop.f32.mrb[0].mxu0
      %1999 = vmatprep.mubr.f32.mxu0 0.0
      %2000 = vmatmul.mubr.f32.gmra.mrb[0].mxu0 %v960
      %v2001 = vpop.f32.mrb[0].mxu0
      %v2002 = vadd.f32 0.0, %v2001
      %v2003 = vpop.f32.mrb[0].mxu0
      %2004 = vmatprep.mubr.f32.mxu0 0.0
      %2005 = vmatmul.mubr.f32.gmra.mrb[0].mxu0 %v961
      %v2006 = vpop.f32.mrb[0].mxu0
      %v2007 = vadd.f32 0.0, %v2006
      %v2008 = vpop.f32.mrb[0].mxu0
      %2009 = vmatprep.mubr.f32.mxu0 0.0
      %2010 = vmatmul.mubr.f32.gmra.mrb[0].mxu0 %v962
      %v2011 = vpop.f32.mrb[0].mxu0
      %v2012 = vadd.f32 0.0, %v2011
      %v2013 = vpop.f32.mrb[0].mxu0
      %2014 = vmatprep.mubr.f32.mxu0 0.0
      %2015 = vmatmul.mubr.f32.gmra.mrb[0].mxu0 %v963
      %v2016 = vpop.f32.mrb[0].mxu0
      %v2017 = vadd.f32 0.0, %v2016
      %v2018 = vpop.f32.mrb[0].mxu0
      %2019 = vmatprep.mubr.f32.mxu0 0.0
      %2020 = vmatmul.mubr.f32.gmra.mrb[0].mxu0 %v964
      %v2021 = vpop.f32.mrb[0].mxu0
      %v2022 = vadd.f32 0.0, %v2021
      %v2023 = vpop.f32.mrb[0].mxu0
      %2024 = vmatprep.mubr.f32.mxu0 0.0
      %2025 = vmatmul.mubr.f32.gmra.mrb[0].mxu0 %v965
      %v2026 = vpop.f32.mrb[0].mxu0
      %v2027 = vadd.f32 0.0, %v2026
      %v2028 = vpop.f32.mrb[0].mxu0
      %2029 = vdwg.mxu0
      %v2030 = vadd.f32 %v1436, %v1791
      %v2031 = vadd.f32 %v1438, %v1793
      %v2032 = vadd.f32 %v1597, %v1952
      %v2033 = vadd.f32 %v1442, %v1797
      %v2034 = vadd.f32 %v1444, %v1799
      %v2035 = vadd.f32 %v1602, %v1957
      %v2036 = vadd.f32 %v1448, %v1803
      %v2037 = vadd.f32 %v1450, %v1805
      %v2038 = vadd.f32 %v1607, %v1962
      %v2039 = vadd.f32 %v1454, %v1809
      %v2040 = vadd.f32 %v1456, %v1811
      %v2041 = vadd.f32 %v1612, %v1967
      %v2042 = vadd.f32 %v1460, %v1815
      %v2043 = vadd.f32 %v1462, %v1817
      %v2044 = vadd.f32 %v1617, %v1972
      %v2045 = vadd.f32 %v1466, %v1821
      %v2046 = vadd.f32 %v1468, %v1823
      %v2047 = vadd.f32 %v1622, %v1977
      %v2048 = vadd.f32 %v1472, %v1827
      %v2049 = vadd.f32 %v1474, %v1829
      %v2050 = vadd.f32 %v1627, %v1982
      %v2051 = vadd.f32 %v1478, %v1833
      %v2052 = vadd.f32 %v1480, %v1835
      %v2053 = vadd.f32 %v1632, %v1987
      %v2054 = vadd.f32 %v1484, %v1839
      %v2055 = vadd.f32 %v1486, %v1841
      %v2056 = vadd.f32 %v1637, %v1992
      %v2057 = vadd.f32 %v1490, %v1845
      %v2058 = vadd.f32 %v1492, %v1847
      %v2059 = vadd.f32 %v1642, %v1997
      %v2060 = vadd.f32 %v1496, %v1851
      %v2061 = vadd.f32 %v1498, %v1853
      %v2062 = vadd.f32 %v1647, %v2002
      %v2063 = vadd.f32 %v1502, %v1857
      %v2064 = vadd.f32 %v1504, %v1859
      %v2065 = vadd.f32 %v1652, %v2007
      %v2066 = vadd.f32 %v1508, %v1863
      %v2067 = vadd.f32 %v1510, %v1865
      %v2068 = vadd.f32 %v1657, %v2012
      %v2069 = vadd.f32 %v1514, %v1869
      %v2070 = vadd.f32 %v1516, %v1871
      %v2071 = vadd.f32 %v1662, %v2017
      %v2072 = vadd.f32 %v1520, %v1875
      %v2073 = vadd.f32 %v1522, %v1877
      %v2074 = vadd.f32 %v1667, %v2022
      %v2075 = vadd.f32 %v1526, %v1881
      %v2076 = vadd.f32 %v1528, %v1883
      %v2077 = vadd.f32 %v1672, %v2027
      %vm2078 = vcmp.lt.s32.totalorder %v778, 0
      %v2079 = vsub.s32 0, %v778
      %v2080 = vsel %vm2078, %v2079, %v778
      %v2081 = vshrl.u32 %v2080, 4
      %v2082 = vand.u32 %v2080, 15
      %v2083 = vsub.s32 0, %v2082
      %v2084 = vsel %vm2078, %v2083, %v2082
      %vm2085 = vcmp.lt.s32.totalorder %v779, 0
      %v2086 = vsub.s32 0, %v779
      %v2087 = vsel %vm2085, %v2086, %v779
      %v2088 = vshrl.u32 %v2087, 4
      %v2089 = vand.u32 %v2087, 15
      %v2090 = vsub.s32 0, %v2089
      %v2091 = vsel %vm2085, %v2090, %v2089
      %vm2092 = vcmp.lt.s32.totalorder %v780, 0
      %v2093 = vsub.s32 0, %v780
      %v2094 = vsel %vm2092, %v2093, %v780
      %v2095 = vshrl.u32 %v2094, 4
      %v2096 = vand.u32 %v2094, 15
      %v2097 = vsub.s32 0, %v2096
      %v2098 = vsel %vm2092, %v2097, %v2096
      %vm2099 = vcmp.lt.s32.totalorder %v781, 0
      %v2100 = vsub.s32 0, %v781
      %v2101 = vsel %vm2099, %v2100, %v781
      %v2102 = vshrl.u32 %v2101, 4
      %v2103 = vand.u32 %v2101, 15
      %v2104 = vsub.s32 0, %v2103
      %v2105 = vsel %vm2099, %v2104, %v2103
      %vm2106 = vcmp.lt.s32.totalorder %v782, 0
      %v2107 = vsub.s32 0, %v782
      %v2108 = vsel %vm2106, %v2107, %v782
      %v2109 = vshrl.u32 %v2108, 4
      %v2110 = vand.u32 %v2108, 15
      %v2111 = vsub.s32 0, %v2110
      %v2112 = vsel %vm2106, %v2111, %v2110
      %vm2113 = vcmp.lt.s32.totalorder %v783, 0
      %v2114 = vsub.s32 0, %v783
      %v2115 = vsel %vm2113, %v2114, %v783
      %v2116 = vshrl.u32 %v2115, 4
      %v2117 = vand.u32 %v2115, 15
      %v2118 = vsub.s32 0, %v2117
      %v2119 = vsel %vm2113, %v2118, %v2117
      %vm2120 = vcmp.lt.s32.totalorder %v784, 0
      %v2121 = vsub.s32 0, %v784
      %v2122 = vsel %vm2120, %v2121, %v784
      %v2123 = vshrl.u32 %v2122, 4
      %v2124 = vand.u32 %v2122, 15
      %v2125 = vsub.s32 0, %v2124
      %v2126 = vsel %vm2120, %v2125, %v2124
      %vm2127 = vcmp.lt.s32.totalorder %v785, 0
      %v2128 = vsub.s32 0, %v785
      %v2129 = vsel %vm2127, %v2128, %v785
      %v2130 = vshrl.u32 %v2129, 4
      %v2131 = vand.u32 %v2129, 15
      %v2132 = vsub.s32 0, %v2131
      %v2133 = vsel %vm2127, %v2132, %v2131
      %vm2134 = vcmp.lt.s32.totalorder %v786, 0
      %v2135 = vsub.s32 0, %v786
      %v2136 = vsel %vm2134, %v2135, %v786
      %v2137 = vshrl.u32 %v2136, 4
      %v2138 = vand.u32 %v2136, 15
      %v2139 = vsub.s32 0, %v2138
      %v2140 = vsel %vm2134, %v2139, %v2138
      %vm2141 = vcmp.lt.s32.totalorder %v787, 0
      %v2142 = vsub.s32 0, %v787
      %v2143 = vsel %vm2141, %v2142, %v787
      %v2144 = vshrl.u32 %v2143, 4
      %v2145 = vand.u32 %v2143, 15
      %v2146 = vsub.s32 0, %v2145
      %v2147 = vsel %vm2141, %v2146, %v2145
      %vm2148 = vcmp.lt.s32.totalorder %v788, 0
      %v2149 = vsub.s32 0, %v788
      %v2150 = vsel %vm2148, %v2149, %v788
      %v2151 = vshrl.u32 %v2150, 4
      %v2152 = vand.u32 %v2150, 15
      %v2153 = vsub.s32 0, %v2152
      %v2154 = vsel %vm2148, %v2153, %v2152
      %vm2155 = vcmp.lt.s32.totalorder %v789, 0
      %v2156 = vsub.s32 0, %v789
      %v2157 = vsel %vm2155, %v2156, %v789
      %v2158 = vshrl.u32 %v2157, 4
      %v2159 = vand.u32 %v2157, 15
      %v2160 = vsub.s32 0, %v2159
      %v2161 = vsel %vm2155, %v2160, %v2159
      %vm2162 = vcmp.lt.s32.totalorder %v790, 0
      %v2163 = vsub.s32 0, %v790
      %v2164 = vsel %vm2162, %v2163, %v790
      %v2165 = vshrl.u32 %v2164, 4
      %v2166 = vand.u32 %v2164, 15
      %v2167 = vsub.s32 0, %v2166
      %v2168 = vsel %vm2162, %v2167, %v2166
      %vm2169 = vcmp.lt.s32.totalorder %v791, 0
      %v2170 = vsub.s32 0, %v791
      %v2171 = vsel %vm2169, %v2170, %v791
      %v2172 = vshrl.u32 %v2171, 4
      %v2173 = vand.u32 %v2171, 15
      %v2174 = vsub.s32 0, %v2173
      %v2175 = vsel %vm2169, %v2174, %v2173
      %vm2176 = vcmp.lt.s32.totalorder %v792, 0
      %v2177 = vsub.s32 0, %v792
      %v2178 = vsel %vm2176, %v2177, %v792
      %v2179 = vshrl.u32 %v2178, 4
      %v2180 = vand.u32 %v2178, 15
      %v2181 = vsub.s32 0, %v2180
      %v2182 = vsel %vm2176, %v2181, %v2180
      %vm2183 = vcmp.lt.s32.totalorder %v793, 0
      %v2184 = vsub.s32 0, %v793
      %v2185 = vsel %vm2183, %v2184, %v793
      %v2186 = vshrl.u32 %v2185, 4
      %v2187 = vand.u32 %v2185, 15
      %v2188 = vsub.s32 0, %v2187
      %v2189 = vsel %vm2183, %v2188, %v2187
      %vm2190 = vcmp.ne.s32.totalorder %v2084, 0
      %vm2191 = vcmp.ne.s32.totalorder %v2091, 0
      %vm2192 = vcmp.ne.s32.totalorder %v2098, 0
      %vm2193 = vcmp.ne.s32.totalorder %v2105, 0
      %vm2194 = vcmp.ne.s32.totalorder %v2112, 0
      %vm2195 = vcmp.ne.s32.totalorder %v2119, 0
      %vm2196 = vcmp.ne.s32.totalorder %v2126, 0
      %vm2197 = vcmp.ne.s32.totalorder %v2133, 0
      %vm2198 = vcmp.ne.s32.totalorder %v2140, 0
      %vm2199 = vcmp.ne.s32.totalorder %v2147, 0
      %vm2200 = vcmp.ne.s32.totalorder %v2154, 0
      %vm2201 = vcmp.ne.s32.totalorder %v2161, 0
      %vm2202 = vcmp.ne.s32.totalorder %v2168, 0
      %vm2203 = vcmp.ne.s32.totalorder %v2175, 0
      %vm2204 = vcmp.ne.s32.totalorder %v2182, 0
      %vm2205 = vcmp.ne.s32.totalorder %v2189, 0
      %vm2206 = vcmp.lt.s32.totalorder %v2084, 0
      %vm2207 = vcmp.lt.s32.totalorder %v2091, 0
      %vm2208 = vcmp.lt.s32.totalorder %v2098, 0
      %vm2209 = vcmp.lt.s32.totalorder %v2105, 0
      %vm2210 = vcmp.lt.s32.totalorder %v2112, 0
      %vm2211 = vcmp.lt.s32.totalorder %v2119, 0
      %vm2212 = vcmp.lt.s32.totalorder %v2126, 0
      %vm2213 = vcmp.lt.s32.totalorder %v2133, 0
      %vm2214 = vcmp.lt.s32.totalorder %v2140, 0
      %vm2215 = vcmp.lt.s32.totalorder %v2147, 0
      %vm2216 = vcmp.lt.s32.totalorder %v2154, 0
      %vm2217 = vcmp.lt.s32.totalorder %v2161, 0
      %vm2218 = vcmp.lt.s32.totalorder %v2168, 0
      %vm2219 = vcmp.lt.s32.totalorder %v2175, 0
      %vm2220 = vcmp.lt.s32.totalorder %v2182, 0
      %vm2221 = vcmp.lt.s32.totalorder %v2189, 0
      %vm2222 = vmand %vm2206, %vm2190
      %vm2223 = vmand %vm2207, %vm2191
      %vm2224 = vmand %vm2208, %vm2192
      %vm2225 = vmand %vm2209, %vm2193
      %vm2226 = vmand %vm2210, %vm2194
      %vm2227 = vmand %vm2211, %vm2195
      %vm2228 = vmand %vm2212, %vm2196
      %vm2229 = vmand %vm2213, %vm2197
      %vm2230 = vmand %vm2214, %vm2198
      %vm2231 = vmand %vm2215, %vm2199
      %vm2232 = vmand %vm2216, %vm2200
      %vm2233 = vmand %vm2217, %vm2201
      %vm2234 = vmand %vm2218, %vm2202
      %vm2235 = vmand %vm2219, %vm2203
      %vm2236 = vmand %vm2220, %vm2204
      %vm2237 = vmand %vm2221, %vm2205
      %v2238 = vadd.s32 %v2084, 16
      %v2239 = vadd.s32 %v2091, 16
      %v2240 = vadd.s32 %v2098, 16
      %v2241 = vadd.s32 %v2105, 16
      %v2242 = vadd.s32 %v2112, 16
      %v2243 = vadd.s32 %v2119, 16
      %v2244 = vadd.s32 %v2126, 16
      %v2245 = vadd.s32 %v2133, 16
      %v2246 = vadd.s32 %v2140, 16
      %v2247 = vadd.s32 %v2147, 16
      %v2248 = vadd.s32 %v2154, 16
      %v2249 = vadd.s32 %v2161, 16
      %v2250 = vadd.s32 %v2168, 16
      %v2251 = vadd.s32 %v2175, 16
      %v2252 = vadd.s32 %v2182, 16
      %v2253 = vadd.s32 %v2189, 16
      %v2254 = vsel %vm2222, %v2238, %v2084
      %v2255 = vsel %vm2223, %v2239, %v2091
      %v2256 = vsel %vm2224, %v2240, %v2098
      %v2257 = vsel %vm2225, %v2241, %v2105
      %v2258 = vsel %vm2226, %v2242, %v2112
      %v2259 = vsel %vm2227, %v2243, %v2119
      %v2260 = vsel %vm2228, %v2244, %v2126
      %v2261 = vsel %vm2229, %v2245, %v2133
      %v2262 = vsel %vm2230, %v2246, %v2140
      %v2263 = vsel %vm2231, %v2247, %v2147
      %v2264 = vsel %vm2232, %v2248, %v2154
      %v2265 = vsel %vm2233, %v2249, %v2161
      %v2266 = vsel %vm2234, %v2250, %v2168
      %v2267 = vsel %vm2235, %v2251, %v2175
      %v2268 = vsel %vm2236, %v2252, %v2182
      %v2269 = vsel %vm2237, %v2253, %v2189
      %vm2270 = vcmp.eq.s32.totalorder %v2254, 0
      %vm2271 = vcmp.eq.s32.totalorder %v2255, 0
      %vm2272 = vcmp.eq.s32.totalorder %v2256, 0
      %vm2273 = vcmp.eq.s32.totalorder %v2257, 0
      %vm2274 = vcmp.eq.s32.totalorder %v2258, 0
      %vm2275 = vcmp.eq.s32.totalorder %v2259, 0
      %vm2276 = vcmp.eq.s32.totalorder %v2260, 0
      %vm2277 = vcmp.eq.s32.totalorder %v2261, 0
      %vm2278 = vcmp.eq.s32.totalorder %v2262, 0
      %vm2279 = vcmp.eq.s32.totalorder %v2263, 0
      %vm2280 = vcmp.eq.s32.totalorder %v2264, 0
      %vm2281 = vcmp.eq.s32.totalorder %v2265, 0
      %vm2282 = vcmp.eq.s32.totalorder %v2266, 0
      %vm2283 = vcmp.eq.s32.totalorder %v2267, 0
      %vm2284 = vcmp.eq.s32.totalorder %v2268, 0
      %vm2285 = vcmp.eq.s32.totalorder %v2269, 0
      %v2287 = vrot.slane %v2075, 7
      %vm2304 = vcmask 1040384
      %v2305 = vrot.slane %v2030, 7
      %v2306 = vrot.slane %v2033, 7
      %v2307 = vsel %vm2304, %v2305, %v2306
      %v2308 = vrot.slane %v2036, 7
      %v2309 = vsel %vm2304, %v2306, %v2308
      %v2310 = vrot.slane %v2039, 7
      %v2311 = vsel %vm2304, %v2308, %v2310
      %v2312 = vrot.slane %v2042, 7
      %v2313 = vsel %vm2304, %v2310, %v2312
      %v2314 = vrot.slane %v2045, 7
      %v2315 = vsel %vm2304, %v2312, %v2314
      %v2316 = vrot.slane %v2048, 7
      %v2317 = vsel %vm2304, %v2314, %v2316
      %v2318 = vrot.slane %v2051, 7
      %v2319 = vsel %vm2304, %v2316, %v2318
      %v2320 = vrot.slane %v2054, 7
      %v2321 = vsel %vm2304, %v2318, %v2320
      %v2322 = vrot.slane %v2057, 7
      %v2323 = vsel %vm2304, %v2320, %v2322
      %v2324 = vrot.slane %v2060, 7
      %v2325 = vsel %vm2304, %v2322, %v2324
      %v2326 = vrot.slane %v2063, 7
      %v2327 = vsel %vm2304, %v2324, %v2326
      %v2328 = vrot.slane %v2066, 7
      %v2329 = vsel %vm2304, %v2326, %v2328
      %v2330 = vrot.slane %v2069, 7
      %v2331 = vsel %vm2304, %v2328, %v2330
      %v2332 = vrot.slane %v2072, 7
      %v2333 = vsel %vm2304, %v2330, %v2332
      %v2334 = vsel %vm2304, %v2332, %v2287
      %v2351 = vsel %vm2304, %v2287, %v2305
      %v2352 = vsel %vm2270, 1, 0
      %v2353 = vsel %vm2271, 1, 0
      %v2354 = vsel %vm2272, 1, 0
      %v2355 = vsel %vm2273, 1, 0
      %v2356 = vsel %vm2274, 1, 0
      %v2357 = vsel %vm2275, 1, 0
      %v2358 = vsel %vm2276, 1, 0
      %v2359 = vsel %vm2277, 1, 0
      %v2360 = vsel %vm2278, 1, 0
      %v2361 = vsel %vm2279, 1, 0
      %v2362 = vsel %vm2280, 1, 0
      %v2363 = vsel %vm2281, 1, 0
      %v2364 = vsel %vm2282, 1, 0
      %v2365 = vsel %vm2283, 1, 0
      %v2366 = vsel %vm2284, 1, 0
      %v2367 = vsel %vm2285, 1, 0
      %vm2368 = vcmp.eq.s32.totalorder %v2352, 1
      %vm2369 = vcmp.eq.s32.totalorder %v2353, 1
      %vm2370 = vcmp.eq.s32.totalorder %v2354, 1
      %vm2371 = vcmp.eq.s32.totalorder %v2355, 1
      %vm2372 = vcmp.eq.s32.totalorder %v2356, 1
      %vm2373 = vcmp.eq.s32.totalorder %v2357, 1
      %vm2374 = vcmp.eq.s32.totalorder %v2358, 1
      %vm2375 = vcmp.eq.s32.totalorder %v2359, 1
      %vm2376 = vcmp.eq.s32.totalorder %v2360, 1
      %vm2377 = vcmp.eq.s32.totalorder %v2361, 1
      %vm2378 = vcmp.eq.s32.totalorder %v2362, 1
      %vm2379 = vcmp.eq.s32.totalorder %v2363, 1
      %vm2380 = vcmp.eq.s32.totalorder %v2364, 1
      %vm2381 = vcmp.eq.s32.totalorder %v2365, 1
      %vm2382 = vcmp.eq.s32.totalorder %v2366, 1
      %vm2383 = vcmp.eq.s32.totalorder %v2367, 1
      %v2384 = vsel %vm2368, 0.0, %v2351
      %v2385 = vsel %vm2369, 0.0, %v2307
      %v2386 = vsel %vm2370, 0.0, %v2309
      %v2387 = vsel %vm2371, 0.0, %v2311
      %v2388 = vsel %vm2372, 0.0, %v2313
      %v2389 = vsel %vm2373, 0.0, %v2315
      %v2390 = vsel %vm2374, 0.0, %v2317
      %v2391 = vsel %vm2375, 0.0, %v2319
      %v2392 = vsel %vm2376, 0.0, %v2321
      %v2393 = vsel %vm2377, 0.0, %v2323
      %v2394 = vsel %vm2378, 0.0, %v2325
      %v2395 = vsel %vm2379, 0.0, %v2327
      %v2396 = vsel %vm2380, 0.0, %v2329
      %v2397 = vsel %vm2381, 0.0, %v2331
      %v2398 = vsel %vm2382, 0.0, %v2333
      %v2399 = vsel %vm2383, 0.0, %v2334
      %vm2400 = vcmp.eq.s32.totalorder %v2254, 15
      %vm2401 = vcmp.eq.s32.totalorder %v2255, 15
      %vm2402 = vcmp.eq.s32.totalorder %v2256, 15
      %vm2403 = vcmp.eq.s32.totalorder %v2257, 15
      %vm2404 = vcmp.eq.s32.totalorder %v2258, 15
      %vm2405 = vcmp.eq.s32.totalorder %v2259, 15
      %vm2406 = vcmp.eq.s32.totalorder %v2260, 15
      %vm2407 = vcmp.eq.s32.totalorder %v2261, 15
      %vm2408 = vcmp.eq.s32.totalorder %v2262, 15
      %vm2409 = vcmp.eq.s32.totalorder %v2263, 15
      %vm2410 = vcmp.eq.s32.totalorder %v2264, 15
      %vm2411 = vcmp.eq.s32.totalorder %v2265, 15
      %vm2412 = vcmp.eq.s32.totalorder %v2266, 15
      %vm2413 = vcmp.eq.s32.totalorder %v2267, 15
      %vm2414 = vcmp.eq.s32.totalorder %v2268, 15
      %vm2415 = vcmp.eq.s32.totalorder %v2269, 15
      %vm2432 = vcmask 1046528
      %v2433 = vrot.slane %v2032, 1
      %v2434 = vrot.slane %v2035, 1
      %v2435 = vsel %vm2432, %v2433, %v2434
      %v2436 = vrot.slane %v2038, 1
      %v2437 = vsel %vm2432, %v2434, %v2436
      %v2438 = vrot.slane %v2041, 1
      %v2439 = vsel %vm2432, %v2436, %v2438
      %v2440 = vrot.slane %v2044, 1
      %v2441 = vsel %vm2432, %v2438, %v2440
      %v2442 = vrot.slane %v2047, 1
      %v2443 = vsel %vm2432, %v2440, %v2442
      %v2444 = vrot.slane %v2050, 1
      %v2445 = vsel %vm2432, %v2442, %v2444
      %v2446 = vrot.slane %v2053, 1
      %v2447 = vsel %vm2432, %v2444, %v2446
      %v2448 = vrot.slane %v2056, 1
      %v2449 = vsel %vm2432, %v2446, %v2448
      %v2450 = vrot.slane %v2059, 1
      %v2451 = vsel %vm2432, %v2448, %v2450
      %v2452 = vrot.slane %v2062, 1
      %v2453 = vsel %vm2432, %v2450, %v2452
      %v2454 = vrot.slane %v2065, 1
      %v2455 = vsel %vm2432, %v2452, %v2454
      %v2456 = vrot.slane %v2068, 1
      %v2457 = vsel %vm2432, %v2454, %v2456
      %v2458 = vrot.slane %v2071, 1
      %v2459 = vsel %vm2432, %v2456, %v2458
      %v2460 = vrot.slane %v2074, 1
      %v2461 = vsel %vm2432, %v2458, %v2460
      %v2462 = vrot.slane %v2077, 1
      %v2463 = vsel %vm2432, %v2460, %v2462
      %v2481 = vsel %vm2432, %v2462, %v2433
      %v2482 = vsel %vm2400, 1, 0
      %v2483 = vsel %vm2401, 1, 0
      %v2484 = vsel %vm2402, 1, 0
      %v2485 = vsel %vm2403, 1, 0
      %v2486 = vsel %vm2404, 1, 0
      %v2487 = vsel %vm2405, 1, 0
      %v2488 = vsel %vm2406, 1, 0
      %v2489 = vsel %vm2407, 1, 0
      %v2490 = vsel %vm2408, 1, 0
      %v2491 = vsel %vm2409, 1, 0
      %v2492 = vsel %vm2410, 1, 0
      %v2493 = vsel %vm2411, 1, 0
      %v2494 = vsel %vm2412, 1, 0
      %v2495 = vsel %vm2413, 1, 0
      %v2496 = vsel %vm2414, 1, 0
      %v2497 = vsel %vm2415, 1, 0
      %vm2498 = vcmp.eq.s32.totalorder %v2482, 1
      %vm2499 = vcmp.eq.s32.totalorder %v2483, 1
      %vm2500 = vcmp.eq.s32.totalorder %v2484, 1
      %vm2501 = vcmp.eq.s32.totalorder %v2485, 1
      %vm2502 = vcmp.eq.s32.totalorder %v2486, 1
      %vm2503 = vcmp.eq.s32.totalorder %v2487, 1
      %vm2504 = vcmp.eq.s32.totalorder %v2488, 1
      %vm2505 = vcmp.eq.s32.totalorder %v2489, 1
      %vm2506 = vcmp.eq.s32.totalorder %v2490, 1
      %vm2507 = vcmp.eq.s32.totalorder %v2491, 1
      %vm2508 = vcmp.eq.s32.totalorder %v2492, 1
      %vm2509 = vcmp.eq.s32.totalorder %v2493, 1
      %vm2510 = vcmp.eq.s32.totalorder %v2494, 1
      %vm2511 = vcmp.eq.s32.totalorder %v2495, 1
      %vm2512 = vcmp.eq.s32.totalorder %v2496, 1
      %vm2513 = vcmp.eq.s32.totalorder %v2497, 1
      %v2514 = vsel %vm2498, 0.0, %v2435
      %v2515 = vsel %vm2499, 0.0, %v2437
      %v2516 = vsel %vm2500, 0.0, %v2439
      %v2517 = vsel %vm2501, 0.0, %v2441
      %v2518 = vsel %vm2502, 0.0, %v2443
      %v2519 = vsel %vm2503, 0.0, %v2445
      %v2520 = vsel %vm2504, 0.0, %v2447
      %v2521 = vsel %vm2505, 0.0, %v2449
      %v2522 = vsel %vm2506, 0.0, %v2451
      %v2523 = vsel %vm2507, 0.0, %v2453
      %v2524 = vsel %vm2508, 0.0, %v2455
      %v2525 = vsel %vm2509, 0.0, %v2457
      %v2526 = vsel %vm2510, 0.0, %v2459
      %v2527 = vsel %vm2511, 0.0, %v2461
      %v2528 = vsel %vm2512, 0.0, %v2463
      %v2529 = vsel %vm2513, 0.0, %v2481
      %v2530 = vadd.f32 %v2031, %v2384
      %v2531 = vadd.f32 %v2034, %v2385
      %v2532 = vadd.f32 %v2037, %v2386
      %v2533 = vadd.f32 %v2040, %v2387
      %v2534 = vadd.f32 %v2043, %v2388
      %v2535 = vadd.f32 %v2046, %v2389
      %v2536 = vadd.f32 %v2049, %v2390
      %v2537 = vadd.f32 %v2052, %v2391
      %v2538 = vadd.f32 %v2055, %v2392
      %v2539 = vadd.f32 %v2058, %v2393
      %v2540 = vadd.f32 %v2061, %v2394
      %v2541 = vadd.f32 %v2064, %v2395
      %v2542 = vadd.f32 %v2067, %v2396
      %v2543 = vadd.f32 %v2070, %v2397
      %v2544 = vadd.f32 %v2073, %v2398
      %v2545 = vadd.f32 %v2076, %v2399
      %v2546 = vadd.f32 %v2530, %v2514
      %v2547 = vadd.f32 %v2531, %v2515
      %v2548 = vadd.f32 %v2532, %v2516
      %v2549 = vadd.f32 %v2533, %v2517
      %v2550 = vadd.f32 %v2534, %v2518
      %v2551 = vadd.f32 %v2535, %v2519
      %v2552 = vadd.f32 %v2536, %v2520
      %v2553 = vadd.f32 %v2537, %v2521
      %v2554 = vadd.f32 %v2538, %v2522
      %v2555 = vadd.f32 %v2539, %v2523
      %v2556 = vadd.f32 %v2540, %v2524
      %v2557 = vadd.f32 %v2541, %v2525
      %v2558 = vadd.f32 %v2542, %v2526
      %v2559 = vadd.f32 %v2543, %v2527
      %v2560 = vadd.f32 %v2544, %v2528
      %v2561 = vadd.f32 %v2545, %v2529
      %v2562 = vld [vmem:[%s6] sm:$0x1]
      %v2564 = vlaneseq
      %v2565 = vshrl.u32 %v2564, 7
      %v2566 = vsub.s32 0, %v2565
      %v2567 = vrot.slane %v2562, %v2566
      %v2569 = vadd.f32 %v2546, %v2567
      %v2570 = vadd.f32 %v2547, %v2567
      %v2571 = vadd.f32 %v2548, %v2567
      %v2572 = vadd.f32 %v2549, %v2567
      %v2573 = vadd.f32 %v2550, %v2567
      %v2574 = vadd.f32 %v2551, %v2567
      %v2575 = vadd.f32 %v2552, %v2567
      %v2576 = vadd.f32 %v2553, %v2567
      %v2577 = vadd.f32 %v2554, %v2567
      %v2578 = vadd.f32 %v2555, %v2567
      %v2579 = vadd.f32 %v2556, %v2567
      %v2580 = vadd.f32 %v2557, %v2567
      %v2581 = vadd.f32 %v2558, %v2567
      %v2582 = vadd.f32 %v2559, %v2567
      %v2583 = vadd.f32 %v2560, %v2567
      %v2584 = vadd.f32 %v2561, %v2567
      %v2585 = vmax.f32 %v2569, 0.0
      %v2586 = vmax.f32 %v2570, 0.0
      %v2587 = vmax.f32 %v2571, 0.0
      %v2588 = vmax.f32 %v2572, 0.0
      %v2589 = vmax.f32 %v2573, 0.0
      %v2590 = vmax.f32 %v2574, 0.0
      %v2591 = vmax.f32 %v2575, 0.0
      %v2592 = vmax.f32 %v2576, 0.0
      %v2593 = vmax.f32 %v2577, 0.0
      %v2594 = vmax.f32 %v2578, 0.0
      %v2595 = vmax.f32 %v2579, 0.0
      %v2596 = vmax.f32 %v2580, 0.0
      %v2597 = vmax.f32 %v2581, 0.0
      %v2598 = vmax.f32 %v2582, 0.0
      %v2599 = vmax.f32 %v2583, 0.0
      %v2600 = vmax.f32 %v2584, 0.0
      %v2601 = vld [vmem:[%s7] sm:$0xff]
      %v2602 = vld [vmem:[%s7 + $0x8] sm:$0xff]
      %v2603 = vld [vmem:[%s7 + $0x10] sm:$0xff]
      %v2604 = vld [vmem:[%s7 + $0x18] sm:$0xff]
      %v2605 = vld [vmem:[%s7 + $0x20] sm:$0xff]
      %v2606 = vld [vmem:[%s7 + $0x28] sm:$0xff]
      %v2607 = vld [vmem:[%s7 + $0x30] sm:$0xff]
      %v2608 = vld [vmem:[%s7 + $0x38] sm:$0xff]
      %v2609 = vld [vmem:[%s7 + $0x40] sm:$0xff]
      %v2610 = vld [vmem:[%s7 + $0x48] sm:$0xff]
      %v2611 = vld [vmem:[%s7 + $0x50] sm:$0xff]
      %v2612 = vld [vmem:[%s7 + $0x58] sm:$0xff]
      %v2613 = vld [vmem:[%s7 + $0x60] sm:$0xff]
      %v2614 = vld [vmem:[%s7 + $0x68] sm:$0xff]
      %v2615 = vld [vmem:[%s7 + $0x70] sm:$0xff]
      %v2616 = vld [vmem:[%s7 + $0x78] sm:$0xff]
      %v2617 = vld [vmem:[%s8] sm:$0x1]
      %v2619 = vlaneseq
      %v2620 = vshrl.u32 %v2619, 7
      %v2621 = vsub.s32 0, %v2620
      %v2622 = vrot.slane %v2617, %v2621
      %2624 = vmatprep.subr.mxu0 0.0
      %2625 = vmatpush1.msra.mxu0 %v2601
      %2626 = vmatprep.subr.mxu0 0.0
      %2627 = vmatpush1.msra.mxu0 %v2602
      %2628 = vmatprep.subr.mxu0 0.0
      %2629 = vmatpush1.msra.mxu0 %v2603
      %2630 = vmatprep.subr.mxu0 0.0
      %2631 = vmatpush1.msra.mxu0 %v2604
      %2632 = vmatprep.subr.mxu0 0.0
      %2633 = vmatpush1.msra.mxu0 %v2605
      %2634 = vmatprep.subr.mxu0 0.0
      %2635 = vmatpush1.msra.mxu0 %v2606
      %2636 = vmatprep.subr.mxu0 0.0
      %2637 = vmatpush1.msra.mxu0 %v2607
      %2638 = vmatprep.subr.mxu0 0.0
      %2639 = vmatpush1.msra.mxu0 %v2608
      %2640 = vmatprep.subr.mxu0 0.0
      %2641 = vmatpush1.msra.mxu0 %v2609
      %2642 = vmatprep.subr.mxu0 0.0
      %2643 = vmatpush1.msra.mxu0 %v2610
      %2644 = vmatprep.subr.mxu0 0.0
      %2645 = vmatpush1.msra.mxu0 %v2611
      %2646 = vmatprep.subr.mxu0 0.0
      %2647 = vmatpush1.msra.mxu0 %v2612
      %2648 = vmatprep.subr.mxu0 0.0
      %2649 = vmatpush1.msra.mxu0 %v2613
      %2650 = vmatprep.subr.mxu0 0.0
      %2651 = vmatpush1.msra.mxu0 %v2614
      %2652 = vmatprep.subr.mxu0 0.0
      %2653 = vmatpush1.msra.mxu0 %v2615
      %2654 = vmatprep.subr.mxu0 0.0
      %2655 = vmatpush1.msra.mxu0 %v2616
      %2656 = vmatprep.subr.mxu0 0.0
      %2657 = vmatpush1.msra.mxu0 0.0
      %2658 = vmatprep.subr.mxu0 0.0
      %2659 = vmatpush1.msra.mxu0 0.0
      %2660 = vmatprep.subr.mxu0 0.0
      %2661 = vmatpush1.msra.mxu0 0.0
      %2662 = vmatprep.subr.mxu0 0.0
      %2663 = vmatpush1.msra.mxu0 0.0
      %2664 = vmatprep.subr.mxu0 0.0
      %2665 = vmatpush1.msra.mxu0 0.0
      %2666 = vmatprep.subr.mxu0 0.0
      %2667 = vmatpush1.msra.mxu0 0.0
      %2668 = vmatprep.subr.mxu0 0.0
      %2669 = vmatpush1.msra.mxu0 0.0
      %2670 = vmatprep.subr.mxu0 0.0
      %2671 = vmatpush1.msra.mxu0 0.0
      %2672 = vmatprep.subr.mxu0 0.0
      %2673 = vmatpush1.msra.mxu0 0.0
      %2674 = vmatprep.subr.mxu0 0.0
      %2675 = vmatpush1.msra.mxu0 0.0
      %2676 = vmatprep.subr.mxu0 0.0
      %2677 = vmatpush1.msra.mxu0 0.0
      %2678 = vmatprep.subr.mxu0 0.0
      %2679 = vmatpush1.msra.mxu0 0.0
      %2680 = vmatprep.subr.mxu0 0.0
      %2681 = vmatpush1.msra.mxu0 0.0
      %2682 = vmatprep.subr.mxu0 0.0
      %2683 = vmatpush1.msra.mxu0 0.0
      %2684 = vmatprep.subr.mxu0 0.0
      %2685 = vmatpush1.msra.mxu0 0.0
      %2686 = vmatprep.subr.mxu0 0.0
      %2687 = vmatpush1.msra.mxu0 0.0
      %2688 = vmatprep.mubr.f32.mxu0 0.0
      %2689 = vmatmul.mubr.f32.gmra.mrb[0].mxu0 %v2585
      %v2690 = vpop.f32.mrb[0].mxu0
      %v2691 = vadd.f32 %v2622, %v2690
      %v2692 = vpop.f32.mrb[0].mxu0
      %2693 = vmatprep.mubr.f32.mxu0 0.0
      %2694 = vmatmul.mubr.f32.gmra.mrb[0].mxu0 %v2586
      %v2695 = vpop.f32.mrb[0].mxu0
      %v2696 = vadd.f32 %v2622, %v2695
      %v2697 = vpop.f32.mrb[0].mxu0
      %2698 = vmatprep.mubr.f32.mxu0 0.0
      %2699 = vmatmul.mubr.f32.gmra.mrb[0].mxu0 %v2587
      %v2700 = vpop.f32.mrb[0].mxu0
      %v2701 = vadd.f32 %v2622, %v2700
      %v2702 = vpop.f32.mrb[0].mxu0
      %2703 = vmatprep.mubr.f32.mxu0 0.0
      %2704 = vmatmul.mubr.f32.gmra.mrb[0].mxu0 %v2588
      %v2705 = vpop.f32.mrb[0].mxu0
      %v2706 = vadd.f32 %v2622, %v2705
      %v2707 = vpop.f32.mrb[0].mxu0
      %2708 = vmatprep.mubr.f32.mxu0 0.0
      %2709 = vmatmul.mubr.f32.gmra.mrb[0].mxu0 %v2589
      %v2710 = vpop.f32.mrb[0].mxu0
      %v2711 = vadd.f32 %v2622, %v2710
      %v2712 = vpop.f32.mrb[0].mxu0
      %2713 = vmatprep.mubr.f32.mxu0 0.0
      %2714 = vmatmul.mubr.f32.gmra.mrb[0].mxu0 %v2590
      %v2715 = vpop.f32.mrb[0].mxu0
      %v2716 = vadd.f32 %v2622, %v2715
      %v2717 = vpop.f32.mrb[0].mxu0
      %2718 = vmatprep.mubr.f32.mxu0 0.0
      %2719 = vmatmul.mubr.f32.gmra.mrb[0].mxu0 %v2591
      %v2720 = vpop.f32.mrb[0].mxu0
      %v2721 = vadd.f32 %v2622, %v2720
      %v2722 = vpop.f32.mrb[0].mxu0
      %2723 = vmatprep.mubr.f32.mxu0 0.0
      %2724 = vmatmul.mubr.f32.gmra.mrb[0].mxu0 %v2592
      %v2725 = vpop.f32.mrb[0].mxu0
      %v2726 = vadd.f32 %v2622, %v2725
      %v2727 = vpop.f32.mrb[0].mxu0
      %2728 = vmatprep.mubr.f32.mxu0 0.0
      %2729 = vmatmul.mubr.f32.gmra.mrb[0].mxu0 %v2593
      %v2730 = vpop.f32.mrb[0].mxu0
      %v2731 = vadd.f32 %v2622, %v2730
      %v2732 = vpop.f32.mrb[0].mxu0
      %2733 = vmatprep.mubr.f32.mxu0 0.0
      %2734 = vmatmul.mubr.f32.gmra.mrb[0].mxu0 %v2594
      %v2735 = vpop.f32.mrb[0].mxu0
      %v2736 = vadd.f32 %v2622, %v2735
      %v2737 = vpop.f32.mrb[0].mxu0
      %2738 = vmatprep.mubr.f32.mxu0 0.0
      %2739 = vmatmul.mubr.f32.gmra.mrb[0].mxu0 %v2595
      %v2740 = vpop.f32.mrb[0].mxu0
      %v2741 = vadd.f32 %v2622, %v2740
      %v2742 = vpop.f32.mrb[0].mxu0
      %2743 = vmatprep.mubr.f32.mxu0 0.0
      %2744 = vmatmul.mubr.f32.gmra.mrb[0].mxu0 %v2596
      %v2745 = vpop.f32.mrb[0].mxu0
      %v2746 = vadd.f32 %v2622, %v2745
      %v2747 = vpop.f32.mrb[0].mxu0
      %2748 = vmatprep.mubr.f32.mxu0 0.0
      %2749 = vmatmul.mubr.f32.gmra.mrb[0].mxu0 %v2597
      %v2750 = vpop.f32.mrb[0].mxu0
      %v2751 = vadd.f32 %v2622, %v2750
      %v2752 = vpop.f32.mrb[0].mxu0
      %2753 = vmatprep.mubr.f32.mxu0 0.0
      %2754 = vmatmul.mubr.f32.gmra.mrb[0].mxu0 %v2598
      %v2755 = vpop.f32.mrb[0].mxu0
      %v2756 = vadd.f32 %v2622, %v2755
      %v2757 = vpop.f32.mrb[0].mxu0
      %2758 = vmatprep.mubr.f32.mxu0 0.0
      %2759 = vmatmul.mubr.f32.gmra.mrb[0].mxu0 %v2599
      %v2760 = vpop.f32.mrb[0].mxu0
      %v2761 = vadd.f32 %v2622, %v2760
      %v2762 = vpop.f32.mrb[0].mxu0
      %2763 = vmatprep.mubr.f32.mxu0 0.0
      %2764 = vmatmul.mubr.f32.gmra.mrb[0].mxu0 %v2600
      %v2765 = vpop.f32.mrb[0].mxu0
      %v2766 = vadd.f32 %v2622, %v2765
      %v2767 = vpop.f32.mrb[0].mxu0
      %2768 = vdwg.mxu0
      %v2769 = vadd.f32 %v2691, %v500
      %v2770 = vadd.f32 %v2696, %v501
      %v2771 = vadd.f32 %v2701, %v502
      %v2772 = vadd.f32 %v2706, %v503
      %v2773 = vadd.f32 %v2711, %v504
      %v2774 = vadd.f32 %v2716, %v505
      %v2775 = vadd.f32 %v2721, %v506
      %v2776 = vadd.f32 %v2726, %v507
      %v2777 = vadd.f32 %v2731, %v508
      %v2778 = vadd.f32 %v2736, %v509
      %v2779 = vadd.f32 %v2741, %v510
      %v2780 = vadd.f32 %v2746, %v511
      %v2781 = vadd.f32 %v2751, %v512
      %v2782 = vadd.f32 %v2756, %v513
      %v2783 = vadd.f32 %v2761, %v514
      %v2784 = vadd.f32 %v2766, %v515
      %v2785 = vmax.f32 %v2769, 0.0
      %v2786 = vmax.f32 %v2770, 0.0
      %v2787 = vmax.f32 %v2771, 0.0
      %v2788 = vmax.f32 %v2772, 0.0
      %v2789 = vmax.f32 %v2773, 0.0
      %v2790 = vmax.f32 %v2774, 0.0
      %v2791 = vmax.f32 %v2775, 0.0
      %v2792 = vmax.f32 %v2776, 0.0
      %v2793 = vmax.f32 %v2777, 0.0
      %v2794 = vmax.f32 %v2778, 0.0
      %v2795 = vmax.f32 %v2779, 0.0
      %v2796 = vmax.f32 %v2780, 0.0
      %v2797 = vmax.f32 %v2781, 0.0
      %v2798 = vmax.f32 %v2782, 0.0
      %v2799 = vmax.f32 %v2783, 0.0
      %v2800 = vmax.f32 %v2784, 0.0
      %2801 = vst.msk [vmem:[%s498] sm:$0xff] %vm531, %v2785
      %2802 = vst.msk [vmem:[%s498 + $0x8] sm:$0xff] %vm531, %v2786
      %2803 = vst.msk [vmem:[%s498 + $0x10] sm:$0xff] %vm531, %v2787
      %2804 = vst.msk [vmem:[%s498 + $0x18] sm:$0xff] %vm531, %v2788
      %2805 = vst.msk [vmem:[%s498 + $0x20] sm:$0xff] %vm531, %v2789
      %2806 = vst.msk [vmem:[%s498 + $0x28] sm:$0xff] %vm531, %v2790
      %2807 = vst.msk [vmem:[%s498 + $0x30] sm:$0xff] %vm531, %v2791
      %2808 = vst.msk [vmem:[%s498 + $0x38] sm:$0xff] %vm531, %v2792
      %2809 = vst.msk [vmem:[%s498 + $0x40] sm:$0xff] %vm531, %v2793
      %2810 = vst.msk [vmem:[%s498 + $0x48] sm:$0xff] %vm531, %v2794
      %2811 = vst.msk [vmem:[%s498 + $0x50] sm:$0xff] %vm531, %v2795
      %2812 = vst.msk [vmem:[%s498 + $0x58] sm:$0xff] %vm531, %v2796
      %2813 = vst.msk [vmem:[%s498 + $0x60] sm:$0xff] %vm531, %v2797
      %2814 = vst.msk [vmem:[%s498 + $0x68] sm:$0xff] %vm531, %v2798
      %2815 = vst.msk [vmem:[%s498 + $0x70] sm:$0xff] %vm531, %v2799
      %2816 = vst.msk [vmem:[%s498 + $0x78] sm:$0xff] %vm531, %v2800
      %s2817 = smul.u32 16, %s25
      %p2818 = scmp.lt.s32.totalorder %s24, 1
      %s2819 = scalar_select %p2818, %s24, 1
      %p2820 = scmp.lt.s32.totalorder %s2817, 31
      %s2821 = scalar_select %p2820, %s2817, 31
      %s2822 = smul.addr %s2819, 32
      %s2823 = sadd.s32 %s2821, %s2822
      %s2824 = smul.addr %s2823, 8
      %s2825 = scalar_lea.vmem %s9, %s2824
      // Predicated region
      $region57: #{tpu_custom_call.1} parent=55 // pred_check
        %p2826 = pneg %p278
      $region58: #{tpu_custom_call.1} parent=55 // pred_check_branch
        %2828 = sbr.rel (%p2826) target = $region60
      $region59: #{tpu_custom_call.1} parent=55 // pred_region
        %s2829 = smul.u32 16, %s25
      $region60: #{tpu_custom_call.1} parent=55 // pred_fallthru
        _
    $region56: #{tpu_custom_call.1} parent=5 // pred_fallthru
      _
    %p2830 = scmp.le.s32.totalorder 2, %s15
    // Predicated region
    $region61: #{tpu_custom_call.1} parent=5 // pred_check
      %p2831 = pneg %p2830
    $region62: #{tpu_custom_call.1} parent=5 // pred_check_branch
      %2833 = sbr.rel (%p2831) target = $region64
    $region63: #{tpu_custom_call.1} parent=5 // pred_region
      %s2834 = ssub.s32 %s15, 2
      // Predicated region
      $region65: #{tpu_custom_call.1} parent=63 // pred_check
        %p2835 = pneg %p284
      $region66: #{tpu_custom_call.1} parent=63 // pred_check_branch
        %2837 = sbr.rel (%p2835) target = $region68
      $region67: #{tpu_custom_call.1} parent=63 // pred_region
        %s2838 = smul.u32 16, %s27
        %p2839 = scmp.lt.s32.totalorder %s26, 1
        %s2840 = scalar_select %p2839, %s26, 1
        %p2841 = scmp.lt.s32.totalorder %s2838, 31
        %s2842 = scalar_select %p2841, %s2838, 31
        %s2843 = smul.addr %s2840, 32
        %s2844 = sadd.s32 %s2842, %s2843
        %s2845 = smul.addr %s2844, 8
        %s2846 = scalar_lea.vmem %s9, %s2845
      $region68: #{tpu_custom_call.1} parent=63 // pred_fallthru
        _
    $region64: #{tpu_custom_call.1} parent=5 // pred_fallthru
      _
  $region6: #{tpu_custom_call.1} parent=0 // loop_footer
    %s19 = sadd.s32 1, %s15
  $region7: #{tpu_custom_call.1} parent=0 // loop_footer_branch
    %14 = sbr.rel target = $region3
  $region8: #{tpu_custom_call.1} parent=0 // loop_exit
    _

</llo_original>
